<compile_context>
chip_gen: v6e
topology: v6e:2x2x1
jax: 0.10.0
libtpu: 0.0.40
codegen_flags: <defaults>
</compile_context>

<pallas_src>
import jax
import jax.numpy as jnp
from jax import lax
from jax.experimental import pallas as pl
from jax.experimental.pallas import tpu as pltpu

NEG_SLOPE = 0.2


# ----------------------------------------------------------------------------
# Fused Pallas forward (one pallas_call for the whole discriminator).
# ----------------------------------------------------------------------------
def make_fused_forward(B, T0, C):
    """Builds a jittable forward(x, prepared_params) for fixed (B, T0, C)."""
    K0, KS, PAD, S, K4 = 15, 41, 20, 4, 3
    T1 = T0 - K0 + 1                       # layer 0 output length (pad 0)
    T2 = (T1 + S - 1) // S                 # layers 1..3: k=41, s=4, p=20
    T3 = (T2 + S - 1) // S
    T4 = (T3 + S - 1) // S
    T5 = T4                                # final conv: k=3, s=1, p=1
    Lp1, Lp2, Lp3 = T1 + 2 * PAD, T2 + 2 * PAD, T3 + 2 * PAD
    Lp4 = T4 + 2

    def kernel(x_ref, w0_ref, b0_ref, w1_ref, b1_ref, w2_ref, b2_ref,
               w3_ref, b3_ref, w4_ref, b4_ref,
               f0_ref, f1_ref, f2_ref, f3_ref, sc_ref,
               h1_ref, h2_ref, h3_ref, h4_ref, acc_ref):

        def leaky(y):
            return jnp.where(y >= 0, y, NEG_SLOPE * y)

        def store_padded(h_ref, out, t_len, lp, pad):
            # zero-padded activation kept resident in VMEM for the next layer
            h_ref[0:pad, :] = jnp.zeros((pad, C), jnp.float32)
            h_ref[pad:pad + t_len, :] = out
            h_ref[pad + t_len:lp, :] = jnp.zeros((lp - pad - t_len, C),
                                                 jnp.float32)

        def strided_layer(h_ref, w_ref, b_ref, t_full, t_out):
            # full stride-1 conv via per-tap matmuls (contiguous dyn reads)
            acc_ref[0:t_full, :] = jnp.zeros((t_full, C), jnp.float32)

            def tap(k, carry):
                xs = h_ref[pl.ds(k, t_full), :].astype(jnp.bfloat16)
                acc_ref[0:t_full, :] += jnp.dot(
                    xs, w_ref[k], preferred_element_type=jnp.float32)
                return carry

            lax.fori_loop(0, KS, tap, 0)
            acc = acc_ref[0:t_full, :]
            # decimate rows by the conv stride with a 0/1 selection matmul
            rows = lax.broadcasted_iota(jnp.int32, (t_out, t_full), 0)
            cols = lax.broadcasted_iota(jnp.int32, (t_out, t_full), 1)
            sel = (cols == S * rows).astype(jnp.float32)
            dec = jnp.dot(sel, acc, preferred_element_type=jnp.float32)
            return leaky(dec + b_ref[...])

        # ---- layer 0: Conv1d(1, C, 15, stride=1, pad=0) + LeakyReLU (VPU) --
        xcol = x_ref[0]                      # (T0, 1)
        w0 = w0_ref[...]                     # (15, C)
        acc0 = jnp.zeros((T1, C), jnp.float32)
        for k in range(K0):
            acc0 = acc0 + xcol[k:k + T1, :] * w0[k:k + 1, :]
        out0 = leaky(acc0 + b0_ref[...])
        f0_ref[0] = out0
        store_padded(h1_ref, out0, T1, Lp1, PAD)

        # ---- layers 1..3: grouped Conv1d(C, C, 41, s=4, p=20) + LeakyReLU --
        out1 = strided_layer(h1_ref, w1_ref, b1_ref, T1, T2)
        f1_ref[0] = out1
        store_padded(h2_ref, out1, T2, Lp2, PAD)

        out2 = strided_layer(h2_ref, w2_ref, b2_ref, T2, T3)
        f2_ref[0] = out2
        store_padded(h3_ref, out2, T3, Lp3, PAD)

        out3 = strided_layer(h3_ref, w3_ref, b3_ref, T3, T4)
        f3_ref[0] = out3
        store_padded(h4_ref, out3, T4, Lp4, 1)

        # ---- layer 4: Conv1d(C, 1, 3, s=1, p=1) + LeakyReLU (VPU dot) ------
        h4 = h4_ref[...]                     # (Lp4, C)
        w4 = w4_ref[...]                     # (3, C)
        acc4 = jnp.zeros((T5, C), jnp.float32)
        for k in range(K4):
            acc4 = acc4 + h4[k:k + T5, :] * w4[k:k + 1, :]
        score = jnp.sum(acc4, axis=1, keepdims=True) + b4_ref[...]
        sc_ref[0] = leaky(score)

    def spec2(shape):
        return pl.BlockSpec(shape, lambda b: (0, 0))

    def spec3(shape):
        return pl.BlockSpec(shape, lambda b: (0, 0, 0))

    call = pl.pallas_call(
        kernel,
        out_shape=(
            jax.ShapeDtypeStruct((B, T1, C), jnp.float32),
            jax.ShapeDtypeStruct((B, T2, C), jnp.float32),
            jax.ShapeDtypeStruct((B, T3, C), jnp.float32),
            jax.ShapeDtypeStruct((B, T4, C), jnp.float32),
            jax.ShapeDtypeStruct((B, T5, 1), jnp.float32),
        ),
        grid=(B,),
        in_specs=[
            pl.BlockSpec((1, T0, 1), lambda b: (b, 0, 0)),   # x (B, T0, 1)
            spec2((K0, C)), spec2((1, C)),                   # layer 0
            spec3((KS, C, C)), spec2((1, C)),                # layer 1
            spec3((KS, C, C)), spec2((1, C)),                # layer 2
            spec3((KS, C, C)), spec2((1, C)),                # layer 3
            spec2((K4, C)), spec2((1, 1)),                   # layer 4
        ],
        out_specs=[
            pl.BlockSpec((1, T1, C), lambda b: (b, 0, 0)),
            pl.BlockSpec((1, T2, C), lambda b: (b, 0, 0)),
            pl.BlockSpec((1, T3, C), lambda b: (b, 0, 0)),
            pl.BlockSpec((1, T4, C), lambda b: (b, 0, 0)),
            pl.BlockSpec((1, T5, 1), lambda b: (b, 0, 0)),
        ],
        scratch_shapes=[
            pltpu.VMEM((Lp1, C), jnp.float32),   # padded act for layer 1
            pltpu.VMEM((Lp2, C), jnp.float32),   # padded act for layer 2
            pltpu.VMEM((Lp3, C), jnp.float32),   # padded act for layer 3
            pltpu.VMEM((Lp4, C), jnp.float32),   # padded act for layer 4
            pltpu.VMEM((T1, C), jnp.float32),    # shared conv accumulator
        ],
        compiler_params=pltpu.CompilerParams(
            dimension_semantics=("parallel",)),
    )

    def forward(x, prepared):
        (w0, b0, w1, b1, w2, b2, w3, b3, w4, b4) = prepared
        x_t = jnp.transpose(x, (0, 2, 1)).astype(jnp.float32)  # (B, T0, 1)
        f0, f1, f2, f3, sc = call(x_t, w0, b0, w1, b1, w2, b2, w3, b3, w4, b4)
        feats = [jnp.transpose(f, (0, 2, 1)) for f in (f0, f1, f2, f3)]
        score = jnp.transpose(sc, (0, 2, 1))
        return feats, score

    return forward


# ----------------------------------------------------------------------------
# One-time parameter preparation (weight norm, group expansion, bf16 cast).
# ----------------------------------------------------------------------------
def apply_weight_norm(v, g):
    """PyTorch weight_norm (dim=0): w = g * v / ||v||_2 per output channel."""
    norm = jnp.sqrt(jnp.sum(v * v, axis=(1, 2), keepdims=True))
    return g[:, None, None] * v / norm


def expand_grouped(w, groups, c_in):
    """(C_out, C_in/groups, K) -> block-diagonal dense (C_out, C_in, K)."""
    c_out, cig, k = w.shape
    cog = c_out // groups
    w_full = jnp.zeros((c_out, c_in, k), w.dtype)
    for g in range(groups):
        w_full = w_full.at[g * cog:(g + 1) * cog,
                           g * cig:(g + 1) * cig, :].set(w[g * cog:(g + 1) * cog])
    return w_full


def prepare_params(params):
    """Done ONCE outside the per-step forward: weight_norm, group expansion,
    (K, Cin, Cout) transposes and bf16 cast of the MXU weights."""
    out = []
    n = len(params)
    for li, (v, g, b, cfg) in enumerate(params):
        w = apply_weight_norm(v, g)                          # (Cout, Cin/g, K)
        if li == 0:
            out += [jnp.transpose(w[:, 0, :], (1, 0)).astype(jnp.float32),
                    b.reshape(1, -1).astype(jnp.float32)]    # (15, C), (1, C)
        elif li == n - 1:
            out += [jnp.transpose(w[0], (1, 0)).astype(jnp.float32),
                    b.reshape(1, 1).astype(jnp.float32)]     # (3, C), (1, 1)
        else:
            wf = expand_grouped(w, cfg["groups"], cfg["cin"])   # (Cout,Cin,K)
            wt = jnp.transpose(wf, (2, 1, 0)).astype(jnp.bfloat16)  # (K,Cin,Cout)
            out += [wt, b.reshape(1, -1).astype(jnp.float32)]
    return tuple(out)


# ----------------------------------------------------------------------------
# Module configuration / init (mirrors the PyTorch module).
# ----------------------------------------------------------------------------
def make_layer_configs(ndf, n_layers=3, downsampling_factor=4):
    cfgs = [dict(cin=1, cout=ndf, k=15, stride=1, pad=0, groups=1)]
    stride = downsampling_factor
    groups = stride
    for _ in range(1, n_layers + 1):
        groups = 2 * groups
        cfgs.append(dict(cin=ndf, cout=ndf, k=stride * 10 + 1, stride=stride,
                         pad=stride * 5, groups=groups))
    cfgs.append(dict(cin=ndf, cout=1, k=3, stride=1, pad=1, groups=1))
    return cfgs


def init_params(key, cfgs):
    params = []
    for cfg in cfgs:
        key, k1, k2, k3 = jax.random.split(key, 4)
        cig = cfg["cin"] // cfg["groups"]
        v = 0.05 * jax.random.normal(k1, (cfg["cout"], cig, cfg["k"]),
                                     jnp.float32)
        g = 1.0 + 0.1 * jax.random.normal(k2, (cfg["cout"],), jnp.float32)
        b = 0.1 * jax.random.normal(k3, (cfg["cout"],), jnp.float32)
        params.append((v, g, b, cfg))
    return params


# ----------------------------------------------------------------------------
# Pure-JAX reference (for validation).
# ----------------------------------------------------------------------------
def forward_reference(x, params):
    feats = []
    for (v, g, b, cfg) in params:
        w = apply_weight_norm(v, g)
        y = jax.lax.conv_general_dilated(
            x, w, window_strides=(cfg["stride"],),
            padding=[(cfg["pad"], cfg["pad"])],
            dimension_numbers=("NCH", "OIH", "NCH"),
            feature_group_count=cfg["groups"])
        y = y + b[None, :, None]
        x = jnp.where(y >= 0, y, NEG_SLOPE * y)
        feats.append(x)
    return feats[:-1], feats[-1]


# ----------------------------------------------------------------------------
if __name__ == "__main__":
    # Small shapes: ndf must be divisible by the final group count (32).
    NDF = 32
    B, T = 2, 256

    cfgs = make_layer_configs(NDF)
    key = jax.random.PRNGKey(0)
    kp, kx = jax.random.split(key)
    params = init_params(kp, cfgs)
    x = jax.random.normal(kx, (B, 1, T), jnp.float32)   # NCL, like PyTorch

    prepared = prepare_params(params)                   # one-time weight prep
    forward = jax.jit(make_fused_forward(B, T, NDF))

    feats, score = forward(x, prepared)
    jax.block_until_ready(score)
    for f in feats:
        jax.block_until_ready(f)

    # Validate against pure-JAX f32 reference (kernel uses bf16 MXU inputs
    # with f32 accumulation, hence the 3e-2 tolerance).
    feats_ref, score_ref = forward_reference(x, params)
    for a, r in zip(feats + [score], feats_ref + [score_ref]):
        assert a.shape == r.shape, (a.shape, r.shape)
        assert jnp.allclose(a, r, rtol=3e-2, atol=3e-2), float(
            jnp.max(jnp.abs(a - r)))

    # Expected shapes: 242 -> 61 -> 16 -> 4 features; score (B, 1, 4).
    assert [f.shape for f in feats] == [(B, NDF, 242), (B, NDF, 61),
                                        (B, NDF, 16), (B, NDF, 4)]
    assert score.shape == (B, 1, 4)

    print("KERNEL_OK")
</pallas_src>

<mosaic_0001>
module attributes {stable_mosaic.version = 11 : i64} {
  func.func @kernel(%arg0: i32, %arg1: memref<1x256x1xf32, #tpu.memory_space<vmem>>, %arg2: memref<15x32xf32, #tpu.memory_space<vmem>>, %arg3: memref<1x32xf32, #tpu.memory_space<vmem>>, %arg4: memref<41x32x32xbf16, #tpu.memory_space<vmem>>, %arg5: memref<1x32xf32, #tpu.memory_space<vmem>>, %arg6: memref<41x32x32xbf16, #tpu.memory_space<vmem>>, %arg7: memref<1x32xf32, #tpu.memory_space<vmem>>, %arg8: memref<41x32x32xbf16, #tpu.memory_space<vmem>>, %arg9: memref<1x32xf32, #tpu.memory_space<vmem>>, %arg10: memref<3x32xf32, #tpu.memory_space<vmem>>, %arg11: memref<1x1xf32, #tpu.memory_space<vmem>>, %arg12: memref<1x242x32xf32, #tpu.memory_space<vmem>>, %arg13: memref<1x61x32xf32, #tpu.memory_space<vmem>>, %arg14: memref<1x16x32xf32, #tpu.memory_space<vmem>>, %arg15: memref<1x4x32xf32, #tpu.memory_space<vmem>>, %arg16: memref<1x4x1xf32, #tpu.memory_space<vmem>>, %arg17: memref<282x32xf32, #tpu.memory_space<vmem>>, %arg18: memref<101x32xf32, #tpu.memory_space<vmem>>, %arg19: memref<56x32xf32, #tpu.memory_space<vmem>>, %arg20: memref<6x32xf32, #tpu.memory_space<vmem>>, %arg21: memref<242x32xf32, #tpu.memory_space<vmem>>) attributes {dimension_semantics = [#tpu.dimension_semantics<parallel>], iteration_bounds = array<i64: 2>, scalar_prefetch = 0 : i64, scratch_operands = 5 : i64, tpu.core_type = #tpu.core_type<tc>, window_params = [{transform_indices = @transform_0, window_bounds = array<i64: 1, 256, 1>}, {pipeline_mode = #tpu.pipeline_mode<synchronous>, transform_indices = @transform_1, window_bounds = array<i64: 15, 32>}, {pipeline_mode = #tpu.pipeline_mode<synchronous>, transform_indices = @transform_2, window_bounds = array<i64: 1, 32>}, {pipeline_mode = #tpu.pipeline_mode<synchronous>, transform_indices = @transform_3, window_bounds = array<i64: 41, 32, 32>}, {pipeline_mode = #tpu.pipeline_mode<synchronous>, transform_indices = @transform_4, window_bounds = array<i64: 1, 32>}, {pipeline_mode = #tpu.pipeline_mode<synchronous>, transform_indices = @transform_5, window_bounds = array<i64: 41, 32, 32>}, {pipeline_mode = #tpu.pipeline_mode<synchronous>, transform_indices = @transform_6, window_bounds = array<i64: 1, 32>}, {pipeline_mode = #tpu.pipeline_mode<synchronous>, transform_indices = @transform_7, window_bounds = array<i64: 41, 32, 32>}, {pipeline_mode = #tpu.pipeline_mode<synchronous>, transform_indices = @transform_8, window_bounds = array<i64: 1, 32>}, {pipeline_mode = #tpu.pipeline_mode<synchronous>, transform_indices = @transform_9, window_bounds = array<i64: 3, 32>}, {pipeline_mode = #tpu.pipeline_mode<synchronous>, transform_indices = @transform_10, window_bounds = array<i64: 1, 1>}, {transform_indices = @transform_11, window_bounds = array<i64: 1, 242, 32>}, {transform_indices = @transform_12, window_bounds = array<i64: 1, 61, 32>}, {transform_indices = @transform_13, window_bounds = array<i64: 1, 16, 32>}, {transform_indices = @transform_14, window_bounds = array<i64: 1, 4, 32>}, {transform_indices = @transform_15, window_bounds = array<i64: 1, 4, 1>}]} {
    %c0 = arith.constant 0 : index
    %c0_0 = arith.constant 0 : index
    %c0_1 = arith.constant 0 : index
    %0 = vector.load %arg1[%c0, %c0_0, %c0_1] : memref<1x256x1xf32, #tpu.memory_space<vmem>>, vector<1x256x1xf32>
    %1 = vector.shape_cast %0 : vector<1x256x1xf32> to vector<256x1xf32>
    %c0_2 = arith.constant 0 : index
    %c0_3 = arith.constant 0 : index
    %2 = vector.load %arg2[%c0_2, %c0_3] : memref<15x32xf32, #tpu.memory_space<vmem>>, vector<15x32xf32>
    %cst = arith.constant 0.000000e+00 : f32
    %3 = vector.broadcast %cst : f32 to vector<242x32xf32>
    %4 = vector.extract_strided_slice %1 {offsets = [0, 0], sizes = [242, 1], strides = [1, 1]} : vector<256x1xf32> to vector<242x1xf32>
    %5 = vector.extract_strided_slice %2 {offsets = [0, 0], sizes = [1, 32], strides = [1, 1]} : vector<15x32xf32> to vector<1x32xf32>
    %6 = vector.broadcast %4 : vector<242x1xf32> to vector<242x32xf32>
    %7 = vector.broadcast %5 : vector<1x32xf32> to vector<242x32xf32>
    %8 = arith.mulf %6, %7 : vector<242x32xf32>
    %9 = arith.addf %3, %8 : vector<242x32xf32>
    %10 = vector.extract_strided_slice %1 {offsets = [1, 0], sizes = [242, 1], strides = [1, 1]} : vector<256x1xf32> to vector<242x1xf32>
    %11 = vector.extract_strided_slice %2 {offsets = [1, 0], sizes = [1, 32], strides = [1, 1]} : vector<15x32xf32> to vector<1x32xf32>
    %12 = vector.broadcast %10 : vector<242x1xf32> to vector<242x32xf32>
    %13 = vector.broadcast %11 : vector<1x32xf32> to vector<242x32xf32>
    %14 = arith.mulf %12, %13 : vector<242x32xf32>
    %15 = arith.addf %9, %14 : vector<242x32xf32>
    %16 = vector.extract_strided_slice %1 {offsets = [2, 0], sizes = [242, 1], strides = [1, 1]} : vector<256x1xf32> to vector<242x1xf32>
    %17 = vector.extract_strided_slice %2 {offsets = [2, 0], sizes = [1, 32], strides = [1, 1]} : vector<15x32xf32> to vector<1x32xf32>
    %18 = vector.broadcast %16 : vector<242x1xf32> to vector<242x32xf32>
    %19 = vector.broadcast %17 : vector<1x32xf32> to vector<242x32xf32>
    %20 = arith.mulf %18, %19 : vector<242x32xf32>
    %21 = arith.addf %15, %20 : vector<242x32xf32>
    %22 = vector.extract_strided_slice %1 {offsets = [3, 0], sizes = [242, 1], strides = [1, 1]} : vector<256x1xf32> to vector<242x1xf32>
    %23 = vector.extract_strided_slice %2 {offsets = [3, 0], sizes = [1, 32], strides = [1, 1]} : vector<15x32xf32> to vector<1x32xf32>
    %24 = vector.broadcast %22 : vector<242x1xf32> to vector<242x32xf32>
    %25 = vector.broadcast %23 : vector<1x32xf32> to vector<242x32xf32>
    %26 = arith.mulf %24, %25 : vector<242x32xf32>
    %27 = arith.addf %21, %26 : vector<242x32xf32>
    %28 = vector.extract_strided_slice %1 {offsets = [4, 0], sizes = [242, 1], strides = [1, 1]} : vector<256x1xf32> to vector<242x1xf32>
    %29 = vector.extract_strided_slice %2 {offsets = [4, 0], sizes = [1, 32], strides = [1, 1]} : vector<15x32xf32> to vector<1x32xf32>
    %30 = vector.broadcast %28 : vector<242x1xf32> to vector<242x32xf32>
    %31 = vector.broadcast %29 : vector<1x32xf32> to vector<242x32xf32>
    %32 = arith.mulf %30, %31 : vector<242x32xf32>
    %33 = arith.addf %27, %32 : vector<242x32xf32>
    %34 = vector.extract_strided_slice %1 {offsets = [5, 0], sizes = [242, 1], strides = [1, 1]} : vector<256x1xf32> to vector<242x1xf32>
    %35 = vector.extract_strided_slice %2 {offsets = [5, 0], sizes = [1, 32], strides = [1, 1]} : vector<15x32xf32> to vector<1x32xf32>
    %36 = vector.broadcast %34 : vector<242x1xf32> to vector<242x32xf32>
    %37 = vector.broadcast %35 : vector<1x32xf32> to vector<242x32xf32>
    %38 = arith.mulf %36, %37 : vector<242x32xf32>
    %39 = arith.addf %33, %38 : vector<242x32xf32>
    %40 = vector.extract_strided_slice %1 {offsets = [6, 0], sizes = [242, 1], strides = [1, 1]} : vector<256x1xf32> to vector<242x1xf32>
    %41 = vector.extract_strided_slice %2 {offsets = [6, 0], sizes = [1, 32], strides = [1, 1]} : vector<15x32xf32> to vector<1x32xf32>
    %42 = vector.broadcast %40 : vector<242x1xf32> to vector<242x32xf32>
    %43 = vector.broadcast %41 : vector<1x32xf32> to vector<242x32xf32>
    %44 = arith.mulf %42, %43 : vector<242x32xf32>
    %45 = arith.addf %39, %44 : vector<242x32xf32>
    %46 = vector.extract_strided_slice %1 {offsets = [7, 0], sizes = [242, 1], strides = [1, 1]} : vector<256x1xf32> to vector<242x1xf32>
    %47 = vector.extract_strided_slice %2 {offsets = [7, 0], sizes = [1, 32], strides = [1, 1]} : vector<15x32xf32> to vector<1x32xf32>
    %48 = vector.broadcast %46 : vector<242x1xf32> to vector<242x32xf32>
    %49 = vector.broadcast %47 : vector<1x32xf32> to vector<242x32xf32>
    %50 = arith.mulf %48, %49 : vector<242x32xf32>
    %51 = arith.addf %45, %50 : vector<242x32xf32>
    %52 = vector.extract_strided_slice %1 {offsets = [8, 0], sizes = [242, 1], strides = [1, 1]} : vector<256x1xf32> to vector<242x1xf32>
    %53 = vector.extract_strided_slice %2 {offsets = [8, 0], sizes = [1, 32], strides = [1, 1]} : vector<15x32xf32> to vector<1x32xf32>
    %54 = vector.broadcast %52 : vector<242x1xf32> to vector<242x32xf32>
    %55 = vector.broadcast %53 : vector<1x32xf32> to vector<242x32xf32>
    %56 = arith.mulf %54, %55 : vector<242x32xf32>
    %57 = arith.addf %51, %56 : vector<242x32xf32>
    %58 = vector.extract_strided_slice %1 {offsets = [9, 0], sizes = [242, 1], strides = [1, 1]} : vector<256x1xf32> to vector<242x1xf32>
    %59 = vector.extract_strided_slice %2 {offsets = [9, 0], sizes = [1, 32], strides = [1, 1]} : vector<15x32xf32> to vector<1x32xf32>
    %60 = vector.broadcast %58 : vector<242x1xf32> to vector<242x32xf32>
    %61 = vector.broadcast %59 : vector<1x32xf32> to vector<242x32xf32>
    %62 = arith.mulf %60, %61 : vector<242x32xf32>
    %63 = arith.addf %57, %62 : vector<242x32xf32>
    %64 = vector.extract_strided_slice %1 {offsets = [10, 0], sizes = [242, 1], strides = [1, 1]} : vector<256x1xf32> to vector<242x1xf32>
    %65 = vector.extract_strided_slice %2 {offsets = [10, 0], sizes = [1, 32], strides = [1, 1]} : vector<15x32xf32> to vector<1x32xf32>
    %66 = vector.broadcast %64 : vector<242x1xf32> to vector<242x32xf32>
    %67 = vector.broadcast %65 : vector<1x32xf32> to vector<242x32xf32>
    %68 = arith.mulf %66, %67 : vector<242x32xf32>
    %69 = arith.addf %63, %68 : vector<242x32xf32>
    %70 = vector.extract_strided_slice %1 {offsets = [11, 0], sizes = [242, 1], strides = [1, 1]} : vector<256x1xf32> to vector<242x1xf32>
    %71 = vector.extract_strided_slice %2 {offsets = [11, 0], sizes = [1, 32], strides = [1, 1]} : vector<15x32xf32> to vector<1x32xf32>
    %72 = vector.broadcast %70 : vector<242x1xf32> to vector<242x32xf32>
    %73 = vector.broadcast %71 : vector<1x32xf32> to vector<242x32xf32>
    %74 = arith.mulf %72, %73 : vector<242x32xf32>
    %75 = arith.addf %69, %74 : vector<242x32xf32>
    %76 = vector.extract_strided_slice %1 {offsets = [12, 0], sizes = [242, 1], strides = [1, 1]} : vector<256x1xf32> to vector<242x1xf32>
    %77 = vector.extract_strided_slice %2 {offsets = [12, 0], sizes = [1, 32], strides = [1, 1]} : vector<15x32xf32> to vector<1x32xf32>
    %78 = vector.broadcast %76 : vector<242x1xf32> to vector<242x32xf32>
    %79 = vector.broadcast %77 : vector<1x32xf32> to vector<242x32xf32>
    %80 = arith.mulf %78, %79 : vector<242x32xf32>
    %81 = arith.addf %75, %80 : vector<242x32xf32>
    %82 = vector.extract_strided_slice %1 {offsets = [13, 0], sizes = [242, 1], strides = [1, 1]} : vector<256x1xf32> to vector<242x1xf32>
    %83 = vector.extract_strided_slice %2 {offsets = [13, 0], sizes = [1, 32], strides = [1, 1]} : vector<15x32xf32> to vector<1x32xf32>
    %84 = vector.broadcast %82 : vector<242x1xf32> to vector<242x32xf32>
    %85 = vector.broadcast %83 : vector<1x32xf32> to vector<242x32xf32>
    %86 = arith.mulf %84, %85 : vector<242x32xf32>
    %87 = arith.addf %81, %86 : vector<242x32xf32>
    %88 = vector.extract_strided_slice %1 {offsets = [14, 0], sizes = [242, 1], strides = [1, 1]} : vector<256x1xf32> to vector<242x1xf32>
    %89 = vector.extract_strided_slice %2 {offsets = [14, 0], sizes = [1, 32], strides = [1, 1]} : vector<15x32xf32> to vector<1x32xf32>
    %90 = vector.broadcast %88 : vector<242x1xf32> to vector<242x32xf32>
    %91 = vector.broadcast %89 : vector<1x32xf32> to vector<242x32xf32>
    %92 = arith.mulf %90, %91 : vector<242x32xf32>
    %93 = arith.addf %87, %92 : vector<242x32xf32>
    %c0_4 = arith.constant 0 : index
    %c0_5 = arith.constant 0 : index
    %94 = vector.load %arg3[%c0_4, %c0_5] : memref<1x32xf32, #tpu.memory_space<vmem>>, vector<1x32xf32>
    %95 = vector.broadcast %94 : vector<1x32xf32> to vector<242x32xf32>
    %96 = arith.addf %93, %95 : vector<242x32xf32>
    %cst_6 = arith.constant 0.000000e+00 : f32
    %97 = vector.broadcast %cst_6 : f32 to vector<242x32xf32>
    %98 = arith.cmpf oge, %96, %97 : vector<242x32xf32>
    %cst_7 = arith.constant 2.000000e-01 : f32
    %99 = vector.broadcast %cst_7 : f32 to vector<242x32xf32>
    %100 = arith.mulf %99, %96 : vector<242x32xf32>
    %101 = arith.select %98, %96, %100 : vector<242x32xi1>, vector<242x32xf32>
    %c0_8 = arith.constant 0 : index
    %c0_9 = arith.constant 0 : index
    %c0_10 = arith.constant 0 : index
    %102 = vector.load %arg12[%c0_8, %c0_9, %c0_10] : memref<1x242x32xf32, #tpu.memory_space<vmem>>, vector<1x242x32xf32>
    %103 = vector.shape_cast %102 : vector<1x242x32xf32> to vector<242x32xf32>
    %104 = vector.shape_cast %101 : vector<242x32xf32> to vector<1x242x32xf32>
    tpu.vector_store %arg12[%c0_8, %c0_9, %c0_10], %104 {strides = array<i32>} : memref<1x242x32xf32, #tpu.memory_space<vmem>>, vector<1x242x32xf32>,
    %cst_11 = arith.constant 0.000000e+00 : f32
    %105 = vector.broadcast %cst_11 : f32 to vector<20x32xf32>
    %c0_12 = arith.constant 0 : index
    %c0_13 = arith.constant 0 : index
    %106 = vector.load %arg17[%c0_12, %c0_13] : memref<282x32xf32, #tpu.memory_space<vmem>>, vector<20x32xf32>
    tpu.vector_store %arg17[%c0_12, %c0_13], %105 {strides = array<i32>} : memref<282x32xf32, #tpu.memory_space<vmem>>, vector<20x32xf32>,
    %c20 = arith.constant 20 : index
    %c0_14 = arith.constant 0 : index
    %107 = vector.load %arg17[%c20, %c0_14] : memref<282x32xf32, #tpu.memory_space<vmem>>, vector<242x32xf32>
    tpu.vector_store %arg17[%c20, %c0_14], %101 {strides = array<i32>} : memref<282x32xf32, #tpu.memory_space<vmem>>, vector<242x32xf32>,
    %cst_15 = arith.constant 0.000000e+00 : f32
    %108 = vector.broadcast %cst_15 : f32 to vector<20x32xf32>
    %c262 = arith.constant 262 : index
    %c0_16 = arith.constant 0 : index
    %109 = vector.load %arg17[%c262, %c0_16] : memref<282x32xf32, #tpu.memory_space<vmem>>, vector<20x32xf32>
    tpu.vector_store %arg17[%c262, %c0_16], %108 {strides = array<i32>} : memref<282x32xf32, #tpu.memory_space<vmem>>, vector<20x32xf32>,
    %cst_17 = arith.constant 0.000000e+00 : f32
    %110 = vector.broadcast %cst_17 : f32 to vector<242x32xf32>
    %c0_18 = arith.constant 0 : index
    %c0_19 = arith.constant 0 : index
    %111 = vector.load %arg21[%c0_18, %c0_19] : memref<242x32xf32, #tpu.memory_space<vmem>>, vector<242x32xf32>
    tpu.vector_store %arg21[%c0_18, %c0_19], %110 {strides = array<i32>} : memref<242x32xf32, #tpu.memory_space<vmem>>, vector<242x32xf32>,
    %c0_i32 = arith.constant 0 : i32
    %c41_i32 = arith.constant 41 : i32
    %112 = arith.addi %c0_i32, %c41_i32 : i32
    %c1_i32 = arith.constant 1 : i32
    scf.for %arg22 = %c0_i32 to %112 step %c1_i32  : i32 {
      %225 = arith.index_cast %arg22 : i32 to index
      %c0_100 = arith.constant 0 : index
      %226 = vector.load %arg17[%225, %c0_100] : memref<282x32xf32, #tpu.memory_space<vmem>>, vector<242x32xf32>
      %227 = arith.truncf %226 : vector<242x32xf32> to vector<242x32xbf16>
      %c0_101 = arith.constant 0 : index
      %c0_102 = arith.constant 0 : index
      %228 = vector.load %arg21[%c0_101, %c0_102] : memref<242x32xf32, #tpu.memory_space<vmem>>, vector<242x32xf32>
      %229 = arith.index_cast %arg22 : i32 to index
      %c0_103 = arith.constant 0 : index
      %c0_104 = arith.constant 0 : index
      %230 = vector.load %arg4[%229, %c0_103, %c0_104] : memref<41x32x32xbf16, #tpu.memory_space<vmem>>, vector<1x32x32xbf16>
      %231 = vector.shape_cast %230 : vector<1x32x32xbf16> to vector<32x32xbf16>
      %cst_105 = arith.constant dense<0.000000e+00> : vector<242x32xf32>
      %232 = tpu.matmul %227, %231, %cst_105 {dimension_numbers = #tpu.dot_dimension_numbers<[1], [0], [0], [1], [0, 0, 1, 1], [], []>} : vector<242x32xbf16>, vector<32x32xbf16>, vector<242x32xf32> -> vector<242x32xf32>
      %233 = arith.addf %228, %232 : vector<242x32xf32>
      %c0_106 = arith.constant 0 : index
      %c0_107 = arith.constant 0 : index
      %234 = vector.load %arg21[%c0_106, %c0_107] : memref<242x32xf32, #tpu.memory_space<vmem>>, vector<242x32xf32>
      tpu.vector_store %arg21[%c0_106, %c0_107], %233 {strides = array<i32>} : memref<242x32xf32, #tpu.memory_space<vmem>>, vector<242x32xf32>,
    }
    %c41_i32_20 = arith.constant 41 : i32
    %c0_21 = arith.constant 0 : index
    %c0_22 = arith.constant 0 : index
    %113 = vector.load %arg21[%c0_21, %c0_22] : memref<242x32xf32, #tpu.memory_space<vmem>>, vector<242x32xf32>
    %114 = tpu.iota {dimensions = array<i32: 0>} : vector<61x242xi32>
    %115 = tpu.iota {dimensions = array<i32: 1>} : vector<61x242xi32>
    %c4_i32 = arith.constant 4 : i32
    %116 = vector.broadcast %c4_i32 : i32 to vector<61x242xi32>
    %117 = arith.muli %116, %114 : vector<61x242xi32>
    %118 = arith.cmpi eq, %115, %117 : vector<61x242xi32>
    %119 = arith.extui %118 : vector<61x242xi1> to vector<61x242xi32>
    %120 = arith.sitofp %119 : vector<61x242xi32> to vector<61x242xf32>
    %cst_23 = arith.constant dense<0.000000e+00> : vector<61x32xf32>
    %121 = tpu.matmul %120, %113, %cst_23 {dimension_numbers = #tpu.dot_dimension_numbers<[1], [0], [0], [1], [0, 0, 1, 1], [], []>} : vector<61x242xf32>, vector<242x32xf32>, vector<61x32xf32> -> vector<61x32xf32>
    %c0_24 = arith.constant 0 : index
    %c0_25 = arith.constant 0 : index
    %122 = vector.load %arg5[%c0_24, %c0_25] : memref<1x32xf32, #tpu.memory_space<vmem>>, vector<1x32xf32>
    %123 = vector.broadcast %122 : vector<1x32xf32> to vector<61x32xf32>
    %124 = arith.addf %121, %123 : vector<61x32xf32>
    %cst_26 = arith.constant 0.000000e+00 : f32
    %125 = vector.broadcast %cst_26 : f32 to vector<61x32xf32>
    %126 = arith.cmpf oge, %124, %125 : vector<61x32xf32>
    %cst_27 = arith.constant 2.000000e-01 : f32
    %127 = vector.broadcast %cst_27 : f32 to vector<61x32xf32>
    %128 = arith.mulf %127, %124 : vector<61x32xf32>
    %129 = arith.select %126, %124, %128 : vector<61x32xi1>, vector<61x32xf32>
    %c0_28 = arith.constant 0 : index
    %c0_29 = arith.constant 0 : index
    %c0_30 = arith.constant 0 : index
    %130 = vector.load %arg13[%c0_28, %c0_29, %c0_30] : memref<1x61x32xf32, #tpu.memory_space<vmem>>, vector<1x61x32xf32>
    %131 = vector.shape_cast %130 : vector<1x61x32xf32> to vector<61x32xf32>
    %132 = vector.shape_cast %129 : vector<61x32xf32> to vector<1x61x32xf32>
    tpu.vector_store %arg13[%c0_28, %c0_29, %c0_30], %132 {strides = array<i32>} : memref<1x61x32xf32, #tpu.memory_space<vmem>>, vector<1x61x32xf32>,
    %cst_31 = arith.constant 0.000000e+00 : f32
    %133 = vector.broadcast %cst_31 : f32 to vector<20x32xf32>
    %c0_32 = arith.constant 0 : index
    %c0_33 = arith.constant 0 : index
    %134 = vector.load %arg18[%c0_32, %c0_33] : memref<101x32xf32, #tpu.memory_space<vmem>>, vector<20x32xf32>
    tpu.vector_store %arg18[%c0_32, %c0_33], %133 {strides = array<i32>} : memref<101x32xf32, #tpu.memory_space<vmem>>, vector<20x32xf32>,
    %c20_34 = arith.constant 20 : index
    %c0_35 = arith.constant 0 : index
    %135 = vector.load %arg18[%c20_34, %c0_35] : memref<101x32xf32, #tpu.memory_space<vmem>>, vector<61x32xf32>
    tpu.vector_store %arg18[%c20_34, %c0_35], %129 {strides = array<i32>} : memref<101x32xf32, #tpu.memory_space<vmem>>, vector<61x32xf32>,
    %cst_36 = arith.constant 0.000000e+00 : f32
    %136 = vector.broadcast %cst_36 : f32 to vector<20x32xf32>
    %c81 = arith.constant 81 : index
    %c0_37 = arith.constant 0 : index
    %137 = vector.load %arg18[%c81, %c0_37] : memref<101x32xf32, #tpu.memory_space<vmem>>, vector<20x32xf32>
    tpu.vector_store %arg18[%c81, %c0_37], %136 {strides = array<i32>} : memref<101x32xf32, #tpu.memory_space<vmem>>, vector<20x32xf32>,
    %cst_38 = arith.constant 0.000000e+00 : f32
    %138 = vector.broadcast %cst_38 : f32 to vector<61x32xf32>
    %c0_39 = arith.constant 0 : index
    %c0_40 = arith.constant 0 : index
    %139 = vector.load %arg21[%c0_39, %c0_40] : memref<242x32xf32, #tpu.memory_space<vmem>>, vector<61x32xf32>
    tpu.vector_store %arg21[%c0_39, %c0_40], %138 {strides = array<i32>} : memref<242x32xf32, #tpu.memory_space<vmem>>, vector<61x32xf32>,
    %c0_i32_41 = arith.constant 0 : i32
    %c41_i32_42 = arith.constant 41 : i32
    %140 = arith.addi %c0_i32_41, %c41_i32_42 : i32
    %c1_i32_43 = arith.constant 1 : i32
    scf.for %arg22 = %c0_i32_41 to %140 step %c1_i32_43  : i32 {
      %225 = arith.index_cast %arg22 : i32 to index
      %c0_100 = arith.constant 0 : index
      %226 = vector.load %arg18[%225, %c0_100] : memref<101x32xf32, #tpu.memory_space<vmem>>, vector<61x32xf32>
      %227 = arith.truncf %226 : vector<61x32xf32> to vector<61x32xbf16>
      %c0_101 = arith.constant 0 : index
      %c0_102 = arith.constant 0 : index
      %228 = vector.load %arg21[%c0_101, %c0_102] : memref<242x32xf32, #tpu.memory_space<vmem>>, vector<61x32xf32>
      %229 = arith.index_cast %arg22 : i32 to index
      %c0_103 = arith.constant 0 : index
      %c0_104 = arith.constant 0 : index
      %230 = vector.load %arg6[%229, %c0_103, %c0_104] : memref<41x32x32xbf16, #tpu.memory_space<vmem>>, vector<1x32x32xbf16>
      %231 = vector.shape_cast %230 : vector<1x32x32xbf16> to vector<32x32xbf16>
      %cst_105 = arith.constant dense<0.000000e+00> : vector<61x32xf32>
      %232 = tpu.matmul %227, %231, %cst_105 {dimension_numbers = #tpu.dot_dimension_numbers<[1], [0], [0], [1], [0, 0, 1, 1], [], []>} : vector<61x32xbf16>, vector<32x32xbf16>, vector<61x32xf32> -> vector<61x32xf32>
      %233 = arith.addf %228, %232 : vector<61x32xf32>
      %c0_106 = arith.constant 0 : index
      %c0_107 = arith.constant 0 : index
      %234 = vector.load %arg21[%c0_106, %c0_107] : memref<242x32xf32, #tpu.memory_space<vmem>>, vector<61x32xf32>
      tpu.vector_store %arg21[%c0_106, %c0_107], %233 {strides = array<i32>} : memref<242x32xf32, #tpu.memory_space<vmem>>, vector<61x32xf32>,
    }
    %c41_i32_44 = arith.constant 41 : i32
    %c0_45 = arith.constant 0 : index
    %c0_46 = arith.constant 0 : index
    %141 = vector.load %arg21[%c0_45, %c0_46] : memref<242x32xf32, #tpu.memory_space<vmem>>, vector<61x32xf32>
    %142 = tpu.iota {dimensions = array<i32: 0>} : vector<16x61xi32>
    %143 = tpu.iota {dimensions = array<i32: 1>} : vector<16x61xi32>
    %c4_i32_47 = arith.constant 4 : i32
    %144 = vector.broadcast %c4_i32_47 : i32 to vector<16x61xi32>
    %145 = arith.muli %144, %142 : vector<16x61xi32>
    %146 = arith.cmpi eq, %143, %145 : vector<16x61xi32>
    %147 = arith.extui %146 : vector<16x61xi1> to vector<16x61xi32>
    %148 = arith.sitofp %147 : vector<16x61xi32> to vector<16x61xf32>
    %cst_48 = arith.constant dense<0.000000e+00> : vector<16x32xf32>
    %149 = tpu.matmul %148, %141, %cst_48 {dimension_numbers = #tpu.dot_dimension_numbers<[1], [0], [0], [1], [0, 0, 1, 1], [], []>} : vector<16x61xf32>, vector<61x32xf32>, vector<16x32xf32> -> vector<16x32xf32>
    %c0_49 = arith.constant 0 : index
    %c0_50 = arith.constant 0 : index
    %150 = vector.load %arg7[%c0_49, %c0_50] : memref<1x32xf32, #tpu.memory_space<vmem>>, vector<1x32xf32>
    %151 = vector.broadcast %150 : vector<1x32xf32> to vector<16x32xf32>
    %152 = arith.addf %149, %151 : vector<16x32xf32>
    %cst_51 = arith.constant 0.000000e+00 : f32
    %153 = vector.broadcast %cst_51 : f32 to vector<16x32xf32>
    %154 = arith.cmpf oge, %152, %153 : vector<16x32xf32>
    %cst_52 = arith.constant 2.000000e-01 : f32
    %155 = vector.broadcast %cst_52 : f32 to vector<16x32xf32>
    %156 = arith.mulf %155, %152 : vector<16x32xf32>
    %157 = arith.select %154, %152, %156 : vector<16x32xi1>, vector<16x32xf32>
    %c0_53 = arith.constant 0 : index
    %c0_54 = arith.constant 0 : index
    %c0_55 = arith.constant 0 : index
    %158 = vector.load %arg14[%c0_53, %c0_54, %c0_55] : memref<1x16x32xf32, #tpu.memory_space<vmem>>, vector<1x16x32xf32>
    %159 = vector.shape_cast %158 : vector<1x16x32xf32> to vector<16x32xf32>
    %160 = vector.shape_cast %157 : vector<16x32xf32> to vector<1x16x32xf32>
    tpu.vector_store %arg14[%c0_53, %c0_54, %c0_55], %160 {strides = array<i32>} : memref<1x16x32xf32, #tpu.memory_space<vmem>>, vector<1x16x32xf32>,
    %cst_56 = arith.constant 0.000000e+00 : f32
    %161 = vector.broadcast %cst_56 : f32 to vector<20x32xf32>
    %c0_57 = arith.constant 0 : index
    %c0_58 = arith.constant 0 : index
    %162 = vector.load %arg19[%c0_57, %c0_58] : memref<56x32xf32, #tpu.memory_space<vmem>>, vector<20x32xf32>
    tpu.vector_store %arg19[%c0_57, %c0_58], %161 {strides = array<i32>} : memref<56x32xf32, #tpu.memory_space<vmem>>, vector<20x32xf32>,
    %c20_59 = arith.constant 20 : index
    %c0_60 = arith.constant 0 : index
    %163 = vector.load %arg19[%c20_59, %c0_60] : memref<56x32xf32, #tpu.memory_space<vmem>>, vector<16x32xf32>
    tpu.vector_store %arg19[%c20_59, %c0_60], %157 {strides = array<i32>} : memref<56x32xf32, #tpu.memory_space<vmem>>, vector<16x32xf32>,
    %cst_61 = arith.constant 0.000000e+00 : f32
    %164 = vector.broadcast %cst_61 : f32 to vector<20x32xf32>
    %c36 = arith.constant 36 : index
    %c0_62 = arith.constant 0 : index
    %165 = vector.load %arg19[%c36, %c0_62] : memref<56x32xf32, #tpu.memory_space<vmem>>, vector<20x32xf32>
    tpu.vector_store %arg19[%c36, %c0_62], %164 {strides = array<i32>} : memref<56x32xf32, #tpu.memory_space<vmem>>, vector<20x32xf32>,
    %cst_63 = arith.constant 0.000000e+00 : f32
    %166 = vector.broadcast %cst_63 : f32 to vector<16x32xf32>
    %c0_64 = arith.constant 0 : index
    %c0_65 = arith.constant 0 : index
    %167 = vector.load %arg21[%c0_64, %c0_65] : memref<242x32xf32, #tpu.memory_space<vmem>>, vector<16x32xf32>
    tpu.vector_store %arg21[%c0_64, %c0_65], %166 {strides = array<i32>} : memref<242x32xf32, #tpu.memory_space<vmem>>, vector<16x32xf32>,
    %c0_i32_66 = arith.constant 0 : i32
    %c41_i32_67 = arith.constant 41 : i32
    %168 = arith.addi %c0_i32_66, %c41_i32_67 : i32
    %c1_i32_68 = arith.constant 1 : i32
    scf.for %arg22 = %c0_i32_66 to %168 step %c1_i32_68  : i32 {
      %225 = arith.index_cast %arg22 : i32 to index
      %c0_100 = arith.constant 0 : index
      %226 = vector.load %arg19[%225, %c0_100] : memref<56x32xf32, #tpu.memory_space<vmem>>, vector<16x32xf32>
      %227 = arith.truncf %226 : vector<16x32xf32> to vector<16x32xbf16>
      %c0_101 = arith.constant 0 : index
      %c0_102 = arith.constant 0 : index
      %228 = vector.load %arg21[%c0_101, %c0_102] : memref<242x32xf32, #tpu.memory_space<vmem>>, vector<16x32xf32>
      %229 = arith.index_cast %arg22 : i32 to index
      %c0_103 = arith.constant 0 : index
      %c0_104 = arith.constant 0 : index
      %230 = vector.load %arg8[%229, %c0_103, %c0_104] : memref<41x32x32xbf16, #tpu.memory_space<vmem>>, vector<1x32x32xbf16>
      %231 = vector.shape_cast %230 : vector<1x32x32xbf16> to vector<32x32xbf16>
      %cst_105 = arith.constant dense<0.000000e+00> : vector<16x32xf32>
      %232 = tpu.matmul %227, %231, %cst_105 {dimension_numbers = #tpu.dot_dimension_numbers<[1], [0], [0], [1], [0, 0, 1, 1], [], []>} : vector<16x32xbf16>, vector<32x32xbf16>, vector<16x32xf32> -> vector<16x32xf32>
      %233 = arith.addf %228, %232 : vector<16x32xf32>
      %c0_106 = arith.constant 0 : index
      %c0_107 = arith.constant 0 : index
      %234 = vector.load %arg21[%c0_106, %c0_107] : memref<242x32xf32, #tpu.memory_space<vmem>>, vector<16x32xf32>
      tpu.vector_store %arg21[%c0_106, %c0_107], %233 {strides = array<i32>} : memref<242x32xf32, #tpu.memory_space<vmem>>, vector<16x32xf32>,
    }
    %c41_i32_69 = arith.constant 41 : i32
    %c0_70 = arith.constant 0 : index
    %c0_71 = arith.constant 0 : index
    %169 = vector.load %arg21[%c0_70, %c0_71] : memref<242x32xf32, #tpu.memory_space<vmem>>, vector<16x32xf32>
    %170 = tpu.iota {dimensions = array<i32: 0>} : vector<4x16xi32>
    %171 = tpu.iota {dimensions = array<i32: 1>} : vector<4x16xi32>
    %c4_i32_72 = arith.constant 4 : i32
    %172 = vector.broadcast %c4_i32_72 : i32 to vector<4x16xi32>
    %173 = arith.muli %172, %170 : vector<4x16xi32>
    %174 = arith.cmpi eq, %171, %173 : vector<4x16xi32>
    %175 = arith.extui %174 : vector<4x16xi1> to vector<4x16xi32>
    %176 = arith.sitofp %175 : vector<4x16xi32> to vector<4x16xf32>
    %cst_73 = arith.constant dense<0.000000e+00> : vector<4x32xf32>
    %177 = tpu.matmul %176, %169, %cst_73 {dimension_numbers = #tpu.dot_dimension_numbers<[1], [0], [0], [1], [0, 0, 1, 1], [], []>} : vector<4x16xf32>, vector<16x32xf32>, vector<4x32xf32> -> vector<4x32xf32>
    %c0_74 = arith.constant 0 : index
    %c0_75 = arith.constant 0 : index
    %178 = vector.load %arg9[%c0_74, %c0_75] : memref<1x32xf32, #tpu.memory_space<vmem>>, vector<1x32xf32>
    %179 = vector.broadcast %178 : vector<1x32xf32> to vector<4x32xf32>
    %180 = arith.addf %177, %179 : vector<4x32xf32>
    %cst_76 = arith.constant 0.000000e+00 : f32
    %181 = vector.broadcast %cst_76 : f32 to vector<4x32xf32>
    %182 = arith.cmpf oge, %180, %181 : vector<4x32xf32>
    %cst_77 = arith.constant 2.000000e-01 : f32
    %183 = vector.broadcast %cst_77 : f32 to vector<4x32xf32>
    %184 = arith.mulf %183, %180 : vector<4x32xf32>
    %185 = arith.select %182, %180, %184 : vector<4x32xi1>, vector<4x32xf32>
    %c0_78 = arith.constant 0 : index
    %c0_79 = arith.constant 0 : index
    %c0_80 = arith.constant 0 : index
    %186 = vector.load %arg15[%c0_78, %c0_79, %c0_80] : memref<1x4x32xf32, #tpu.memory_space<vmem>>, vector<1x4x32xf32>
    %187 = vector.shape_cast %186 : vector<1x4x32xf32> to vector<4x32xf32>
    %188 = vector.shape_cast %185 : vector<4x32xf32> to vector<1x4x32xf32>
    tpu.vector_store %arg15[%c0_78, %c0_79, %c0_80], %188 {strides = array<i32>} : memref<1x4x32xf32, #tpu.memory_space<vmem>>, vector<1x4x32xf32>,
    %cst_81 = arith.constant 0.000000e+00 : f32
    %189 = vector.broadcast %cst_81 : f32 to vector<1x32xf32>
    %c0_82 = arith.constant 0 : index
    %c0_83 = arith.constant 0 : index
    %190 = vector.load %arg20[%c0_82, %c0_83] : memref<6x32xf32, #tpu.memory_space<vmem>>, vector<1x32xf32>
    tpu.vector_store %arg20[%c0_82, %c0_83], %189 {strides = array<i32>} : memref<6x32xf32, #tpu.memory_space<vmem>>, vector<1x32xf32>,
    %c1 = arith.constant 1 : index
    %c0_84 = arith.constant 0 : index
    %191 = vector.load %arg20[%c1, %c0_84] : memref<6x32xf32, #tpu.memory_space<vmem>>, vector<4x32xf32>
    tpu.vector_store %arg20[%c1, %c0_84], %185 {strides = array<i32>} : memref<6x32xf32, #tpu.memory_space<vmem>>, vector<4x32xf32>,
    %cst_85 = arith.constant 0.000000e+00 : f32
    %192 = vector.broadcast %cst_85 : f32 to vector<1x32xf32>
    %c5 = arith.constant 5 : index
    %c0_86 = arith.constant 0 : index
    %193 = vector.load %arg20[%c5, %c0_86] : memref<6x32xf32, #tpu.memory_space<vmem>>, vector<1x32xf32>
    tpu.vector_store %arg20[%c5, %c0_86], %192 {strides = array<i32>} : memref<6x32xf32, #tpu.memory_space<vmem>>, vector<1x32xf32>,
    %c0_87 = arith.constant 0 : index
    %c0_88 = arith.constant 0 : index
    %194 = vector.load %arg20[%c0_87, %c0_88] : memref<6x32xf32, #tpu.memory_space<vmem>>, vector<6x32xf32>
    %c0_89 = arith.constant 0 : index
    %c0_90 = arith.constant 0 : index
    %195 = vector.load %arg10[%c0_89, %c0_90] : memref<3x32xf32, #tpu.memory_space<vmem>>, vector<3x32xf32>
    %cst_91 = arith.constant 0.000000e+00 : f32
    %196 = vector.broadcast %cst_91 : f32 to vector<4x32xf32>
    %197 = vector.extract_strided_slice %194 {offsets = [0, 0], sizes = [4, 32], strides = [1, 1]} : vector<6x32xf32> to vector<4x32xf32>
    %198 = vector.extract_strided_slice %195 {offsets = [0, 0], sizes = [1, 32], strides = [1, 1]} : vector<3x32xf32> to vector<1x32xf32>
    %199 = vector.broadcast %198 : vector<1x32xf32> to vector<4x32xf32>
    %200 = arith.mulf %197, %199 : vector<4x32xf32>
    %201 = arith.addf %196, %200 : vector<4x32xf32>
    %202 = vector.extract_strided_slice %194 {offsets = [1, 0], sizes = [4, 32], strides = [1, 1]} : vector<6x32xf32> to vector<4x32xf32>
    %203 = vector.extract_strided_slice %195 {offsets = [1, 0], sizes = [1, 32], strides = [1, 1]} : vector<3x32xf32> to vector<1x32xf32>
    %204 = vector.broadcast %203 : vector<1x32xf32> to vector<4x32xf32>
    %205 = arith.mulf %202, %204 : vector<4x32xf32>
    %206 = arith.addf %201, %205 : vector<4x32xf32>
    %207 = vector.extract_strided_slice %194 {offsets = [2, 0], sizes = [4, 32], strides = [1, 1]} : vector<6x32xf32> to vector<4x32xf32>
    %208 = vector.extract_strided_slice %195 {offsets = [2, 0], sizes = [1, 32], strides = [1, 1]} : vector<3x32xf32> to vector<1x32xf32>
    %209 = vector.broadcast %208 : vector<1x32xf32> to vector<4x32xf32>
    %210 = arith.mulf %207, %209 : vector<4x32xf32>
    %211 = arith.addf %206, %210 : vector<4x32xf32>
    %cst_92 = arith.constant dense<0.000000e+00> : vector<4xf32>
    %212 = vector.multi_reduction <add>, %211, %cst_92 [1] : vector<4x32xf32> to vector<4xf32>
    %213 = vector.shape_cast %212 : vector<4xf32> to vector<4x1xf32>
    %c0_93 = arith.constant 0 : index
    %c0_94 = arith.constant 0 : index
    %214 = vector.load %arg11[%c0_93, %c0_94] : memref<1x1xf32, #tpu.memory_space<vmem>>, vector<1x1xf32>
    %215 = vector.broadcast %214 : vector<1x1xf32> to vector<4x1xf32>
    %216 = arith.addf %213, %215 : vector<4x1xf32>
    %cst_95 = arith.constant 0.000000e+00 : f32
    %217 = vector.broadcast %cst_95 : f32 to vector<4x1xf32>
    %218 = arith.cmpf oge, %216, %217 : vector<4x1xf32>
    %cst_96 = arith.constant 2.000000e-01 : f32
    %219 = vector.broadcast %cst_96 : f32 to vector<4x1xf32>
    %220 = arith.mulf %219, %216 : vector<4x1xf32>
    %221 = arith.select %218, %216, %220 : vector<4x1xi1>, vector<4x1xf32>
    %c0_97 = arith.constant 0 : index
    %c0_98 = arith.constant 0 : index
    %c0_99 = arith.constant 0 : index
    %222 = vector.load %arg16[%c0_97, %c0_98, %c0_99] : memref<1x4x1xf32, #tpu.memory_space<vmem>>, vector<1x4x1xf32>
    %223 = vector.shape_cast %222 : vector<1x4x1xf32> to vector<4x1xf32>
    %224 = vector.shape_cast %221 : vector<4x1xf32> to vector<1x4x1xf32>
    tpu.vector_store %arg16[%c0_97, %c0_98, %c0_99], %224 {strides = array<i32>} : memref<1x4x1xf32, #tpu.memory_space<vmem>>, vector<1x4x1xf32>,
    return
  }
  func.func @transform_0(%arg0: i32) -> (i32, i32, i32) {
    %c0_i32 = arith.constant 0 : i32
    %c0_i32_0 = arith.constant 0 : i32
    %c0_i32_1 = arith.constant 0 : i32
    return %arg0, %c0_i32, %c0_i32_0 : i32, i32, i32
  }
  func.func @transform_1(%arg0: i32) -> (i32, i32) {
    %c0_i32 = arith.constant 0 : i32
    %c0_i32_0 = arith.constant 0 : i32
    %c0_i32_1 = arith.constant 0 : i32
    return %c0_i32, %c0_i32_0 : i32, i32
  }
  func.func @transform_2(%arg0: i32) -> (i32, i32) {
    %c0_i32 = arith.constant 0 : i32
    %c0_i32_0 = arith.constant 0 : i32
    %c0_i32_1 = arith.constant 0 : i32
    return %c0_i32, %c0_i32_0 : i32, i32
  }
  func.func @transform_3(%arg0: i32) -> (i32, i32, i32) {
    %c0_i32 = arith.constant 0 : i32
    %c0_i32_0 = arith.constant 0 : i32
    %c0_i32_1 = arith.constant 0 : i32
    %c0_i32_2 = arith.constant 0 : i32
    return %c0_i32, %c0_i32_0, %c0_i32_1 : i32, i32, i32
  }
  func.func @transform_4(%arg0: i32) -> (i32, i32) {
    %c0_i32 = arith.constant 0 : i32
    %c0_i32_0 = arith.constant 0 : i32
    %c0_i32_1 = arith.constant 0 : i32
    return %c0_i32, %c0_i32_0 : i32, i32
  }
  func.func @transform_5(%arg0: i32) -> (i32, i32, i32) {
    %c0_i32 = arith.constant 0 : i32
    %c0_i32_0 = arith.constant 0 : i32
    %c0_i32_1 = arith.constant 0 : i32
    %c0_i32_2 = arith.constant 0 : i32
    return %c0_i32, %c0_i32_0, %c0_i32_1 : i32, i32, i32
  }
  func.func @transform_6(%arg0: i32) -> (i32, i32) {
    %c0_i32 = arith.constant 0 : i32
    %c0_i32_0 = arith.constant 0 : i32
    %c0_i32_1 = arith.constant 0 : i32
    return %c0_i32, %c0_i32_0 : i32, i32
  }
  func.func @transform_7(%arg0: i32) -> (i32, i32, i32) {
    %c0_i32 = arith.constant 0 : i32
    %c0_i32_0 = arith.constant 0 : i32
    %c0_i32_1 = arith.constant 0 : i32
    %c0_i32_2 = arith.constant 0 : i32
    return %c0_i32, %c0_i32_0, %c0_i32_1 : i32, i32, i32
  }
  func.func @transform_8(%arg0: i32) -> (i32, i32) {
    %c0_i32 = arith.constant 0 : i32
    %c0_i32_0 = arith.constant 0 : i32
    %c0_i32_1 = arith.constant 0 : i32
    return %c0_i32, %c0_i32_0 : i32, i32
  }
  func.func @transform_9(%arg0: i32) -> (i32, i32) {
    %c0_i32 = arith.constant 0 : i32
    %c0_i32_0 = arith.constant 0 : i32
    %c0_i32_1 = arith.constant 0 : i32
    return %c0_i32, %c0_i32_0 : i32, i32
  }
  func.func @transform_10(%arg0: i32) -> (i32, i32) {
    %c0_i32 = arith.constant 0 : i32
    %c0_i32_0 = arith.constant 0 : i32
    %c0_i32_1 = arith.constant 0 : i32
    return %c0_i32, %c0_i32_0 : i32, i32
  }
  func.func @transform_11(%arg0: i32) -> (i32, i32, i32) {
    %c0_i32 = arith.constant 0 : i32
    %c0_i32_0 = arith.constant 0 : i32
    %c0_i32_1 = arith.constant 0 : i32
    return %arg0, %c0_i32, %c0_i32_0 : i32, i32, i32
  }
  func.func @transform_12(%arg0: i32) -> (i32, i32, i32) {
    %c0_i32 = arith.constant 0 : i32
    %c0_i32_0 = arith.constant 0 : i32
    %c0_i32_1 = arith.constant 0 : i32
    return %arg0, %c0_i32, %c0_i32_0 : i32, i32, i32
  }
  func.func @transform_13(%arg0: i32) -> (i32, i32, i32) {
    %c0_i32 = arith.constant 0 : i32
    %c0_i32_0 = arith.constant 0 : i32
    %c0_i32_1 = arith.constant 0 : i32
    return %arg0, %c0_i32, %c0_i32_0 : i32, i32, i32
  }
  func.func @transform_14(%arg0: i32) -> (i32, i32, i32) {
    %c0_i32 = arith.constant 0 : i32
    %c0_i32_0 = arith.constant 0 : i32
    %c0_i32_1 = arith.constant 0 : i32
    return %arg0, %c0_i32, %c0_i32_0 : i32, i32, i32
  }
  func.func @transform_15(%arg0: i32) -> (i32, i32, i32) {
    %c0_i32 = arith.constant 0 : i32
    %c0_i32_0 = arith.constant 0 : i32
    %c0_i32_1 = arith.constant 0 : i32
    return %arg0, %c0_i32, %c0_i32_0 : i32, i32, i32
  }
}

</mosaic_0001>

<llo_original>
// kernel: forward.1
$region0: #{forward.1}
  #allocation0 [shape = 'u32[]', space=smem, size = 0x4, offset = 0x4, fixed_abs, tag = 'smem constant byte address 0x4 - core index']
  #allocation1 [shape = 'u32[144,128]{1,0:T(1,128)}', space=vmem, size = 0x12000, scoped, tag = 'internal scratch']
  #allocation2 [shape = 'f32[282,32]{1,0:T(8,128)}', space=vmem, size = 0x24000, scoped, tag = 'scratch operand']
  #allocation3 [shape = 'f32[101,32]{1,0:T(8,128)}', space=vmem, size = 0xd000, scoped, tag = 'scratch operand']
  #allocation4 [shape = 'f32[56,32]{1,0:T(8,128)}', space=vmem, size = 0x7000, scoped, tag = 'scratch operand']
  #allocation5 [shape = 'f32[6,32]{1,0:T(8,128)}', space=vmem, size = 0x1000, scoped, tag = 'scratch operand']
  #allocation6 [shape = 'f32[242,32]{1,0:T(8,128)}', space=vmem, size = 0x1f000, scoped, tag = 'scratch operand']
  #allocation7 [shape = 'f32[1,1]{1,0:T(1,128)S(1)}', space=vmem, size = 0x200, scoped, tag = 'scoped memory for forward.1']
  %s0 = inlined_call_operand.vmem [shape: f32[2,256,1], index: 0, kind: input, shape index: {}]
  %s1 = inlined_call_operand.vmem [shape: f32[15,32], index: 1, kind: input, shape index: {}]
  %s2 = inlined_call_operand.vmem [shape: f32[1,32], index: 2, kind: input, shape index: {}]
  %s3 = inlined_call_operand.vmem [shape: bf16[41,32,32], index: 3, kind: input, shape index: {}]
  %s4 = inlined_call_operand.vmem [shape: f32[1,32], index: 4, kind: input, shape index: {}]
  %s5 = inlined_call_operand.vmem [shape: bf16[41,32,32], index: 5, kind: input, shape index: {}]
  %s6 = inlined_call_operand.vmem [shape: f32[1,32], index: 6, kind: input, shape index: {}]
  %s7 = inlined_call_operand.vmem [shape: bf16[41,32,32], index: 7, kind: input, shape index: {}]
  %s8 = inlined_call_operand.vmem [shape: f32[1,32], index: 8, kind: input, shape index: {}]
  %s9 = inlined_call_operand.vmem [shape: f32[3,32], index: 9, kind: input, shape index: {}]
  %s10 = inlined_call_operand.<no memory space> [shape: f32[1,1], index: 10, kind: input, shape index: {}]
  %s11 = inlined_call_operand.vmem [shape: f32[2,242,32], index: 11, kind: output, shape index: {0}]
  %s12 = inlined_call_operand.vmem [shape: f32[2,61,32], index: 12, kind: output, shape index: {1}]
  %s13 = inlined_call_operand.hbm [shape: f32[2,16,32], index: 13, kind: output, shape index: {2}]
  %s14 = inlined_call_operand.hbm [shape: f32[2,4,32], index: 14, kind: output, shape index: {3}]
  %s15 = inlined_call_operand.vmem [shape: f32[2,4,1], index: 15, kind: output, shape index: {4}]
  %16 = xla_tuple %s11, %s12, %s13, %s14, %s15
  %s17 = sld [smem:[#allocation0]]
  $region130: #{forward.1} parent=0
    _
  %s19 = ssub.s32 1, %s17
  %s20 = scalar_select 0, %s19, %s17
  %v21 = vstv %s10
  %22 = vst [vmem:[#allocation7] sm:$0x1] %v21
  $region1: #{forward.1} parent=0
    #allocation8 [shape = 'u8[16384]{0}', space=vmem, size = 0x4000, scoped, tag = 'output window, operand 2']
    #allocation9 [shape = 's32[2]{0}', space=sflag, size = 0x8, scoped, tag = 'scoped memory for forward.1']
    #allocation10 [shape = 'u8[4096]{0}', space=vmem, size = 0x1000, scoped, tag = 'output window, operand 3']
    #allocation11 [shape = 's32[2]{0}', space=sflag, size = 0x8, scoped, tag = 'scoped memory for forward.1']
    %23 = vsyncpa [#allocation9], 0
    %s24 = scalar_lea.sflag [#allocation9], 1
    %25 = vsyncpa %s24, 0
    %26 = vsyncpa [#allocation11], 0
    %s27 = scalar_lea.sflag [#allocation11], 1
    %28 = vsyncpa %s27, 0
    loop: start=0, step=1, limit=4
    $region2: #{forward.1} parent=1 // loop_pre_header
      _
    $region3: #{forward.1} parent=1 // loop_header
      %s30 = sphi 0, %s34
      %p31 = scmp.ge.s32.totalorder %s30, 4
      %s40 = sphi 0, %s42
      %s43 = sphi 0, %s40
      %s44 = sphi 0, %s43
      %s60 = sphi 0, %s44
      %s64 = sphi 0, %s64
      %s66 = sphi 0, %s64
      %s67 = sphi 0, %s66
      %s81 = sphi 0, %s67
      %s85 = sphi 0, %s85
      %s87 = sphi 0, %s85
      %s88 = sphi 0, %s87
      %s102 = sphi 0, %s88
      %s106 = sphi 0, %s106
      %s108 = sphi 0, %s106
      %s109 = sphi 0, %s108
      %s123 = sphi 0, %s109
      %s127 = sphi 0, %s127
      %s129 = sphi 0, %s127
      %s130 = sphi 0, %s129
      %s144 = sphi 0, %s130
      %s148 = sphi 0, %s148
      %s150 = sphi 0, %s148
      %s151 = sphi 0, %s150
      %s165 = sphi 0, %s151
      %s169 = sphi 0, %s169
      %s171 = sphi 0, %s169
      %s172 = sphi 0, %s171
      %s186 = sphi 0, %s172
      %s190 = sphi 0, %s190
      %s192 = sphi 0, %s190
      %s193 = sphi 0, %s192
      %s207 = sphi 0, %s193
      %s211 = sphi 0, %s211
      %s213 = sphi 0, %s211
      %s214 = sphi 0, %s213
      %s228 = sphi 0, %s214
      %s232 = sphi 0, %s232
      %s234 = sphi 0, %s232
      %s235 = sphi 0, %s234
      %s249 = sphi 0, %s235
      %s253 = sphi 0, %s253
      %s255 = sphi 0, %s253
      %s256 = sphi 0, %s255
      %s270 = sphi 0, %s256
      %s276 = sphi 0, %s278
      %s279 = sphi 0, %s276
      %s280 = sphi 0, %s279
      %s296 = sphi 0, %s280
      %s302 = sphi 0, %s304
      %s305 = sphi 0, %s302
      %s306 = sphi 0, %s305
      %s322 = sphi 0, %s306
      %s328 = sphi 0, %s330
      %s331 = sphi 0, %s328
      %s332 = sphi 0, %s331
      %s348 = sphi 0, %s332
      %s354 = sphi 0, %s356
      %s357 = sphi 0, %s354
      %s358 = sphi 0, %s357
      %s374 = sphi 0, %s358
      %s380 = sphi 0, %s382
      %s383 = sphi 0, %s380
      %s384 = sphi 0, %s383
      %s400 = sphi 0, %s384
    $region4: #{forward.1} parent=1 // loop_header_branch
      %33 = sbr.rel (%p31) target = $region8
    $region5: #{forward.1} parent=1 // loop_body
      %s35 = ssub.s32 %s30, 1
      %s36 = ssub.s32 %s30, 2
      %s37 = sadd.s32 %s30, 1
      %s38 = ssub.s32 %s30, %s37
      %p39 = scmp.eq.s32.totalorder %s38, 0
      %s41 = sadd.s32 %s40, 1
      %s42 = scalar_select %p39, %s40, %s41
      %p45 = pneg %p39
      %p46 = scmp.eq.s32.totalorder %s30, 1
      %p47 = por %p45, %p46
      %p48 = scmp.ne.s32.totalorder %s40, %s43
      %p49 = scmp.eq.s32.totalorder %s30, 0
      %p50 = por %p48, %p49
      %p51 = scmp.ne.s32.totalorder %s40, %s43
      %p52 = scmp.eq.s32.totalorder %s35, 1
      %p53 = por %p51, %p52
      %p54 = scmp.ne.s32.totalorder %s43, %s44
      %p55 = scmp.eq.s32.totalorder %s35, 0
      %p56 = por %p54, %p55
      %p57 = scmp.ne.s32.totalorder %s43, %s44
      %p58 = scmp.eq.s32.totalorder %s36, 1
      %p59 = por %p57, %p58
      %p61 = scmp.ne.s32.totalorder %s44, %s60
      %p62 = scmp.eq.s32.totalorder %s36, 0
      %p63 = por %p61, %p62
      %s65 = sadd.s32 %s64, 1
      %p68 = scmp.eq.s32.totalorder %s30, 1
      %p69 = scmp.ne.s32.totalorder %s64, %s66
      %p70 = scmp.eq.s32.totalorder %s30, 0
      %p71 = por %p69, %p70
      %p72 = scmp.ne.s32.totalorder %s64, %s66
      %p73 = scmp.eq.s32.totalorder %s35, 1
      %p74 = por %p72, %p73
      %p75 = scmp.ne.s32.totalorder %s66, %s67
      %p76 = scmp.eq.s32.totalorder %s35, 0
      %p77 = por %p75, %p76
      %p78 = scmp.ne.s32.totalorder %s66, %s67
      %p79 = scmp.eq.s32.totalorder %s36, 1
      %p80 = por %p78, %p79
      %p82 = scmp.ne.s32.totalorder %s67, %s81
      %p83 = scmp.eq.s32.totalorder %s36, 0
      %p84 = por %p82, %p83
      %s86 = sadd.s32 %s85, 1
      %p89 = scmp.eq.s32.totalorder %s30, 1
      %p90 = scmp.ne.s32.totalorder %s85, %s87
      %p91 = scmp.eq.s32.totalorder %s30, 0
      %p92 = por %p90, %p91
      %p93 = scmp.ne.s32.totalorder %s85, %s87
      %p94 = scmp.eq.s32.totalorder %s35, 1
      %p95 = por %p93, %p94
      %p96 = scmp.ne.s32.totalorder %s87, %s88
      %p97 = scmp.eq.s32.totalorder %s35, 0
      %p98 = por %p96, %p97
      %p99 = scmp.ne.s32.totalorder %s87, %s88
      %p100 = scmp.eq.s32.totalorder %s36, 1
      %p101 = por %p99, %p100
      %p103 = scmp.ne.s32.totalorder %s88, %s102
      %p104 = scmp.eq.s32.totalorder %s36, 0
      %p105 = por %p103, %p104
      %s107 = sadd.s32 %s106, 1
      %p110 = scmp.eq.s32.totalorder %s30, 1
      %p111 = scmp.ne.s32.totalorder %s106, %s108
      %p112 = scmp.eq.s32.totalorder %s30, 0
      %p113 = por %p111, %p112
      %p114 = scmp.ne.s32.totalorder %s106, %s108
      %p115 = scmp.eq.s32.totalorder %s35, 1
      %p116 = por %p114, %p115
      %p117 = scmp.ne.s32.totalorder %s108, %s109
      %p118 = scmp.eq.s32.totalorder %s35, 0
      %p119 = por %p117, %p118
      %p120 = scmp.ne.s32.totalorder %s108, %s109
      %p121 = scmp.eq.s32.totalorder %s36, 1
      %p122 = por %p120, %p121
      %p124 = scmp.ne.s32.totalorder %s109, %s123
      %p125 = scmp.eq.s32.totalorder %s36, 0
      %p126 = por %p124, %p125
      %s128 = sadd.s32 %s127, 1
      %p131 = scmp.eq.s32.totalorder %s30, 1
      %p132 = scmp.ne.s32.totalorder %s127, %s129
      %p133 = scmp.eq.s32.totalorder %s30, 0
      %p134 = por %p132, %p133
      %p135 = scmp.ne.s32.totalorder %s127, %s129
      %p136 = scmp.eq.s32.totalorder %s35, 1
      %p137 = por %p135, %p136
      %p138 = scmp.ne.s32.totalorder %s129, %s130
      %p139 = scmp.eq.s32.totalorder %s35, 0
      %p140 = por %p138, %p139
      %p141 = scmp.ne.s32.totalorder %s129, %s130
      %p142 = scmp.eq.s32.totalorder %s36, 1
      %p143 = por %p141, %p142
      %p145 = scmp.ne.s32.totalorder %s130, %s144
      %p146 = scmp.eq.s32.totalorder %s36, 0
      %p147 = por %p145, %p146
      %s149 = sadd.s32 %s148, 1
      %p152 = scmp.eq.s32.totalorder %s30, 1
      %p153 = scmp.ne.s32.totalorder %s148, %s150
      %p154 = scmp.eq.s32.totalorder %s30, 0
      %p155 = por %p153, %p154
      %p156 = scmp.ne.s32.totalorder %s148, %s150
      %p157 = scmp.eq.s32.totalorder %s35, 1
      %p158 = por %p156, %p157
      %p159 = scmp.ne.s32.totalorder %s150, %s151
      %p160 = scmp.eq.s32.totalorder %s35, 0
      %p161 = por %p159, %p160
      %p162 = scmp.ne.s32.totalorder %s150, %s151
      %p163 = scmp.eq.s32.totalorder %s36, 1
      %p164 = por %p162, %p163
      %p166 = scmp.ne.s32.totalorder %s151, %s165
      %p167 = scmp.eq.s32.totalorder %s36, 0
      %p168 = por %p166, %p167
      %s170 = sadd.s32 %s169, 1
      %p173 = scmp.eq.s32.totalorder %s30, 1
      %p174 = scmp.ne.s32.totalorder %s169, %s171
      %p175 = scmp.eq.s32.totalorder %s30, 0
      %p176 = por %p174, %p175
      %p177 = scmp.ne.s32.totalorder %s169, %s171
      %p178 = scmp.eq.s32.totalorder %s35, 1
      %p179 = por %p177, %p178
      %p180 = scmp.ne.s32.totalorder %s171, %s172
      %p181 = scmp.eq.s32.totalorder %s35, 0
      %p182 = por %p180, %p181
      %p183 = scmp.ne.s32.totalorder %s171, %s172
      %p184 = scmp.eq.s32.totalorder %s36, 1
      %p185 = por %p183, %p184
      %p187 = scmp.ne.s32.totalorder %s172, %s186
      %p188 = scmp.eq.s32.totalorder %s36, 0
      %p189 = por %p187, %p188
      %s191 = sadd.s32 %s190, 1
      %p194 = scmp.eq.s32.totalorder %s30, 1
      %p195 = scmp.ne.s32.totalorder %s190, %s192
      %p196 = scmp.eq.s32.totalorder %s30, 0
      %p197 = por %p195, %p196
      %p198 = scmp.ne.s32.totalorder %s190, %s192
      %p199 = scmp.eq.s32.totalorder %s35, 1
      %p200 = por %p198, %p199
      %p201 = scmp.ne.s32.totalorder %s192, %s193
      %p202 = scmp.eq.s32.totalorder %s35, 0
      %p203 = por %p201, %p202
      %p204 = scmp.ne.s32.totalorder %s192, %s193
      %p205 = scmp.eq.s32.totalorder %s36, 1
      %p206 = por %p204, %p205
      %p208 = scmp.ne.s32.totalorder %s193, %s207
      %p209 = scmp.eq.s32.totalorder %s36, 0
      %p210 = por %p208, %p209
      %s212 = sadd.s32 %s211, 1
      %p215 = scmp.eq.s32.totalorder %s30, 1
      %p216 = scmp.ne.s32.totalorder %s211, %s213
      %p217 = scmp.eq.s32.totalorder %s30, 0
      %p218 = por %p216, %p217
      %p219 = scmp.ne.s32.totalorder %s211, %s213
      %p220 = scmp.eq.s32.totalorder %s35, 1
      %p221 = por %p219, %p220
      %p222 = scmp.ne.s32.totalorder %s213, %s214
      %p223 = scmp.eq.s32.totalorder %s35, 0
      %p224 = por %p222, %p223
      %p225 = scmp.ne.s32.totalorder %s213, %s214
      %p226 = scmp.eq.s32.totalorder %s36, 1
      %p227 = por %p225, %p226
      %p229 = scmp.ne.s32.totalorder %s214, %s228
      %p230 = scmp.eq.s32.totalorder %s36, 0
      %p231 = por %p229, %p230
      %s233 = sadd.s32 %s232, 1
      %p236 = scmp.eq.s32.totalorder %s30, 1
      %p237 = scmp.ne.s32.totalorder %s232, %s234
      %p238 = scmp.eq.s32.totalorder %s30, 0
      %p239 = por %p237, %p238
      %p240 = scmp.ne.s32.totalorder %s232, %s234
      %p241 = scmp.eq.s32.totalorder %s35, 1
      %p242 = por %p240, %p241
      %p243 = scmp.ne.s32.totalorder %s234, %s235
      %p244 = scmp.eq.s32.totalorder %s35, 0
      %p245 = por %p243, %p244
      %p246 = scmp.ne.s32.totalorder %s234, %s235
      %p247 = scmp.eq.s32.totalorder %s36, 1
      %p248 = por %p246, %p247
      %p250 = scmp.ne.s32.totalorder %s235, %s249
      %p251 = scmp.eq.s32.totalorder %s36, 0
      %p252 = por %p250, %p251
      %s254 = sadd.s32 %s253, 1
      %p257 = scmp.eq.s32.totalorder %s30, 1
      %p258 = scmp.ne.s32.totalorder %s253, %s255
      %p259 = scmp.eq.s32.totalorder %s30, 0
      %p260 = por %p258, %p259
      %p261 = scmp.ne.s32.totalorder %s253, %s255
      %p262 = scmp.eq.s32.totalorder %s35, 1
      %p263 = por %p261, %p262
      %p264 = scmp.ne.s32.totalorder %s255, %s256
      %p265 = scmp.eq.s32.totalorder %s35, 0
      %p266 = por %p264, %p265
      %p267 = scmp.ne.s32.totalorder %s255, %s256
      %p268 = scmp.eq.s32.totalorder %s36, 1
      %p269 = por %p267, %p268
      %p271 = scmp.ne.s32.totalorder %s256, %s270
      %p272 = scmp.eq.s32.totalorder %s36, 0
      %p273 = por %p271, %p272
      %s274 = ssub.s32 %s30, %s37
      %p275 = scmp.eq.s32.totalorder %s274, 0
      %s277 = sadd.s32 %s276, 1
      %s278 = scalar_select %p275, %s276, %s277
      %p281 = pneg %p275
      %p282 = scmp.eq.s32.totalorder %s30, 1
      %p283 = por %p281, %p282
      %p284 = scmp.ne.s32.totalorder %s276, %s279
      %p285 = scmp.eq.s32.totalorder %s30, 0
      %p286 = por %p284, %p285
      %p287 = scmp.ne.s32.totalorder %s276, %s279
      %p288 = scmp.eq.s32.totalorder %s35, 1
      %p289 = por %p287, %p288
      %p290 = scmp.ne.s32.totalorder %s279, %s280
      %p291 = scmp.eq.s32.totalorder %s35, 0
      %p292 = por %p290, %p291
      %p293 = scmp.ne.s32.totalorder %s279, %s280
      %p294 = scmp.eq.s32.totalorder %s36, 1
      %p295 = por %p293, %p294
      %p297 = scmp.ne.s32.totalorder %s280, %s296
      %p298 = scmp.eq.s32.totalorder %s36, 0
      %p299 = por %p297, %p298
      %s300 = ssub.s32 %s30, %s37
      %p301 = scmp.eq.s32.totalorder %s300, 0
      %s303 = sadd.s32 %s302, 1
      %s304 = scalar_select %p301, %s302, %s303
      %p307 = pneg %p301
      %p308 = scmp.eq.s32.totalorder %s30, 1
      %p309 = por %p307, %p308
      %p310 = scmp.ne.s32.totalorder %s302, %s305
      %p311 = scmp.eq.s32.totalorder %s30, 0
      %p312 = por %p310, %p311
      %p313 = scmp.ne.s32.totalorder %s302, %s305
      %p314 = scmp.eq.s32.totalorder %s35, 1
      %p315 = por %p313, %p314
      %p316 = scmp.ne.s32.totalorder %s305, %s306
      %p317 = scmp.eq.s32.totalorder %s35, 0
      %p318 = por %p316, %p317
      %p319 = scmp.ne.s32.totalorder %s305, %s306
      %p320 = scmp.eq.s32.totalorder %s36, 1
      %p321 = por %p319, %p320
      %p323 = scmp.ne.s32.totalorder %s306, %s322
      %p324 = scmp.eq.s32.totalorder %s36, 0
      %p325 = por %p323, %p324
      %s326 = ssub.s32 %s30, %s37
      %p327 = scmp.eq.s32.totalorder %s326, 0
      %s329 = sadd.s32 %s328, 1
      %s330 = scalar_select %p327, %s328, %s329
      %p333 = pneg %p327
      %p334 = scmp.eq.s32.totalorder %s30, 1
      %p335 = por %p333, %p334
      %p336 = scmp.ne.s32.totalorder %s328, %s331
      %p337 = scmp.eq.s32.totalorder %s30, 0
      %p338 = por %p336, %p337
      %p339 = scmp.ne.s32.totalorder %s328, %s331
      %p340 = scmp.eq.s32.totalorder %s35, 1
      %p341 = por %p339, %p340
      %p342 = scmp.ne.s32.totalorder %s331, %s332
      %p343 = scmp.eq.s32.totalorder %s35, 0
      %p344 = por %p342, %p343
      %p345 = scmp.ne.s32.totalorder %s331, %s332
      %p346 = scmp.eq.s32.totalorder %s36, 1
      %p347 = por %p345, %p346
      %p349 = scmp.ne.s32.totalorder %s332, %s348
      %p350 = scmp.eq.s32.totalorder %s36, 0
      %p351 = por %p349, %p350
      %s352 = ssub.s32 %s30, %s37
      %p353 = scmp.eq.s32.totalorder %s352, 0
      %s355 = sadd.s32 %s354, 1
      %s356 = scalar_select %p353, %s354, %s355
      %p359 = pneg %p353
      %p360 = scmp.eq.s32.totalorder %s30, 1
      %p361 = por %p359, %p360
      %p362 = scmp.ne.s32.totalorder %s354, %s357
      %p363 = scmp.eq.s32.totalorder %s30, 0
      %p364 = por %p362, %p363
      %p365 = scmp.ne.s32.totalorder %s354, %s357
      %p366 = scmp.eq.s32.totalorder %s35, 1
      %p367 = por %p365, %p366
      %p368 = scmp.ne.s32.totalorder %s357, %s358
      %p369 = scmp.eq.s32.totalorder %s35, 0
      %p370 = por %p368, %p369
      %p371 = scmp.ne.s32.totalorder %s357, %s358
      %p372 = scmp.eq.s32.totalorder %s36, 1
      %p373 = por %p371, %p372
      %p375 = scmp.ne.s32.totalorder %s358, %s374
      %p376 = scmp.eq.s32.totalorder %s36, 0
      %p377 = por %p375, %p376
      %s378 = ssub.s32 %s30, %s37
      %p379 = scmp.eq.s32.totalorder %s378, 0
      %s381 = sadd.s32 %s380, 1
      %s382 = scalar_select %p379, %s380, %s381
      %p385 = pneg %p379
      %p386 = scmp.eq.s32.totalorder %s30, 1
      %p387 = por %p385, %p386
      %p388 = scmp.ne.s32.totalorder %s380, %s383
      %p389 = scmp.eq.s32.totalorder %s30, 0
      %p390 = por %p388, %p389
      %p391 = scmp.ne.s32.totalorder %s380, %s383
      %p392 = scmp.eq.s32.totalorder %s35, 1
      %p393 = por %p391, %p392
      %p394 = scmp.ne.s32.totalorder %s383, %s384
      %p395 = scmp.eq.s32.totalorder %s35, 0
      %p396 = por %p394, %p395
      %p397 = scmp.ne.s32.totalorder %s383, %s384
      %p398 = scmp.eq.s32.totalorder %s36, 1
      %p399 = por %p397, %p398
      %p401 = scmp.ne.s32.totalorder %s384, %s400
      %p402 = scmp.eq.s32.totalorder %s36, 0
      %p403 = por %p401, %p402
      %p404 = scmp.le.s32.totalorder 1, %s30
      %p405 = scmp.lt.s32.totalorder %s30, 3
      %p406 = pnand %p404, %p405
      %p407 = pneg %p406
      // Predicated region
      $region9: #{forward.1} parent=5 // pred_check
        _
      $region10: #{forward.1} parent=5 // pred_check_branch
        %409 = sbr.rel (%p406) target = $region12
      $region11: #{forward.1} parent=5 // pred_region
        %s410 = ssub.s32 %s30, 1
        // Predicated region
        $region13: #{forward.1} parent=11 // pred_check
          %p411 = pneg %p77
        $region14: #{forward.1} parent=11 // pred_check_branch
          %413 = sbr.rel (%p411) target = $region16
        $region15: #{forward.1} parent=11 // pred_region
          _
        $region16: #{forward.1} parent=11 // pred_fallthru
          _
        // Predicated region
        $region17: #{forward.1} parent=11 // pred_check
          %p414 = pneg %p98
        $region18: #{forward.1} parent=11 // pred_check_branch
          %416 = sbr.rel (%p414) target = $region20
        $region19: #{forward.1} parent=11 // pred_region
          _
        $region20: #{forward.1} parent=11 // pred_fallthru
          _
        // Predicated region
        $region21: #{forward.1} parent=11 // pred_check
          %p417 = pneg %p119
        $region22: #{forward.1} parent=11 // pred_check_branch
          %419 = sbr.rel (%p417) target = $region24
        $region23: #{forward.1} parent=11 // pred_region
          _
        $region24: #{forward.1} parent=11 // pred_fallthru
          _
        // Predicated region
        $region25: #{forward.1} parent=11 // pred_check
          %p420 = pneg %p140
        $region26: #{forward.1} parent=11 // pred_check_branch
          %422 = sbr.rel (%p420) target = $region28
        $region27: #{forward.1} parent=11 // pred_region
          _
        $region28: #{forward.1} parent=11 // pred_fallthru
          _
        // Predicated region
        $region29: #{forward.1} parent=11 // pred_check
          %p423 = pneg %p161
        $region30: #{forward.1} parent=11 // pred_check_branch
          %425 = sbr.rel (%p423) target = $region32
        $region31: #{forward.1} parent=11 // pred_region
          _
        $region32: #{forward.1} parent=11 // pred_fallthru
          _
        // Predicated region
        $region33: #{forward.1} parent=11 // pred_check
          %p426 = pneg %p182
        $region34: #{forward.1} parent=11 // pred_check_branch
          %428 = sbr.rel (%p426) target = $region36
        $region35: #{forward.1} parent=11 // pred_region
          _
        $region36: #{forward.1} parent=11 // pred_fallthru
          _
        // Predicated region
        $region37: #{forward.1} parent=11 // pred_check
          %p429 = pneg %p203
        $region38: #{forward.1} parent=11 // pred_check_branch
          %431 = sbr.rel (%p429) target = $region40
        $region39: #{forward.1} parent=11 // pred_region
          _
        $region40: #{forward.1} parent=11 // pred_fallthru
          _
        // Predicated region
        $region41: #{forward.1} parent=11 // pred_check
          %p432 = pneg %p224
        $region42: #{forward.1} parent=11 // pred_check_branch
          %434 = sbr.rel (%p432) target = $region44
        $region43: #{forward.1} parent=11 // pred_region
          _
        $region44: #{forward.1} parent=11 // pred_fallthru
          _
        // Predicated region
        $region45: #{forward.1} parent=11 // pred_check
          %p435 = pneg %p245
        $region46: #{forward.1} parent=11 // pred_check_branch
          %437 = sbr.rel (%p435) target = $region48
        $region47: #{forward.1} parent=11 // pred_region
          _
        $region48: #{forward.1} parent=11 // pred_fallthru
          _
        // Predicated region
        $region49: #{forward.1} parent=11 // pred_check
          %p438 = pneg %p266
        $region50: #{forward.1} parent=11 // pred_check_branch
          %440 = sbr.rel (%p438) target = $region52
        $region51: #{forward.1} parent=11 // pred_region
          _
        $region52: #{forward.1} parent=11 // pred_fallthru
          _
      $region12: #{forward.1} parent=5 // pred_fallthru
        _
      %p441 = scmp.lt.s32.totalorder %s30, 2
      // Predicated region
      $region53: #{forward.1} parent=5 // pred_check
        %p442 = pneg %p441
      $region54: #{forward.1} parent=5 // pred_check_branch
        %444 = sbr.rel (%p442) target = $region56
      $region55: #{forward.1} parent=5 // pred_region
        // Predicated region
        $region57: #{forward.1} parent=55 // pred_check
          %p445 = pneg %p50
        $region58: #{forward.1} parent=55 // pred_check_branch
          %447 = sbr.rel (%p445) target = $region60
        $region59: #{forward.1} parent=55 // pred_region
          %p448 = scmp.lt.s32.totalorder %s30, 1
          %s449 = scalar_select %p448, %s30, 1
          %s450 = smul.addr %s449, 32
          %s451 = smul.addr %s450, 8
          %s452 = scalar_lea.vmem %s0, %s451
        $region60: #{forward.1} parent=55 // pred_fallthru
          _
      $region56: #{forward.1} parent=5 // pred_fallthru
        _
      %p453 = scmp.le.s32.totalorder 1, %s30
      %p454 = scmp.lt.s32.totalorder %s30, 3
      %p455 = pnand %p453, %p454
      %p456 = pneg %p455
      // Predicated region
      $region61: #{forward.1} parent=5 // pred_check
        _
      $region62: #{forward.1} parent=5 // pred_check_branch
        %458 = sbr.rel (%p455) target = $region64
      $region63: #{forward.1} parent=5 // pred_region
        %s459 = ssub.s32 %s30, 1
        %p460 = scmp.lt.s32.totalorder %s35, 1
        %s461 = scalar_select %p460, %s35, 1
        %s462 = smul.addr %s461, 32
        %s463 = smul.addr %s462, 8
        %s464 = scalar_lea.vmem %s0, %s463
        %p465 = pneg %p56
        %p466 = pneg %p53
        %p467 = pneg %p77
        %p468 = pneg %p74
        %p469 = pneg %p98
        %p470 = pneg %p95
        %p471 = pneg %p119
        %p472 = pneg %p116
        %p473 = pneg %p140
        %p474 = pneg %p137
        %p475 = pneg %p161
        %p476 = pneg %p158
        %p477 = pneg %p182
        %p478 = pneg %p179
        %p479 = pneg %p203
        %p480 = pneg %p200
        %p481 = pneg %p224
        %p482 = pneg %p221
        %p483 = pneg %p245
        %p484 = pneg %p242
        %p485 = pneg %p266
        %p486 = pneg %p263
        %p487 = pneg %p292
        %p488 = pneg %p289
        %p489 = scmp.lt.s32.totalorder %s35, 1
        %s490 = scalar_select %p489, %s35, 1
        %s491 = smul.addr %s490, 31
        %s492 = smul.addr %s491, 8
        %s493 = scalar_lea.vmem %s11, %s492
        %p494 = pneg %p318
        %p495 = pneg %p315
        %p496 = scmp.lt.s32.totalorder %s35, 1
        %s497 = scalar_select %p496, %s35, 1
        %s498 = smul.addr %s497, 8
        %s499 = smul.addr %s498, 8
        %s500 = scalar_lea.vmem %s12, %s499
        %p501 = pneg %p344
        %p502 = pneg %p341
        %s503 = sand.u32 %s331, 1
        %s504 = scalar_lea.sflag [#allocation9], %s503
        %s505 = sand.u32 %s331, 1
        %s506 = smul.addr %s505, 16
        %s507 = scalar_lea.vmem [#allocation8], %s506
        %p508 = pneg %p370
        %p509 = pneg %p367
        %s510 = sand.u32 %s357, 1
        %s511 = scalar_lea.sflag [#allocation11], %s510
        %s512 = sand.u32 %s357, 1
        %s513 = smul.addr %s512, 4
        %s514 = scalar_lea.vmem [#allocation10], %s513
        %p515 = pneg %p396
        %p516 = pneg %p393
        %p517 = scmp.lt.s32.totalorder %s35, 1
        %s518 = scalar_select %p517, %s35, 1
        %s519 = smul.addr %s518, 4
        %s520 = scalar_lea.vmem %s15, %s519
        %p521 = scmp.lt.s32.totalorder %s35, 1
        %s522 = scalar_select %p521, %s35, 1
        %s523 = smul.addr %s522, 32
        %s524 = smul.addr %s523, 8
        %s525 = scalar_lea.vmem %s0, %s524
        %p526 = scmp.lt.s32.totalorder %s35, 1
        %s527 = scalar_select %p526, %s35, 1
        %s528 = smul.addr %s527, 31
        %s529 = smul.addr %s528, 8
        %s530 = scalar_lea.vmem %s11, %s529
        %p531 = scmp.lt.s32.totalorder %s35, 1
        %s532 = scalar_select %p531, %s35, 1
        %s533 = smul.addr %s532, 8
        %s534 = smul.addr %s533, 8
        %s535 = scalar_lea.vmem %s12, %s534
        %p536 = scmp.lt.s32.totalorder %s35, 1
        %s537 = scalar_select %p536, %s35, 1
        %s538 = smul.addr %s537, 4
        %s539 = scalar_lea.vmem %s15, %s538
        %v541 = vld [vmem:[%s525] sm:$0xff]
        %v542 = vld [vmem:[%s525 + $0x8] sm:$0xff]
        %v543 = vld [vmem:[%s525 + $0x10] sm:$0xff]
        %v544 = vld [vmem:[%s525 + $0x18] sm:$0xff]
        %v545 = vld [vmem:[%s525 + $0x20] sm:$0xff]
        %v546 = vld [vmem:[%s525 + $0x28] sm:$0xff]
        %v547 = vld [vmem:[%s525 + $0x30] sm:$0xff]
        %v548 = vld [vmem:[%s525 + $0x38] sm:$0xff]
        %v549 = vld [vmem:[%s525 + $0x40] sm:$0xff]
        %v550 = vld [vmem:[%s525 + $0x48] sm:$0xff]
        %v551 = vld [vmem:[%s525 + $0x50] sm:$0xff]
        %v552 = vld [vmem:[%s525 + $0x58] sm:$0xff]
        %v553 = vld [vmem:[%s525 + $0x60] sm:$0xff]
        %v554 = vld [vmem:[%s525 + $0x68] sm:$0xff]
        %v555 = vld [vmem:[%s525 + $0x70] sm:$0xff]
        %v556 = vld [vmem:[%s525 + $0x78] sm:$0xff]
        %v557 = vld [vmem:[%s525 + $0x80] sm:$0xff]
        %v558 = vld [vmem:[%s525 + $0x88] sm:$0xff]
        %v559 = vld [vmem:[%s525 + $0x90] sm:$0xff]
        %v560 = vld [vmem:[%s525 + $0x98] sm:$0xff]
        %v561 = vld [vmem:[%s525 + $0xa0] sm:$0xff]
        %v562 = vld [vmem:[%s525 + $0xa8] sm:$0xff]
        %v563 = vld [vmem:[%s525 + $0xb0] sm:$0xff]
        %v564 = vld [vmem:[%s525 + $0xb8] sm:$0xff]
        %v565 = vld [vmem:[%s525 + $0xc0] sm:$0xff]
        %v566 = vld [vmem:[%s525 + $0xc8] sm:$0xff]
        %v567 = vld [vmem:[%s525 + $0xd0] sm:$0xff]
        %v568 = vld [vmem:[%s525 + $0xd8] sm:$0xff]
        %v569 = vld [vmem:[%s525 + $0xe0] sm:$0xff]
        %v570 = vld [vmem:[%s525 + $0xe8] sm:$0xff]
        %v571 = vld [vmem:[%s525 + $0xf0] sm:$0xff]
        %v572 = vld [vmem:[%s525 + $0xf8] sm:$0xff]
        %v573 = vld [vmem:[%s1] sm:$0xff]
        %v574 = vld [vmem:[%s1 + $0x8] sm:$0x7f]
        %576 = vset.pattern.permute.xlu0 0
        %577 = vperm.xlu0 %576, %v541
        %v578 = vpop.permute.xlu0 %577
        %581 = vset.pattern.permute.xlu0 0
        %582 = vperm.xlu0 %581, %v542
        %v583 = vpop.permute.xlu0 %582
        %586 = vset.pattern.permute.xlu0 0
        %587 = vperm.xlu0 %586, %v543
        %v588 = vpop.permute.xlu0 %587
        %591 = vset.pattern.permute.xlu0 0
        %592 = vperm.xlu0 %591, %v544
        %v593 = vpop.permute.xlu0 %592
        %596 = vset.pattern.permute.xlu0 0
        %597 = vperm.xlu0 %596, %v545
        %v598 = vpop.permute.xlu0 %597
        %601 = vset.pattern.permute.xlu0 0
        %602 = vperm.xlu0 %601, %v546
        %v603 = vpop.permute.xlu0 %602
        %606 = vset.pattern.permute.xlu0 0
        %607 = vperm.xlu0 %606, %v547
        %v608 = vpop.permute.xlu0 %607
        %611 = vset.pattern.permute.xlu0 0
        %612 = vperm.xlu0 %611, %v548
        %v613 = vpop.permute.xlu0 %612
        %616 = vset.pattern.permute.xlu0 0
        %617 = vperm.xlu0 %616, %v549
        %v618 = vpop.permute.xlu0 %617
        %621 = vset.pattern.permute.xlu0 0
        %622 = vperm.xlu0 %621, %v550
        %v623 = vpop.permute.xlu0 %622
        %626 = vset.pattern.permute.xlu0 0
        %627 = vperm.xlu0 %626, %v551
        %v628 = vpop.permute.xlu0 %627
        %631 = vset.pattern.permute.xlu0 0
        %632 = vperm.xlu0 %631, %v552
        %v633 = vpop.permute.xlu0 %632
        %636 = vset.pattern.permute.xlu0 0
        %637 = vperm.xlu0 %636, %v553
        %v638 = vpop.permute.xlu0 %637
        %641 = vset.pattern.permute.xlu0 0
        %642 = vperm.xlu0 %641, %v554
        %v643 = vpop.permute.xlu0 %642
        %646 = vset.pattern.permute.xlu0 0
        %647 = vperm.xlu0 %646, %v555
        %v648 = vpop.permute.xlu0 %647
        %651 = vset.pattern.permute.xlu0 0
        %652 = vperm.xlu0 %651, %v556
        %v653 = vpop.permute.xlu0 %652
        %656 = vset.pattern.permute.xlu0 0
        %657 = vperm.xlu0 %656, %v557
        %v658 = vpop.permute.xlu0 %657
        %661 = vset.pattern.permute.xlu0 0
        %662 = vperm.xlu0 %661, %v558
        %v663 = vpop.permute.xlu0 %662
        %666 = vset.pattern.permute.xlu0 0
        %667 = vperm.xlu0 %666, %v559
        %v668 = vpop.permute.xlu0 %667
        %671 = vset.pattern.permute.xlu0 0
        %672 = vperm.xlu0 %671, %v560
        %v673 = vpop.permute.xlu0 %672
        %676 = vset.pattern.permute.xlu0 0
        %677 = vperm.xlu0 %676, %v561
        %v678 = vpop.permute.xlu0 %677
        %681 = vset.pattern.permute.xlu0 0
        %682 = vperm.xlu0 %681, %v562
        %v683 = vpop.permute.xlu0 %682
        %686 = vset.pattern.permute.xlu0 0
        %687 = vperm.xlu0 %686, %v563
        %v688 = vpop.permute.xlu0 %687
        %691 = vset.pattern.permute.xlu0 0
        %692 = vperm.xlu0 %691, %v564
        %v693 = vpop.permute.xlu0 %692
        %696 = vset.pattern.permute.xlu0 0
        %697 = vperm.xlu0 %696, %v565
        %v698 = vpop.permute.xlu0 %697
        %701 = vset.pattern.permute.xlu0 0
        %702 = vperm.xlu0 %701, %v566
        %v703 = vpop.permute.xlu0 %702
        %706 = vset.pattern.permute.xlu0 0
        %707 = vperm.xlu0 %706, %v567
        %v708 = vpop.permute.xlu0 %707
        %711 = vset.pattern.permute.xlu0 0
        %712 = vperm.xlu0 %711, %v568
        %v713 = vpop.permute.xlu0 %712
        %716 = vset.pattern.permute.xlu0 0
        %717 = vperm.xlu0 %716, %v569
        %v718 = vpop.permute.xlu0 %717
        %721 = vset.pattern.permute.xlu0 0
        %722 = vperm.xlu0 %721, %v570
        %v723 = vpop.permute.xlu0 %722
        %726 = vset.pattern.permute.xlu0 0
        %727 = vperm.xlu0 %726, %v571
        %v728 = vpop.permute.xlu0 %727
        %v730 = vlaneseq
        %v731 = vshrl.u32 %v730, 7
        %v732 = vsub.s32 0, %v731
        %v733 = vrot.slane %v573, %v732
        %v734 = vmul.f32 %v578, %v733
        %v735 = vmul.f32 %v583, %v733
        %v736 = vmul.f32 %v588, %v733
        %v737 = vmul.f32 %v593, %v733
        %v738 = vmul.f32 %v598, %v733
        %v739 = vmul.f32 %v603, %v733
        %v740 = vmul.f32 %v608, %v733
        %v741 = vmul.f32 %v613, %v733
        %v742 = vmul.f32 %v618, %v733
        %v743 = vmul.f32 %v623, %v733
        %v744 = vmul.f32 %v628, %v733
        %v745 = vmul.f32 %v633, %v733
        %v746 = vmul.f32 %v638, %v733
        %v747 = vmul.f32 %v643, %v733
        %v748 = vmul.f32 %v648, %v733
        %v749 = vmul.f32 %v653, %v733
        %v750 = vmul.f32 %v658, %v733
        %v751 = vmul.f32 %v663, %v733
        %v752 = vmul.f32 %v668, %v733
        %v753 = vmul.f32 %v673, %v733
        %v754 = vmul.f32 %v678, %v733
        %v755 = vmul.f32 %v683, %v733
        %v756 = vmul.f32 %v688, %v733
        %v757 = vmul.f32 %v693, %v733
        %v758 = vmul.f32 %v698, %v733
        %v759 = vmul.f32 %v703, %v733
        %v760 = vmul.f32 %v708, %v733
        %v761 = vmul.f32 %v713, %v733
        %v762 = vmul.f32 %v718, %v733
        %v763 = vmul.f32 %v723, %v733
        %v764 = vmul.f32 %v728, %v733
        %v765 = vadd.f32 %v734, 0.0
        %v766 = vadd.f32 %v735, 0.0
        %v767 = vadd.f32 %v736, 0.0
        %v768 = vadd.f32 %v737, 0.0
        %v769 = vadd.f32 %v738, 0.0
        %v770 = vadd.f32 %v739, 0.0
        %v771 = vadd.f32 %v740, 0.0
        %v772 = vadd.f32 %v741, 0.0
        %v773 = vadd.f32 %v742, 0.0
        %v774 = vadd.f32 %v743, 0.0
        %v775 = vadd.f32 %v744, 0.0
        %v776 = vadd.f32 %v745, 0.0
        %v777 = vadd.f32 %v746, 0.0
        %v778 = vadd.f32 %v747, 0.0
        %v779 = vadd.f32 %v748, 0.0
        %v780 = vadd.f32 %v749, 0.0
        %v781 = vadd.f32 %v750, 0.0
        %v782 = vadd.f32 %v751, 0.0
        %v783 = vadd.f32 %v752, 0.0
        %v784 = vadd.f32 %v753, 0.0
        %v785 = vadd.f32 %v754, 0.0
        %v786 = vadd.f32 %v755, 0.0
        %v787 = vadd.f32 %v756, 0.0
        %v788 = vadd.f32 %v757, 0.0
        %v789 = vadd.f32 %v758, 0.0
        %v790 = vadd.f32 %v759, 0.0
        %v791 = vadd.f32 %v760, 0.0
        %v792 = vadd.f32 %v761, 0.0
        %v793 = vadd.f32 %v762, 0.0
        %v794 = vadd.f32 %v763, 0.0
        %v795 = vadd.f32 %v764, 0.0
        %v796 = vlaneseq
        %v797 = vshrl.u32 %v796, 7
        %v798 = vsub.s32 1, %v797
        %v799 = vrot.slane %v573, %v798
        %v800 = vmul.f32 %v578, %v799
        %v801 = vmul.f32 %v583, %v799
        %v802 = vmul.f32 %v588, %v799
        %v803 = vmul.f32 %v593, %v799
        %v804 = vmul.f32 %v598, %v799
        %v805 = vmul.f32 %v603, %v799
        %v806 = vmul.f32 %v608, %v799
        %v807 = vmul.f32 %v613, %v799
        %v808 = vmul.f32 %v618, %v799
        %v809 = vmul.f32 %v623, %v799
        %v810 = vmul.f32 %v628, %v799
        %v811 = vmul.f32 %v633, %v799
        %v812 = vmul.f32 %v638, %v799
        %v813 = vmul.f32 %v643, %v799
        %v814 = vmul.f32 %v648, %v799
        %v815 = vmul.f32 %v653, %v799
        %v816 = vmul.f32 %v658, %v799
        %v817 = vmul.f32 %v663, %v799
        %v818 = vmul.f32 %v668, %v799
        %v819 = vmul.f32 %v673, %v799
        %v820 = vmul.f32 %v678, %v799
        %v821 = vmul.f32 %v683, %v799
        %v822 = vmul.f32 %v688, %v799
        %v823 = vmul.f32 %v693, %v799
        %v824 = vmul.f32 %v698, %v799
        %v825 = vmul.f32 %v703, %v799
        %v826 = vmul.f32 %v708, %v799
        %v827 = vmul.f32 %v713, %v799
        %v828 = vmul.f32 %v718, %v799
        %v829 = vmul.f32 %v723, %v799
        %v830 = vmul.f32 %v728, %v799
        %vm862 = vcmask 1046528
        %v863 = vrot.slane %v800, 1
        %v864 = vrot.slane %v801, 1
        %v865 = vsel %vm862, %v863, %v864
        %v866 = vrot.slane %v802, 1
        %v867 = vsel %vm862, %v864, %v866
        %v868 = vrot.slane %v803, 1
        %v869 = vsel %vm862, %v866, %v868
        %v870 = vrot.slane %v804, 1
        %v871 = vsel %vm862, %v868, %v870
        %v872 = vrot.slane %v805, 1
        %v873 = vsel %vm862, %v870, %v872
        %v874 = vrot.slane %v806, 1
        %v875 = vsel %vm862, %v872, %v874
        %v876 = vrot.slane %v807, 1
        %v877 = vsel %vm862, %v874, %v876
        %v878 = vrot.slane %v808, 1
        %v879 = vsel %vm862, %v876, %v878
        %v880 = vrot.slane %v809, 1
        %v881 = vsel %vm862, %v878, %v880
        %v882 = vrot.slane %v810, 1
        %v883 = vsel %vm862, %v880, %v882
        %v884 = vrot.slane %v811, 1
        %v885 = vsel %vm862, %v882, %v884
        %v886 = vrot.slane %v812, 1
        %v887 = vsel %vm862, %v884, %v886
        %v888 = vrot.slane %v813, 1
        %v889 = vsel %vm862, %v886, %v888
        %v890 = vrot.slane %v814, 1
        %v891 = vsel %vm862, %v888, %v890
        %v892 = vrot.slane %v815, 1
        %v893 = vsel %vm862, %v890, %v892
        %v894 = vrot.slane %v816, 1
        %v895 = vsel %vm862, %v892, %v894
        %v896 = vrot.slane %v817, 1
        %v897 = vsel %vm862, %v894, %v896
        %v898 = vrot.slane %v818, 1
        %v899 = vsel %vm862, %v896, %v898
        %v900 = vrot.slane %v819, 1
        %v901 = vsel %vm862, %v898, %v900
        %v902 = vrot.slane %v820, 1
        %v903 = vsel %vm862, %v900, %v902
        %v904 = vrot.slane %v821, 1
        %v905 = vsel %vm862, %v902, %v904
        %v906 = vrot.slane %v822, 1
        %v907 = vsel %vm862, %v904, %v906
        %v908 = vrot.slane %v823, 1
        %v909 = vsel %vm862, %v906, %v908
        %v910 = vrot.slane %v824, 1
        %v911 = vsel %vm862, %v908, %v910
        %v912 = vrot.slane %v825, 1
        %v913 = vsel %vm862, %v910, %v912
        %v914 = vrot.slane %v826, 1
        %v915 = vsel %vm862, %v912, %v914
        %v916 = vrot.slane %v827, 1
        %v917 = vsel %vm862, %v914, %v916
        %v918 = vrot.slane %v828, 1
        %v919 = vsel %vm862, %v916, %v918
        %v920 = vrot.slane %v829, 1
        %v921 = vsel %vm862, %v918, %v920
        %v922 = vrot.slane %v830, 1
        %v923 = vsel %vm862, %v920, %v922
        %v955 = vadd.f32 %v765, %v865
        %v956 = vadd.f32 %v766, %v867
        %v957 = vadd.f32 %v767, %v869
        %v958 = vadd.f32 %v768, %v871
        %v959 = vadd.f32 %v769, %v873
        %v960 = vadd.f32 %v770, %v875
        %v961 = vadd.f32 %v771, %v877
        %v962 = vadd.f32 %v772, %v879
        %v963 = vadd.f32 %v773, %v881
        %v964 = vadd.f32 %v774, %v883
        %v965 = vadd.f32 %v775, %v885
        %v966 = vadd.f32 %v776, %v887
        %v967 = vadd.f32 %v777, %v889
        %v968 = vadd.f32 %v778, %v891
        %v969 = vadd.f32 %v779, %v893
        %v970 = vadd.f32 %v780, %v895
        %v971 = vadd.f32 %v781, %v897
        %v972 = vadd.f32 %v782, %v899
        %v973 = vadd.f32 %v783, %v901
        %v974 = vadd.f32 %v784, %v903
        %v975 = vadd.f32 %v785, %v905
        %v976 = vadd.f32 %v786, %v907
        %v977 = vadd.f32 %v787, %v909
        %v978 = vadd.f32 %v788, %v911
        %v979 = vadd.f32 %v789, %v913
        %v980 = vadd.f32 %v790, %v915
        %v981 = vadd.f32 %v791, %v917
        %v982 = vadd.f32 %v792, %v919
        %v983 = vadd.f32 %v793, %v921
        %v984 = vadd.f32 %v794, %v923
        %v985 = vadd.f32 %v795, %v922
        %v986 = vlaneseq
        %v987 = vshrl.u32 %v986, 7
        %v988 = vsub.s32 2, %v987
        %v989 = vrot.slane %v573, %v988
        %v990 = vmul.f32 %v578, %v989
        %v991 = vmul.f32 %v583, %v989
        %v992 = vmul.f32 %v588, %v989
        %v993 = vmul.f32 %v593, %v989
        %v994 = vmul.f32 %v598, %v989
        %v995 = vmul.f32 %v603, %v989
        %v996 = vmul.f32 %v608, %v989
        %v997 = vmul.f32 %v613, %v989
        %v998 = vmul.f32 %v618, %v989
        %v999 = vmul.f32 %v623, %v989
        %v1000 = vmul.f32 %v628, %v989
        %v1001 = vmul.f32 %v633, %v989
        %v1002 = vmul.f32 %v638, %v989
        %v1003 = vmul.f32 %v643, %v989
        %v1004 = vmul.f32 %v648, %v989
        %v1005 = vmul.f32 %v653, %v989
        %v1006 = vmul.f32 %v658, %v989
        %v1007 = vmul.f32 %v663, %v989
        %v1008 = vmul.f32 %v668, %v989
        %v1009 = vmul.f32 %v673, %v989
        %v1010 = vmul.f32 %v678, %v989
        %v1011 = vmul.f32 %v683, %v989
        %v1012 = vmul.f32 %v688, %v989
        %v1013 = vmul.f32 %v693, %v989
        %v1014 = vmul.f32 %v698, %v989
        %v1015 = vmul.f32 %v703, %v989
        %v1016 = vmul.f32 %v708, %v989
        %v1017 = vmul.f32 %v713, %v989
        %v1018 = vmul.f32 %v718, %v989
        %v1019 = vmul.f32 %v723, %v989
        %v1020 = vmul.f32 %v728, %v989
        %vm1052 = vcmask 1045504
        %v1053 = vrot.slane %v990, 2
        %v1054 = vrot.slane %v991, 2
        %v1055 = vsel %vm1052, %v1053, %v1054
        %v1056 = vrot.slane %v992, 2
        %v1057 = vsel %vm1052, %v1054, %v1056
        %v1058 = vrot.slane %v993, 2
        %v1059 = vsel %vm1052, %v1056, %v1058
        %v1060 = vrot.slane %v994, 2
        %v1061 = vsel %vm1052, %v1058, %v1060
        %v1062 = vrot.slane %v995, 2
        %v1063 = vsel %vm1052, %v1060, %v1062
        %v1064 = vrot.slane %v996, 2
        %v1065 = vsel %vm1052, %v1062, %v1064
        %v1066 = vrot.slane %v997, 2
        %v1067 = vsel %vm1052, %v1064, %v1066
        %v1068 = vrot.slane %v998, 2
        %v1069 = vsel %vm1052, %v1066, %v1068
        %v1070 = vrot.slane %v999, 2
        %v1071 = vsel %vm1052, %v1068, %v1070
        %v1072 = vrot.slane %v1000, 2
        %v1073 = vsel %vm1052, %v1070, %v1072
        %v1074 = vrot.slane %v1001, 2
        %v1075 = vsel %vm1052, %v1072, %v1074
        %v1076 = vrot.slane %v1002, 2
        %v1077 = vsel %vm1052, %v1074, %v1076
        %v1078 = vrot.slane %v1003, 2
        %v1079 = vsel %vm1052, %v1076, %v1078
        %v1080 = vrot.slane %v1004, 2
        %v1081 = vsel %vm1052, %v1078, %v1080
        %v1082 = vrot.slane %v1005, 2
        %v1083 = vsel %vm1052, %v1080, %v1082
        %v1084 = vrot.slane %v1006, 2
        %v1085 = vsel %vm1052, %v1082, %v1084
        %v1086 = vrot.slane %v1007, 2
        %v1087 = vsel %vm1052, %v1084, %v1086
        %v1088 = vrot.slane %v1008, 2
        %v1089 = vsel %vm1052, %v1086, %v1088
        %v1090 = vrot.slane %v1009, 2
        %v1091 = vsel %vm1052, %v1088, %v1090
        %v1092 = vrot.slane %v1010, 2
        %v1093 = vsel %vm1052, %v1090, %v1092
        %v1094 = vrot.slane %v1011, 2
        %v1095 = vsel %vm1052, %v1092, %v1094
        %v1096 = vrot.slane %v1012, 2
        %v1097 = vsel %vm1052, %v1094, %v1096
        %v1098 = vrot.slane %v1013, 2
        %v1099 = vsel %vm1052, %v1096, %v1098
        %v1100 = vrot.slane %v1014, 2
        %v1101 = vsel %vm1052, %v1098, %v1100
        %v1102 = vrot.slane %v1015, 2
        %v1103 = vsel %vm1052, %v1100, %v1102
        %v1104 = vrot.slane %v1016, 2
        %v1105 = vsel %vm1052, %v1102, %v1104
        %v1106 = vrot.slane %v1017, 2
        %v1107 = vsel %vm1052, %v1104, %v1106
        %v1108 = vrot.slane %v1018, 2
        %v1109 = vsel %vm1052, %v1106, %v1108
        %v1110 = vrot.slane %v1019, 2
        %v1111 = vsel %vm1052, %v1108, %v1110
        %v1112 = vrot.slane %v1020, 2
        %v1113 = vsel %vm1052, %v1110, %v1112
        %v1145 = vadd.f32 %v955, %v1055
        %v1146 = vadd.f32 %v956, %v1057
        %v1147 = vadd.f32 %v957, %v1059
        %v1148 = vadd.f32 %v958, %v1061
        %v1149 = vadd.f32 %v959, %v1063
        %v1150 = vadd.f32 %v960, %v1065
        %v1151 = vadd.f32 %v961, %v1067
        %v1152 = vadd.f32 %v962, %v1069
        %v1153 = vadd.f32 %v963, %v1071
        %v1154 = vadd.f32 %v964, %v1073
        %v1155 = vadd.f32 %v965, %v1075
        %v1156 = vadd.f32 %v966, %v1077
        %v1157 = vadd.f32 %v967, %v1079
        %v1158 = vadd.f32 %v968, %v1081
        %v1159 = vadd.f32 %v969, %v1083
        %v1160 = vadd.f32 %v970, %v1085
        %v1161 = vadd.f32 %v971, %v1087
        %v1162 = vadd.f32 %v972, %v1089
        %v1163 = vadd.f32 %v973, %v1091
        %v1164 = vadd.f32 %v974, %v1093
        %v1165 = vadd.f32 %v975, %v1095
        %v1166 = vadd.f32 %v976, %v1097
        %v1167 = vadd.f32 %v977, %v1099
        %v1168 = vadd.f32 %v978, %v1101
        %v1169 = vadd.f32 %v979, %v1103
        %v1170 = vadd.f32 %v980, %v1105
        %v1171 = vadd.f32 %v981, %v1107
        %v1172 = vadd.f32 %v982, %v1109
        %v1173 = vadd.f32 %v983, %v1111
        %v1174 = vadd.f32 %v984, %v1113
        %v1175 = vadd.f32 %v985, %v1112
        %v1176 = vlaneseq
        %v1177 = vshrl.u32 %v1176, 7
        %v1178 = vsub.s32 3, %v1177
        %v1179 = vrot.slane %v573, %v1178
        %v1180 = vmul.f32 %v578, %v1179
        %v1181 = vmul.f32 %v583, %v1179
        %v1182 = vmul.f32 %v588, %v1179
        %v1183 = vmul.f32 %v593, %v1179
        %v1184 = vmul.f32 %v598, %v1179
        %v1185 = vmul.f32 %v603, %v1179
        %v1186 = vmul.f32 %v608, %v1179
        %v1187 = vmul.f32 %v613, %v1179
        %v1188 = vmul.f32 %v618, %v1179
        %v1189 = vmul.f32 %v623, %v1179
        %v1190 = vmul.f32 %v628, %v1179
        %v1191 = vmul.f32 %v633, %v1179
        %v1192 = vmul.f32 %v638, %v1179
        %v1193 = vmul.f32 %v643, %v1179
        %v1194 = vmul.f32 %v648, %v1179
        %v1195 = vmul.f32 %v653, %v1179
        %v1196 = vmul.f32 %v658, %v1179
        %v1197 = vmul.f32 %v663, %v1179
        %v1198 = vmul.f32 %v668, %v1179
        %v1199 = vmul.f32 %v673, %v1179
        %v1200 = vmul.f32 %v678, %v1179
        %v1201 = vmul.f32 %v683, %v1179
        %v1202 = vmul.f32 %v688, %v1179
        %v1203 = vmul.f32 %v693, %v1179
        %v1204 = vmul.f32 %v698, %v1179
        %v1205 = vmul.f32 %v703, %v1179
        %v1206 = vmul.f32 %v708, %v1179
        %v1207 = vmul.f32 %v713, %v1179
        %v1208 = vmul.f32 %v718, %v1179
        %v1209 = vmul.f32 %v723, %v1179
        %v1210 = vmul.f32 %v728, %v1179
        %vm1242 = vcmask 1044480
        %v1243 = vrot.slane %v1180, 3
        %v1244 = vrot.slane %v1181, 3
        %v1245 = vsel %vm1242, %v1243, %v1244
        %v1246 = vrot.slane %v1182, 3
        %v1247 = vsel %vm1242, %v1244, %v1246
        %v1248 = vrot.slane %v1183, 3
        %v1249 = vsel %vm1242, %v1246, %v1248
        %v1250 = vrot.slane %v1184, 3
        %v1251 = vsel %vm1242, %v1248, %v1250
        %v1252 = vrot.slane %v1185, 3
        %v1253 = vsel %vm1242, %v1250, %v1252
        %v1254 = vrot.slane %v1186, 3
        %v1255 = vsel %vm1242, %v1252, %v1254
        %v1256 = vrot.slane %v1187, 3
        %v1257 = vsel %vm1242, %v1254, %v1256
        %v1258 = vrot.slane %v1188, 3
        %v1259 = vsel %vm1242, %v1256, %v1258
        %v1260 = vrot.slane %v1189, 3
        %v1261 = vsel %vm1242, %v1258, %v1260
        %v1262 = vrot.slane %v1190, 3
        %v1263 = vsel %vm1242, %v1260, %v1262
        %v1264 = vrot.slane %v1191, 3
        %v1265 = vsel %vm1242, %v1262, %v1264
        %v1266 = vrot.slane %v1192, 3
        %v1267 = vsel %vm1242, %v1264, %v1266
        %v1268 = vrot.slane %v1193, 3
        %v1269 = vsel %vm1242, %v1266, %v1268
        %v1270 = vrot.slane %v1194, 3
        %v1271 = vsel %vm1242, %v1268, %v1270
        %v1272 = vrot.slane %v1195, 3
        %v1273 = vsel %vm1242, %v1270, %v1272
        %v1274 = vrot.slane %v1196, 3
        %v1275 = vsel %vm1242, %v1272, %v1274
        %v1276 = vrot.slane %v1197, 3
        %v1277 = vsel %vm1242, %v1274, %v1276
        %v1278 = vrot.slane %v1198, 3
        %v1279 = vsel %vm1242, %v1276, %v1278
        %v1280 = vrot.slane %v1199, 3
        %v1281 = vsel %vm1242, %v1278, %v1280
        %v1282 = vrot.slane %v1200, 3
        %v1283 = vsel %vm1242, %v1280, %v1282
        %v1284 = vrot.slane %v1201, 3
        %v1285 = vsel %vm1242, %v1282, %v1284
        %v1286 = vrot.slane %v1202, 3
        %v1287 = vsel %vm1242, %v1284, %v1286
        %v1288 = vrot.slane %v1203, 3
        %v1289 = vsel %vm1242, %v1286, %v1288
        %v1290 = vrot.slane %v1204, 3
        %v1291 = vsel %vm1242, %v1288, %v1290
        %v1292 = vrot.slane %v1205, 3
        %v1293 = vsel %vm1242, %v1290, %v1292
        %v1294 = vrot.slane %v1206, 3
        %v1295 = vsel %vm1242, %v1292, %v1294
        %v1296 = vrot.slane %v1207, 3
        %v1297 = vsel %vm1242, %v1294, %v1296
        %v1298 = vrot.slane %v1208, 3
        %v1299 = vsel %vm1242, %v1296, %v1298
        %v1300 = vrot.slane %v1209, 3
        %v1301 = vsel %vm1242, %v1298, %v1300
        %v1302 = vrot.slane %v1210, 3
        %v1303 = vsel %vm1242, %v1300, %v1302
        %v1335 = vadd.f32 %v1145, %v1245
        %v1336 = vadd.f32 %v1146, %v1247
        %v1337 = vadd.f32 %v1147, %v1249
        %v1338 = vadd.f32 %v1148, %v1251
        %v1339 = vadd.f32 %v1149, %v1253
        %v1340 = vadd.f32 %v1150, %v1255
        %v1341 = vadd.f32 %v1151, %v1257
        %v1342 = vadd.f32 %v1152, %v1259
        %v1343 = vadd.f32 %v1153, %v1261
        %v1344 = vadd.f32 %v1154, %v1263
        %v1345 = vadd.f32 %v1155, %v1265
        %v1346 = vadd.f32 %v1156, %v1267
        %v1347 = vadd.f32 %v1157, %v1269
        %v1348 = vadd.f32 %v1158, %v1271
        %v1349 = vadd.f32 %v1159, %v1273
        %v1350 = vadd.f32 %v1160, %v1275
        %v1351 = vadd.f32 %v1161, %v1277
        %v1352 = vadd.f32 %v1162, %v1279
        %v1353 = vadd.f32 %v1163, %v1281
        %v1354 = vadd.f32 %v1164, %v1283
        %v1355 = vadd.f32 %v1165, %v1285
        %v1356 = vadd.f32 %v1166, %v1287
        %v1357 = vadd.f32 %v1167, %v1289
        %v1358 = vadd.f32 %v1168, %v1291
        %v1359 = vadd.f32 %v1169, %v1293
        %v1360 = vadd.f32 %v1170, %v1295
        %v1361 = vadd.f32 %v1171, %v1297
        %v1362 = vadd.f32 %v1172, %v1299
        %v1363 = vadd.f32 %v1173, %v1301
        %v1364 = vadd.f32 %v1174, %v1303
        %v1365 = vadd.f32 %v1175, %v1302
        %v1366 = vlaneseq
        %v1367 = vshrl.u32 %v1366, 7
        %v1368 = vsub.s32 4, %v1367
        %v1369 = vrot.slane %v573, %v1368
        %v1370 = vmul.f32 %v578, %v1369
        %v1371 = vmul.f32 %v583, %v1369
        %v1372 = vmul.f32 %v588, %v1369
        %v1373 = vmul.f32 %v593, %v1369
        %v1374 = vmul.f32 %v598, %v1369
        %v1375 = vmul.f32 %v603, %v1369
        %v1376 = vmul.f32 %v608, %v1369
        %v1377 = vmul.f32 %v613, %v1369
        %v1378 = vmul.f32 %v618, %v1369
        %v1379 = vmul.f32 %v623, %v1369
        %v1380 = vmul.f32 %v628, %v1369
        %v1381 = vmul.f32 %v633, %v1369
        %v1382 = vmul.f32 %v638, %v1369
        %v1383 = vmul.f32 %v643, %v1369
        %v1384 = vmul.f32 %v648, %v1369
        %v1385 = vmul.f32 %v653, %v1369
        %v1386 = vmul.f32 %v658, %v1369
        %v1387 = vmul.f32 %v663, %v1369
        %v1388 = vmul.f32 %v668, %v1369
        %v1389 = vmul.f32 %v673, %v1369
        %v1390 = vmul.f32 %v678, %v1369
        %v1391 = vmul.f32 %v683, %v1369
        %v1392 = vmul.f32 %v688, %v1369
        %v1393 = vmul.f32 %v693, %v1369
        %v1394 = vmul.f32 %v698, %v1369
        %v1395 = vmul.f32 %v703, %v1369
        %v1396 = vmul.f32 %v708, %v1369
        %v1397 = vmul.f32 %v713, %v1369
        %v1398 = vmul.f32 %v718, %v1369
        %v1399 = vmul.f32 %v723, %v1369
        %v1400 = vmul.f32 %v728, %v1369
        %vm1432 = vcmask 1043456
        %v1433 = vrot.slane %v1370, 4
        %v1434 = vrot.slane %v1371, 4
        %v1435 = vsel %vm1432, %v1433, %v1434
        %v1436 = vrot.slane %v1372, 4
        %v1437 = vsel %vm1432, %v1434, %v1436
        %v1438 = vrot.slane %v1373, 4
        %v1439 = vsel %vm1432, %v1436, %v1438
        %v1440 = vrot.slane %v1374, 4
        %v1441 = vsel %vm1432, %v1438, %v1440
        %v1442 = vrot.slane %v1375, 4
        %v1443 = vsel %vm1432, %v1440, %v1442
        %v1444 = vrot.slane %v1376, 4
        %v1445 = vsel %vm1432, %v1442, %v1444
        %v1446 = vrot.slane %v1377, 4
        %v1447 = vsel %vm1432, %v1444, %v1446
        %v1448 = vrot.slane %v1378, 4
        %v1449 = vsel %vm1432, %v1446, %v1448
        %v1450 = vrot.slane %v1379, 4
        %v1451 = vsel %vm1432, %v1448, %v1450
        %v1452 = vrot.slane %v1380, 4
        %v1453 = vsel %vm1432, %v1450, %v1452
        %v1454 = vrot.slane %v1381, 4
        %v1455 = vsel %vm1432, %v1452, %v1454
        %v1456 = vrot.slane %v1382, 4
        %v1457 = vsel %vm1432, %v1454, %v1456
        %v1458 = vrot.slane %v1383, 4
        %v1459 = vsel %vm1432, %v1456, %v1458
        %v1460 = vrot.slane %v1384, 4
        %v1461 = vsel %vm1432, %v1458, %v1460
        %v1462 = vrot.slane %v1385, 4
        %v1463 = vsel %vm1432, %v1460, %v1462
        %v1464 = vrot.slane %v1386, 4
        %v1465 = vsel %vm1432, %v1462, %v1464
        %v1466 = vrot.slane %v1387, 4
        %v1467 = vsel %vm1432, %v1464, %v1466
        %v1468 = vrot.slane %v1388, 4
        %v1469 = vsel %vm1432, %v1466, %v1468
        %v1470 = vrot.slane %v1389, 4
        %v1471 = vsel %vm1432, %v1468, %v1470
        %v1472 = vrot.slane %v1390, 4
        %v1473 = vsel %vm1432, %v1470, %v1472
        %v1474 = vrot.slane %v1391, 4
        %v1475 = vsel %vm1432, %v1472, %v1474
        %v1476 = vrot.slane %v1392, 4
        %v1477 = vsel %vm1432, %v1474, %v1476
        %v1478 = vrot.slane %v1393, 4
        %v1479 = vsel %vm1432, %v1476, %v1478
        %v1480 = vrot.slane %v1394, 4
        %v1481 = vsel %vm1432, %v1478, %v1480
        %v1482 = vrot.slane %v1395, 4
        %v1483 = vsel %vm1432, %v1480, %v1482
        %v1484 = vrot.slane %v1396, 4
        %v1485 = vsel %vm1432, %v1482, %v1484
        %v1486 = vrot.slane %v1397, 4
        %v1487 = vsel %vm1432, %v1484, %v1486
        %v1488 = vrot.slane %v1398, 4
        %v1489 = vsel %vm1432, %v1486, %v1488
        %v1490 = vrot.slane %v1399, 4
        %v1491 = vsel %vm1432, %v1488, %v1490
        %v1492 = vrot.slane %v1400, 4
        %v1493 = vsel %vm1432, %v1490, %v1492
        %v1525 = vadd.f32 %v1335, %v1435
        %v1526 = vadd.f32 %v1336, %v1437
        %v1527 = vadd.f32 %v1337, %v1439
        %v1528 = vadd.f32 %v1338, %v1441
        %v1529 = vadd.f32 %v1339, %v1443
        %v1530 = vadd.f32 %v1340, %v1445
        %v1531 = vadd.f32 %v1341, %v1447
        %v1532 = vadd.f32 %v1342, %v1449
        %v1533 = vadd.f32 %v1343, %v1451
        %v1534 = vadd.f32 %v1344, %v1453
        %v1535 = vadd.f32 %v1345, %v1455
        %v1536 = vadd.f32 %v1346, %v1457
        %v1537 = vadd.f32 %v1347, %v1459
        %v1538 = vadd.f32 %v1348, %v1461
        %v1539 = vadd.f32 %v1349, %v1463
        %v1540 = vadd.f32 %v1350, %v1465
        %v1541 = vadd.f32 %v1351, %v1467
        %v1542 = vadd.f32 %v1352, %v1469
        %v1543 = vadd.f32 %v1353, %v1471
        %v1544 = vadd.f32 %v1354, %v1473
        %v1545 = vadd.f32 %v1355, %v1475
        %v1546 = vadd.f32 %v1356, %v1477
        %v1547 = vadd.f32 %v1357, %v1479
        %v1548 = vadd.f32 %v1358, %v1481
        %v1549 = vadd.f32 %v1359, %v1483
        %v1550 = vadd.f32 %v1360, %v1485
        %v1551 = vadd.f32 %v1361, %v1487
        %v1552 = vadd.f32 %v1362, %v1489
        %v1553 = vadd.f32 %v1363, %v1491
        %v1554 = vadd.f32 %v1364, %v1493
        %v1555 = vadd.f32 %v1365, %v1492
        %v1556 = vlaneseq
        %v1557 = vshrl.u32 %v1556, 7
        %v1558 = vsub.s32 5, %v1557
        %v1559 = vrot.slane %v573, %v1558
        %v1560 = vmul.f32 %v578, %v1559
        %v1561 = vmul.f32 %v583, %v1559
        %v1562 = vmul.f32 %v588, %v1559
        %v1563 = vmul.f32 %v593, %v1559
        %v1564 = vmul.f32 %v598, %v1559
        %v1565 = vmul.f32 %v603, %v1559
        %v1566 = vmul.f32 %v608, %v1559
        %v1567 = vmul.f32 %v613, %v1559
        %v1568 = vmul.f32 %v618, %v1559
        %v1569 = vmul.f32 %v623, %v1559
        %v1570 = vmul.f32 %v628, %v1559
        %v1571 = vmul.f32 %v633, %v1559
        %v1572 = vmul.f32 %v638, %v1559
        %v1573 = vmul.f32 %v643, %v1559
        %v1574 = vmul.f32 %v648, %v1559
        %v1575 = vmul.f32 %v653, %v1559
        %v1576 = vmul.f32 %v658, %v1559
        %v1577 = vmul.f32 %v663, %v1559
        %v1578 = vmul.f32 %v668, %v1559
        %v1579 = vmul.f32 %v673, %v1559
        %v1580 = vmul.f32 %v678, %v1559
        %v1581 = vmul.f32 %v683, %v1559
        %v1582 = vmul.f32 %v688, %v1559
        %v1583 = vmul.f32 %v693, %v1559
        %v1584 = vmul.f32 %v698, %v1559
        %v1585 = vmul.f32 %v703, %v1559
        %v1586 = vmul.f32 %v708, %v1559
        %v1587 = vmul.f32 %v713, %v1559
        %v1588 = vmul.f32 %v718, %v1559
        %v1589 = vmul.f32 %v723, %v1559
        %v1590 = vmul.f32 %v728, %v1559
        %vm1622 = vcmask 1042432
        %v1623 = vrot.slane %v1560, 5
        %v1624 = vrot.slane %v1561, 5
        %v1625 = vsel %vm1622, %v1623, %v1624
        %v1626 = vrot.slane %v1562, 5
        %v1627 = vsel %vm1622, %v1624, %v1626
        %v1628 = vrot.slane %v1563, 5
        %v1629 = vsel %vm1622, %v1626, %v1628
        %v1630 = vrot.slane %v1564, 5
        %v1631 = vsel %vm1622, %v1628, %v1630
        %v1632 = vrot.slane %v1565, 5
        %v1633 = vsel %vm1622, %v1630, %v1632
        %v1634 = vrot.slane %v1566, 5
        %v1635 = vsel %vm1622, %v1632, %v1634
        %v1636 = vrot.slane %v1567, 5
        %v1637 = vsel %vm1622, %v1634, %v1636
        %v1638 = vrot.slane %v1568, 5
        %v1639 = vsel %vm1622, %v1636, %v1638
        %v1640 = vrot.slane %v1569, 5
        %v1641 = vsel %vm1622, %v1638, %v1640
        %v1642 = vrot.slane %v1570, 5
        %v1643 = vsel %vm1622, %v1640, %v1642
        %v1644 = vrot.slane %v1571, 5
        %v1645 = vsel %vm1622, %v1642, %v1644
        %v1646 = vrot.slane %v1572, 5
        %v1647 = vsel %vm1622, %v1644, %v1646
        %v1648 = vrot.slane %v1573, 5
        %v1649 = vsel %vm1622, %v1646, %v1648
        %v1650 = vrot.slane %v1574, 5
        %v1651 = vsel %vm1622, %v1648, %v1650
        %v1652 = vrot.slane %v1575, 5
        %v1653 = vsel %vm1622, %v1650, %v1652
        %v1654 = vrot.slane %v1576, 5
        %v1655 = vsel %vm1622, %v1652, %v1654
        %v1656 = vrot.slane %v1577, 5
        %v1657 = vsel %vm1622, %v1654, %v1656
        %v1658 = vrot.slane %v1578, 5
        %v1659 = vsel %vm1622, %v1656, %v1658
        %v1660 = vrot.slane %v1579, 5
        %v1661 = vsel %vm1622, %v1658, %v1660
        %v1662 = vrot.slane %v1580, 5
        %v1663 = vsel %vm1622, %v1660, %v1662
        %v1664 = vrot.slane %v1581, 5
        %v1665 = vsel %vm1622, %v1662, %v1664
        %v1666 = vrot.slane %v1582, 5
        %v1667 = vsel %vm1622, %v1664, %v1666
        %v1668 = vrot.slane %v1583, 5
        %v1669 = vsel %vm1622, %v1666, %v1668
        %v1670 = vrot.slane %v1584, 5
        %v1671 = vsel %vm1622, %v1668, %v1670
        %v1672 = vrot.slane %v1585, 5
        %v1673 = vsel %vm1622, %v1670, %v1672
        %v1674 = vrot.slane %v1586, 5
        %v1675 = vsel %vm1622, %v1672, %v1674
        %v1676 = vrot.slane %v1587, 5
        %v1677 = vsel %vm1622, %v1674, %v1676
        %v1678 = vrot.slane %v1588, 5
        %v1679 = vsel %vm1622, %v1676, %v1678
        %v1680 = vrot.slane %v1589, 5
        %v1681 = vsel %vm1622, %v1678, %v1680
        %v1682 = vrot.slane %v1590, 5
        %v1683 = vsel %vm1622, %v1680, %v1682
        %v1715 = vadd.f32 %v1525, %v1625
        %v1716 = vadd.f32 %v1526, %v1627
        %v1717 = vadd.f32 %v1527, %v1629
        %v1718 = vadd.f32 %v1528, %v1631
        %v1719 = vadd.f32 %v1529, %v1633
        %v1720 = vadd.f32 %v1530, %v1635
        %v1721 = vadd.f32 %v1531, %v1637
        %v1722 = vadd.f32 %v1532, %v1639
        %v1723 = vadd.f32 %v1533, %v1641
        %v1724 = vadd.f32 %v1534, %v1643
        %v1725 = vadd.f32 %v1535, %v1645
        %v1726 = vadd.f32 %v1536, %v1647
        %v1727 = vadd.f32 %v1537, %v1649
        %v1728 = vadd.f32 %v1538, %v1651
        %v1729 = vadd.f32 %v1539, %v1653
        %v1730 = vadd.f32 %v1540, %v1655
        %v1731 = vadd.f32 %v1541, %v1657
        %v1732 = vadd.f32 %v1542, %v1659
        %v1733 = vadd.f32 %v1543, %v1661
        %v1734 = vadd.f32 %v1544, %v1663
        %v1735 = vadd.f32 %v1545, %v1665
        %v1736 = vadd.f32 %v1546, %v1667
        %v1737 = vadd.f32 %v1547, %v1669
        %v1738 = vadd.f32 %v1548, %v1671
        %v1739 = vadd.f32 %v1549, %v1673
        %v1740 = vadd.f32 %v1550, %v1675
        %v1741 = vadd.f32 %v1551, %v1677
        %v1742 = vadd.f32 %v1552, %v1679
        %v1743 = vadd.f32 %v1553, %v1681
        %v1744 = vadd.f32 %v1554, %v1683
        %v1745 = vadd.f32 %v1555, %v1682
        %v1746 = vlaneseq
        %v1747 = vshrl.u32 %v1746, 7
        %v1748 = vsub.s32 6, %v1747
        %v1749 = vrot.slane %v573, %v1748
        %v1750 = vmul.f32 %v578, %v1749
        %v1751 = vmul.f32 %v583, %v1749
        %v1752 = vmul.f32 %v588, %v1749
        %v1753 = vmul.f32 %v593, %v1749
        %v1754 = vmul.f32 %v598, %v1749
        %v1755 = vmul.f32 %v603, %v1749
        %v1756 = vmul.f32 %v608, %v1749
        %v1757 = vmul.f32 %v613, %v1749
        %v1758 = vmul.f32 %v618, %v1749
        %v1759 = vmul.f32 %v623, %v1749
        %v1760 = vmul.f32 %v628, %v1749
        %v1761 = vmul.f32 %v633, %v1749
        %v1762 = vmul.f32 %v638, %v1749
        %v1763 = vmul.f32 %v643, %v1749
        %v1764 = vmul.f32 %v648, %v1749
        %v1765 = vmul.f32 %v653, %v1749
        %v1766 = vmul.f32 %v658, %v1749
        %v1767 = vmul.f32 %v663, %v1749
        %v1768 = vmul.f32 %v668, %v1749
        %v1769 = vmul.f32 %v673, %v1749
        %v1770 = vmul.f32 %v678, %v1749
        %v1771 = vmul.f32 %v683, %v1749
        %v1772 = vmul.f32 %v688, %v1749
        %v1773 = vmul.f32 %v693, %v1749
        %v1774 = vmul.f32 %v698, %v1749
        %v1775 = vmul.f32 %v703, %v1749
        %v1776 = vmul.f32 %v708, %v1749
        %v1777 = vmul.f32 %v713, %v1749
        %v1778 = vmul.f32 %v718, %v1749
        %v1779 = vmul.f32 %v723, %v1749
        %v1780 = vmul.f32 %v728, %v1749
        %vm1812 = vcmask 1041408
        %v1813 = vrot.slane %v1750, 6
        %v1814 = vrot.slane %v1751, 6
        %v1815 = vsel %vm1812, %v1813, %v1814
        %v1816 = vrot.slane %v1752, 6
        %v1817 = vsel %vm1812, %v1814, %v1816
        %v1818 = vrot.slane %v1753, 6
        %v1819 = vsel %vm1812, %v1816, %v1818
        %v1820 = vrot.slane %v1754, 6
        %v1821 = vsel %vm1812, %v1818, %v1820
        %v1822 = vrot.slane %v1755, 6
        %v1823 = vsel %vm1812, %v1820, %v1822
        %v1824 = vrot.slane %v1756, 6
        %v1825 = vsel %vm1812, %v1822, %v1824
        %v1826 = vrot.slane %v1757, 6
        %v1827 = vsel %vm1812, %v1824, %v1826
        %v1828 = vrot.slane %v1758, 6
        %v1829 = vsel %vm1812, %v1826, %v1828
        %v1830 = vrot.slane %v1759, 6
        %v1831 = vsel %vm1812, %v1828, %v1830
        %v1832 = vrot.slane %v1760, 6
        %v1833 = vsel %vm1812, %v1830, %v1832
        %v1834 = vrot.slane %v1761, 6
        %v1835 = vsel %vm1812, %v1832, %v1834
        %v1836 = vrot.slane %v1762, 6
        %v1837 = vsel %vm1812, %v1834, %v1836
        %v1838 = vrot.slane %v1763, 6
        %v1839 = vsel %vm1812, %v1836, %v1838
        %v1840 = vrot.slane %v1764, 6
        %v1841 = vsel %vm1812, %v1838, %v1840
        %v1842 = vrot.slane %v1765, 6
        %v1843 = vsel %vm1812, %v1840, %v1842
        %v1844 = vrot.slane %v1766, 6
        %v1845 = vsel %vm1812, %v1842, %v1844
        %v1846 = vrot.slane %v1767, 6
        %v1847 = vsel %vm1812, %v1844, %v1846
        %v1848 = vrot.slane %v1768, 6
        %v1849 = vsel %vm1812, %v1846, %v1848
        %v1850 = vrot.slane %v1769, 6
        %v1851 = vsel %vm1812, %v1848, %v1850
        %v1852 = vrot.slane %v1770, 6
        %v1853 = vsel %vm1812, %v1850, %v1852
        %v1854 = vrot.slane %v1771, 6
        %v1855 = vsel %vm1812, %v1852, %v1854
        %v1856 = vrot.slane %v1772, 6
        %v1857 = vsel %vm1812, %v1854, %v1856
        %v1858 = vrot.slane %v1773, 6
        %v1859 = vsel %vm1812, %v1856, %v1858
        %v1860 = vrot.slane %v1774, 6
        %v1861 = vsel %vm1812, %v1858, %v1860
        %v1862 = vrot.slane %v1775, 6
        %v1863 = vsel %vm1812, %v1860, %v1862
        %v1864 = vrot.slane %v1776, 6
        %v1865 = vsel %vm1812, %v1862, %v1864
        %v1866 = vrot.slane %v1777, 6
        %v1867 = vsel %vm1812, %v1864, %v1866
        %v1868 = vrot.slane %v1778, 6
        %v1869 = vsel %vm1812, %v1866, %v1868
        %v1870 = vrot.slane %v1779, 6
        %v1871 = vsel %vm1812, %v1868, %v1870
        %v1872 = vrot.slane %v1780, 6
        %v1873 = vsel %vm1812, %v1870, %v1872
        %v1905 = vadd.f32 %v1715, %v1815
        %v1906 = vadd.f32 %v1716, %v1817
        %v1907 = vadd.f32 %v1717, %v1819
        %v1908 = vadd.f32 %v1718, %v1821
        %v1909 = vadd.f32 %v1719, %v1823
        %v1910 = vadd.f32 %v1720, %v1825
        %v1911 = vadd.f32 %v1721, %v1827
        %v1912 = vadd.f32 %v1722, %v1829
        %v1913 = vadd.f32 %v1723, %v1831
        %v1914 = vadd.f32 %v1724, %v1833
        %v1915 = vadd.f32 %v1725, %v1835
        %v1916 = vadd.f32 %v1726, %v1837
        %v1917 = vadd.f32 %v1727, %v1839
        %v1918 = vadd.f32 %v1728, %v1841
        %v1919 = vadd.f32 %v1729, %v1843
        %v1920 = vadd.f32 %v1730, %v1845
        %v1921 = vadd.f32 %v1731, %v1847
        %v1922 = vadd.f32 %v1732, %v1849
        %v1923 = vadd.f32 %v1733, %v1851
        %v1924 = vadd.f32 %v1734, %v1853
        %v1925 = vadd.f32 %v1735, %v1855
        %v1926 = vadd.f32 %v1736, %v1857
        %v1927 = vadd.f32 %v1737, %v1859
        %v1928 = vadd.f32 %v1738, %v1861
        %v1929 = vadd.f32 %v1739, %v1863
        %v1930 = vadd.f32 %v1740, %v1865
        %v1931 = vadd.f32 %v1741, %v1867
        %v1932 = vadd.f32 %v1742, %v1869
        %v1933 = vadd.f32 %v1743, %v1871
        %v1934 = vadd.f32 %v1744, %v1873
        %v1935 = vadd.f32 %v1745, %v1872
        %1937 = vset.pattern.permute.xlu0 0
        %1938 = vperm.xlu0 %1937, %v572
        %v1939 = vpop.permute.xlu0 %1938
        %v1941 = vlaneseq
        %v1942 = vshrl.u32 %v1941, 7
        %v1943 = vsub.s32 7, %v1942
        %v1944 = vrot.slane %v573, %v1943
        %v1945 = vmul.f32 %v578, %v1944
        %v1946 = vmul.f32 %v583, %v1944
        %v1947 = vmul.f32 %v588, %v1944
        %v1948 = vmul.f32 %v593, %v1944
        %v1949 = vmul.f32 %v598, %v1944
        %v1950 = vmul.f32 %v603, %v1944
        %v1951 = vmul.f32 %v608, %v1944
        %v1952 = vmul.f32 %v613, %v1944
        %v1953 = vmul.f32 %v618, %v1944
        %v1954 = vmul.f32 %v623, %v1944
        %v1955 = vmul.f32 %v628, %v1944
        %v1956 = vmul.f32 %v633, %v1944
        %v1957 = vmul.f32 %v638, %v1944
        %v1958 = vmul.f32 %v643, %v1944
        %v1959 = vmul.f32 %v648, %v1944
        %v1960 = vmul.f32 %v653, %v1944
        %v1961 = vmul.f32 %v658, %v1944
        %v1962 = vmul.f32 %v663, %v1944
        %v1963 = vmul.f32 %v668, %v1944
        %v1964 = vmul.f32 %v673, %v1944
        %v1965 = vmul.f32 %v678, %v1944
        %v1966 = vmul.f32 %v683, %v1944
        %v1967 = vmul.f32 %v688, %v1944
        %v1968 = vmul.f32 %v693, %v1944
        %v1969 = vmul.f32 %v698, %v1944
        %v1970 = vmul.f32 %v703, %v1944
        %v1971 = vmul.f32 %v708, %v1944
        %v1972 = vmul.f32 %v713, %v1944
        %v1973 = vmul.f32 %v718, %v1944
        %v1974 = vmul.f32 %v723, %v1944
        %v1975 = vmul.f32 %v728, %v1944
        %v1976 = vmul.f32 %v1939, %v1944
        %vm2009 = vcmask 1040384
        %v2010 = vrot.slane %v1945, 7
        %v2011 = vrot.slane %v1946, 7
        %v2012 = vsel %vm2009, %v2010, %v2011
        %v2013 = vrot.slane %v1947, 7
        %v2014 = vsel %vm2009, %v2011, %v2013
        %v2015 = vrot.slane %v1948, 7
        %v2016 = vsel %vm2009, %v2013, %v2015
        %v2017 = vrot.slane %v1949, 7
        %v2018 = vsel %vm2009, %v2015, %v2017
        %v2019 = vrot.slane %v1950, 7
        %v2020 = vsel %vm2009, %v2017, %v2019
        %v2021 = vrot.slane %v1951, 7
        %v2022 = vsel %vm2009, %v2019, %v2021
        %v2023 = vrot.slane %v1952, 7
        %v2024 = vsel %vm2009, %v2021, %v2023
        %v2025 = vrot.slane %v1953, 7
        %v2026 = vsel %vm2009, %v2023, %v2025
        %v2027 = vrot.slane %v1954, 7
        %v2028 = vsel %vm2009, %v2025, %v2027
        %v2029 = vrot.slane %v1955, 7
        %v2030 = vsel %vm2009, %v2027, %v2029
        %v2031 = vrot.slane %v1956, 7
        %v2032 = vsel %vm2009, %v2029, %v2031
        %v2033 = vrot.slane %v1957, 7
        %v2034 = vsel %vm2009, %v2031, %v2033
        %v2035 = vrot.slane %v1958, 7
        %v2036 = vsel %vm2009, %v2033, %v2035
        %v2037 = vrot.slane %v1959, 7
        %v2038 = vsel %vm2009, %v2035, %v2037
        %v2039 = vrot.slane %v1960, 7
        %v2040 = vsel %vm2009, %v2037, %v2039
        %v2041 = vrot.slane %v1961, 7
        %v2042 = vsel %vm2009, %v2039, %v2041
        %v2043 = vrot.slane %v1962, 7
        %v2044 = vsel %vm2009, %v2041, %v2043
        %v2045 = vrot.slane %v1963, 7
        %v2046 = vsel %vm2009, %v2043, %v2045
        %v2047 = vrot.slane %v1964, 7
        %v2048 = vsel %vm2009, %v2045, %v2047
        %v2049 = vrot.slane %v1965, 7
        %v2050 = vsel %vm2009, %v2047, %v2049
        %v2051 = vrot.slane %v1966, 7
        %v2052 = vsel %vm2009, %v2049, %v2051
        %v2053 = vrot.slane %v1967, 7
        %v2054 = vsel %vm2009, %v2051, %v2053
        %v2055 = vrot.slane %v1968, 7
        %v2056 = vsel %vm2009, %v2053, %v2055
        %v2057 = vrot.slane %v1969, 7
        %v2058 = vsel %vm2009, %v2055, %v2057
        %v2059 = vrot.slane %v1970, 7
        %v2060 = vsel %vm2009, %v2057, %v2059
        %v2061 = vrot.slane %v1971, 7
        %v2062 = vsel %vm2009, %v2059, %v2061
        %v2063 = vrot.slane %v1972, 7
        %v2064 = vsel %vm2009, %v2061, %v2063
        %v2065 = vrot.slane %v1973, 7
        %v2066 = vsel %vm2009, %v2063, %v2065
        %v2067 = vrot.slane %v1974, 7
        %v2068 = vsel %vm2009, %v2065, %v2067
        %v2069 = vrot.slane %v1975, 7
        %v2070 = vsel %vm2009, %v2067, %v2069
        %v2071 = vrot.slane %v1976, 7
        %v2072 = vsel %vm2009, %v2069, %v2071
        %v2104 = vadd.f32 %v1905, %v2012
        %v2105 = vadd.f32 %v1906, %v2014
        %v2106 = vadd.f32 %v1907, %v2016
        %v2107 = vadd.f32 %v1908, %v2018
        %v2108 = vadd.f32 %v1909, %v2020
        %v2109 = vadd.f32 %v1910, %v2022
        %v2110 = vadd.f32 %v1911, %v2024
        %v2111 = vadd.f32 %v1912, %v2026
        %v2112 = vadd.f32 %v1913, %v2028
        %v2113 = vadd.f32 %v1914, %v2030
        %v2114 = vadd.f32 %v1915, %v2032
        %v2115 = vadd.f32 %v1916, %v2034
        %v2116 = vadd.f32 %v1917, %v2036
        %v2117 = vadd.f32 %v1918, %v2038
        %v2118 = vadd.f32 %v1919, %v2040
        %v2119 = vadd.f32 %v1920, %v2042
        %v2120 = vadd.f32 %v1921, %v2044
        %v2121 = vadd.f32 %v1922, %v2046
        %v2122 = vadd.f32 %v1923, %v2048
        %v2123 = vadd.f32 %v1924, %v2050
        %v2124 = vadd.f32 %v1925, %v2052
        %v2125 = vadd.f32 %v1926, %v2054
        %v2126 = vadd.f32 %v1927, %v2056
        %v2127 = vadd.f32 %v1928, %v2058
        %v2128 = vadd.f32 %v1929, %v2060
        %v2129 = vadd.f32 %v1930, %v2062
        %v2130 = vadd.f32 %v1931, %v2064
        %v2131 = vadd.f32 %v1932, %v2066
        %v2132 = vadd.f32 %v1933, %v2068
        %v2133 = vadd.f32 %v1934, %v2070
        %v2134 = vadd.f32 %v1935, %v2072
        %v2135 = vlaneseq
        %v2136 = vshrl.u32 %v2135, 7
        %v2137 = vsub.s32 0, %v2136
        %v2138 = vrot.slane %v574, %v2137
        %v2139 = vmul.f32 %v583, %v2138
        %v2140 = vmul.f32 %v588, %v2138
        %v2141 = vmul.f32 %v593, %v2138
        %v2142 = vmul.f32 %v598, %v2138
        %v2143 = vmul.f32 %v603, %v2138
        %v2144 = vmul.f32 %v608, %v2138
        %v2145 = vmul.f32 %v613, %v2138
        %v2146 = vmul.f32 %v618, %v2138
        %v2147 = vmul.f32 %v623, %v2138
        %v2148 = vmul.f32 %v628, %v2138
        %v2149 = vmul.f32 %v633, %v2138
        %v2150 = vmul.f32 %v638, %v2138
        %v2151 = vmul.f32 %v643, %v2138
        %v2152 = vmul.f32 %v648, %v2138
        %v2153 = vmul.f32 %v653, %v2138
        %v2154 = vmul.f32 %v658, %v2138
        %v2155 = vmul.f32 %v663, %v2138
        %v2156 = vmul.f32 %v668, %v2138
        %v2157 = vmul.f32 %v673, %v2138
        %v2158 = vmul.f32 %v678, %v2138
        %v2159 = vmul.f32 %v683, %v2138
        %v2160 = vmul.f32 %v688, %v2138
        %v2161 = vmul.f32 %v693, %v2138
        %v2162 = vmul.f32 %v698, %v2138
        %v2163 = vmul.f32 %v703, %v2138
        %v2164 = vmul.f32 %v708, %v2138
        %v2165 = vmul.f32 %v713, %v2138
        %v2166 = vmul.f32 %v718, %v2138
        %v2167 = vmul.f32 %v723, %v2138
        %v2168 = vmul.f32 %v728, %v2138
        %v2169 = vmul.f32 %v1939, %v2138
        %v2170 = vadd.f32 %v2104, %v2139
        %v2171 = vadd.f32 %v2105, %v2140
        %v2172 = vadd.f32 %v2106, %v2141
        %v2173 = vadd.f32 %v2107, %v2142
        %v2174 = vadd.f32 %v2108, %v2143
        %v2175 = vadd.f32 %v2109, %v2144
        %v2176 = vadd.f32 %v2110, %v2145
        %v2177 = vadd.f32 %v2111, %v2146
        %v2178 = vadd.f32 %v2112, %v2147
        %v2179 = vadd.f32 %v2113, %v2148
        %v2180 = vadd.f32 %v2114, %v2149
        %v2181 = vadd.f32 %v2115, %v2150
        %v2182 = vadd.f32 %v2116, %v2151
        %v2183 = vadd.f32 %v2117, %v2152
        %v2184 = vadd.f32 %v2118, %v2153
        %v2185 = vadd.f32 %v2119, %v2154
        %v2186 = vadd.f32 %v2120, %v2155
        %v2187 = vadd.f32 %v2121, %v2156
        %v2188 = vadd.f32 %v2122, %v2157
        %v2189 = vadd.f32 %v2123, %v2158
        %v2190 = vadd.f32 %v2124, %v2159
        %v2191 = vadd.f32 %v2125, %v2160
        %v2192 = vadd.f32 %v2126, %v2161
        %v2193 = vadd.f32 %v2127, %v2162
        %v2194 = vadd.f32 %v2128, %v2163
        %v2195 = vadd.f32 %v2129, %v2164
        %v2196 = vadd.f32 %v2130, %v2165
        %v2197 = vadd.f32 %v2131, %v2166
        %v2198 = vadd.f32 %v2132, %v2167
        %v2199 = vadd.f32 %v2133, %v2168
        %v2200 = vadd.f32 %v2134, %v2169
        %v2201 = vlaneseq
        %v2202 = vshrl.u32 %v2201, 7
        %v2203 = vsub.s32 1, %v2202
        %v2204 = vrot.slane %v574, %v2203
        %v2205 = vmul.f32 %v583, %v2204
        %v2206 = vmul.f32 %v588, %v2204
        %v2207 = vmul.f32 %v593, %v2204
        %v2208 = vmul.f32 %v598, %v2204
        %v2209 = vmul.f32 %v603, %v2204
        %v2210 = vmul.f32 %v608, %v2204
        %v2211 = vmul.f32 %v613, %v2204
        %v2212 = vmul.f32 %v618, %v2204
        %v2213 = vmul.f32 %v623, %v2204
        %v2214 = vmul.f32 %v628, %v2204
        %v2215 = vmul.f32 %v633, %v2204
        %v2216 = vmul.f32 %v638, %v2204
        %v2217 = vmul.f32 %v643, %v2204
        %v2218 = vmul.f32 %v648, %v2204
        %v2219 = vmul.f32 %v653, %v2204
        %v2220 = vmul.f32 %v658, %v2204
        %v2221 = vmul.f32 %v663, %v2204
        %v2222 = vmul.f32 %v668, %v2204
        %v2223 = vmul.f32 %v673, %v2204
        %v2224 = vmul.f32 %v678, %v2204
        %v2225 = vmul.f32 %v683, %v2204
        %v2226 = vmul.f32 %v688, %v2204
        %v2227 = vmul.f32 %v693, %v2204
        %v2228 = vmul.f32 %v698, %v2204
        %v2229 = vmul.f32 %v703, %v2204
        %v2230 = vmul.f32 %v708, %v2204
        %v2231 = vmul.f32 %v713, %v2204
        %v2232 = vmul.f32 %v718, %v2204
        %v2233 = vmul.f32 %v723, %v2204
        %v2234 = vmul.f32 %v728, %v2204
        %v2235 = vmul.f32 %v1939, %v2204
        %v2267 = vrot.slane %v2205, 1
        %v2268 = vrot.slane %v2206, 1
        %v2269 = vsel %vm862, %v2267, %v2268
        %v2270 = vrot.slane %v2207, 1
        %v2271 = vsel %vm862, %v2268, %v2270
        %v2272 = vrot.slane %v2208, 1
        %v2273 = vsel %vm862, %v2270, %v2272
        %v2274 = vrot.slane %v2209, 1
        %v2275 = vsel %vm862, %v2272, %v2274
        %v2276 = vrot.slane %v2210, 1
        %v2277 = vsel %vm862, %v2274, %v2276
        %v2278 = vrot.slane %v2211, 1
        %v2279 = vsel %vm862, %v2276, %v2278
        %v2280 = vrot.slane %v2212, 1
        %v2281 = vsel %vm862, %v2278, %v2280
        %v2282 = vrot.slane %v2213, 1
        %v2283 = vsel %vm862, %v2280, %v2282
        %v2284 = vrot.slane %v2214, 1
        %v2285 = vsel %vm862, %v2282, %v2284
        %v2286 = vrot.slane %v2215, 1
        %v2287 = vsel %vm862, %v2284, %v2286
        %v2288 = vrot.slane %v2216, 1
        %v2289 = vsel %vm862, %v2286, %v2288
        %v2290 = vrot.slane %v2217, 1
        %v2291 = vsel %vm862, %v2288, %v2290
        %v2292 = vrot.slane %v2218, 1
        %v2293 = vsel %vm862, %v2290, %v2292
        %v2294 = vrot.slane %v2219, 1
        %v2295 = vsel %vm862, %v2292, %v2294
        %v2296 = vrot.slane %v2220, 1
        %v2297 = vsel %vm862, %v2294, %v2296
        %v2298 = vrot.slane %v2221, 1
        %v2299 = vsel %vm862, %v2296, %v2298
        %v2300 = vrot.slane %v2222, 1
        %v2301 = vsel %vm862, %v2298, %v2300
        %v2302 = vrot.slane %v2223, 1
        %v2303 = vsel %vm862, %v2300, %v2302
        %v2304 = vrot.slane %v2224, 1
        %v2305 = vsel %vm862, %v2302, %v2304
        %v2306 = vrot.slane %v2225, 1
        %v2307 = vsel %vm862, %v2304, %v2306
        %v2308 = vrot.slane %v2226, 1
        %v2309 = vsel %vm862, %v2306, %v2308
        %v2310 = vrot.slane %v2227, 1
        %v2311 = vsel %vm862, %v2308, %v2310
        %v2312 = vrot.slane %v2228, 1
        %v2313 = vsel %vm862, %v2310, %v2312
        %v2314 = vrot.slane %v2229, 1
        %v2315 = vsel %vm862, %v2312, %v2314
        %v2316 = vrot.slane %v2230, 1
        %v2317 = vsel %vm862, %v2314, %v2316
        %v2318 = vrot.slane %v2231, 1
        %v2319 = vsel %vm862, %v2316, %v2318
        %v2320 = vrot.slane %v2232, 1
        %v2321 = vsel %vm862, %v2318, %v2320
        %v2322 = vrot.slane %v2233, 1
        %v2323 = vsel %vm862, %v2320, %v2322
        %v2324 = vrot.slane %v2234, 1
        %v2325 = vsel %vm862, %v2322, %v2324
        %v2326 = vrot.slane %v2235, 1
        %v2327 = vsel %vm862, %v2324, %v2326
        %v2359 = vadd.f32 %v2170, %v2269
        %v2360 = vadd.f32 %v2171, %v2271
        %v2361 = vadd.f32 %v2172, %v2273
        %v2362 = vadd.f32 %v2173, %v2275
        %v2363 = vadd.f32 %v2174, %v2277
        %v2364 = vadd.f32 %v2175, %v2279
        %v2365 = vadd.f32 %v2176, %v2281
        %v2366 = vadd.f32 %v2177, %v2283
        %v2367 = vadd.f32 %v2178, %v2285
        %v2368 = vadd.f32 %v2179, %v2287
        %v2369 = vadd.f32 %v2180, %v2289
        %v2370 = vadd.f32 %v2181, %v2291
        %v2371 = vadd.f32 %v2182, %v2293
        %v2372 = vadd.f32 %v2183, %v2295
        %v2373 = vadd.f32 %v2184, %v2297
        %v2374 = vadd.f32 %v2185, %v2299
        %v2375 = vadd.f32 %v2186, %v2301
        %v2376 = vadd.f32 %v2187, %v2303
        %v2377 = vadd.f32 %v2188, %v2305
        %v2378 = vadd.f32 %v2189, %v2307
        %v2379 = vadd.f32 %v2190, %v2309
        %v2380 = vadd.f32 %v2191, %v2311
        %v2381 = vadd.f32 %v2192, %v2313
        %v2382 = vadd.f32 %v2193, %v2315
        %v2383 = vadd.f32 %v2194, %v2317
        %v2384 = vadd.f32 %v2195, %v2319
        %v2385 = vadd.f32 %v2196, %v2321
        %v2386 = vadd.f32 %v2197, %v2323
        %v2387 = vadd.f32 %v2198, %v2325
        %v2388 = vadd.f32 %v2199, %v2327
        %v2389 = vadd.f32 %v2200, %v2326
        %v2390 = vlaneseq
        %v2391 = vshrl.u32 %v2390, 7
        %v2392 = vsub.s32 2, %v2391
        %v2393 = vrot.slane %v574, %v2392
        %v2394 = vmul.f32 %v583, %v2393
        %v2395 = vmul.f32 %v588, %v2393
        %v2396 = vmul.f32 %v593, %v2393
        %v2397 = vmul.f32 %v598, %v2393
        %v2398 = vmul.f32 %v603, %v2393
        %v2399 = vmul.f32 %v608, %v2393
        %v2400 = vmul.f32 %v613, %v2393
        %v2401 = vmul.f32 %v618, %v2393
        %v2402 = vmul.f32 %v623, %v2393
        %v2403 = vmul.f32 %v628, %v2393
        %v2404 = vmul.f32 %v633, %v2393
        %v2405 = vmul.f32 %v638, %v2393
        %v2406 = vmul.f32 %v643, %v2393
        %v2407 = vmul.f32 %v648, %v2393
        %v2408 = vmul.f32 %v653, %v2393
        %v2409 = vmul.f32 %v658, %v2393
        %v2410 = vmul.f32 %v663, %v2393
        %v2411 = vmul.f32 %v668, %v2393
        %v2412 = vmul.f32 %v673, %v2393
        %v2413 = vmul.f32 %v678, %v2393
        %v2414 = vmul.f32 %v683, %v2393
        %v2415 = vmul.f32 %v688, %v2393
        %v2416 = vmul.f32 %v693, %v2393
        %v2417 = vmul.f32 %v698, %v2393
        %v2418 = vmul.f32 %v703, %v2393
        %v2419 = vmul.f32 %v708, %v2393
        %v2420 = vmul.f32 %v713, %v2393
        %v2421 = vmul.f32 %v718, %v2393
        %v2422 = vmul.f32 %v723, %v2393
        %v2423 = vmul.f32 %v728, %v2393
        %v2424 = vmul.f32 %v1939, %v2393
        %v2456 = vrot.slane %v2394, 2
        %v2457 = vrot.slane %v2395, 2
        %v2458 = vsel %vm1052, %v2456, %v2457
        %v2459 = vrot.slane %v2396, 2
        %v2460 = vsel %vm1052, %v2457, %v2459
        %v2461 = vrot.slane %v2397, 2
        %v2462 = vsel %vm1052, %v2459, %v2461
        %v2463 = vrot.slane %v2398, 2
        %v2464 = vsel %vm1052, %v2461, %v2463
        %v2465 = vrot.slane %v2399, 2
        %v2466 = vsel %vm1052, %v2463, %v2465
        %v2467 = vrot.slane %v2400, 2
        %v2468 = vsel %vm1052, %v2465, %v2467
        %v2469 = vrot.slane %v2401, 2
        %v2470 = vsel %vm1052, %v2467, %v2469
        %v2471 = vrot.slane %v2402, 2
        %v2472 = vsel %vm1052, %v2469, %v2471
        %v2473 = vrot.slane %v2403, 2
        %v2474 = vsel %vm1052, %v2471, %v2473
        %v2475 = vrot.slane %v2404, 2
        %v2476 = vsel %vm1052, %v2473, %v2475
        %v2477 = vrot.slane %v2405, 2
        %v2478 = vsel %vm1052, %v2475, %v2477
        %v2479 = vrot.slane %v2406, 2
        %v2480 = vsel %vm1052, %v2477, %v2479
        %v2481 = vrot.slane %v2407, 2
        %v2482 = vsel %vm1052, %v2479, %v2481
        %v2483 = vrot.slane %v2408, 2
        %v2484 = vsel %vm1052, %v2481, %v2483
        %v2485 = vrot.slane %v2409, 2
        %v2486 = vsel %vm1052, %v2483, %v2485
        %v2487 = vrot.slane %v2410, 2
        %v2488 = vsel %vm1052, %v2485, %v2487
        %v2489 = vrot.slane %v2411, 2
        %v2490 = vsel %vm1052, %v2487, %v2489
        %v2491 = vrot.slane %v2412, 2
        %v2492 = vsel %vm1052, %v2489, %v2491
        %v2493 = vrot.slane %v2413, 2
        %v2494 = vsel %vm1052, %v2491, %v2493
        %v2495 = vrot.slane %v2414, 2
        %v2496 = vsel %vm1052, %v2493, %v2495
        %v2497 = vrot.slane %v2415, 2
        %v2498 = vsel %vm1052, %v2495, %v2497
        %v2499 = vrot.slane %v2416, 2
        %v2500 = vsel %vm1052, %v2497, %v2499
        %v2501 = vrot.slane %v2417, 2
        %v2502 = vsel %vm1052, %v2499, %v2501
        %v2503 = vrot.slane %v2418, 2
        %v2504 = vsel %vm1052, %v2501, %v2503
        %v2505 = vrot.slane %v2419, 2
        %v2506 = vsel %vm1052, %v2503, %v2505
        %v2507 = vrot.slane %v2420, 2
        %v2508 = vsel %vm1052, %v2505, %v2507
        %v2509 = vrot.slane %v2421, 2
        %v2510 = vsel %vm1052, %v2507, %v2509
        %v2511 = vrot.slane %v2422, 2
        %v2512 = vsel %vm1052, %v2509, %v2511
        %v2513 = vrot.slane %v2423, 2
        %v2514 = vsel %vm1052, %v2511, %v2513
        %v2515 = vrot.slane %v2424, 2
        %v2516 = vsel %vm1052, %v2513, %v2515
        %v2548 = vadd.f32 %v2359, %v2458
        %v2549 = vadd.f32 %v2360, %v2460
        %v2550 = vadd.f32 %v2361, %v2462
        %v2551 = vadd.f32 %v2362, %v2464
        %v2552 = vadd.f32 %v2363, %v2466
        %v2553 = vadd.f32 %v2364, %v2468
        %v2554 = vadd.f32 %v2365, %v2470
        %v2555 = vadd.f32 %v2366, %v2472
        %v2556 = vadd.f32 %v2367, %v2474
        %v2557 = vadd.f32 %v2368, %v2476
        %v2558 = vadd.f32 %v2369, %v2478
        %v2559 = vadd.f32 %v2370, %v2480
        %v2560 = vadd.f32 %v2371, %v2482
        %v2561 = vadd.f32 %v2372, %v2484
        %v2562 = vadd.f32 %v2373, %v2486
        %v2563 = vadd.f32 %v2374, %v2488
        %v2564 = vadd.f32 %v2375, %v2490
        %v2565 = vadd.f32 %v2376, %v2492
        %v2566 = vadd.f32 %v2377, %v2494
        %v2567 = vadd.f32 %v2378, %v2496
        %v2568 = vadd.f32 %v2379, %v2498
        %v2569 = vadd.f32 %v2380, %v2500
        %v2570 = vadd.f32 %v2381, %v2502
        %v2571 = vadd.f32 %v2382, %v2504
        %v2572 = vadd.f32 %v2383, %v2506
        %v2573 = vadd.f32 %v2384, %v2508
        %v2574 = vadd.f32 %v2385, %v2510
        %v2575 = vadd.f32 %v2386, %v2512
        %v2576 = vadd.f32 %v2387, %v2514
        %v2577 = vadd.f32 %v2388, %v2516
        %v2578 = vadd.f32 %v2389, %v2515
        %v2579 = vlaneseq
        %v2580 = vshrl.u32 %v2579, 7
        %v2581 = vsub.s32 3, %v2580
        %v2582 = vrot.slane %v574, %v2581
        %v2583 = vmul.f32 %v583, %v2582
        %v2584 = vmul.f32 %v588, %v2582
        %v2585 = vmul.f32 %v593, %v2582
        %v2586 = vmul.f32 %v598, %v2582
        %v2587 = vmul.f32 %v603, %v2582
        %v2588 = vmul.f32 %v608, %v2582
        %v2589 = vmul.f32 %v613, %v2582
        %v2590 = vmul.f32 %v618, %v2582
        %v2591 = vmul.f32 %v623, %v2582
        %v2592 = vmul.f32 %v628, %v2582
        %v2593 = vmul.f32 %v633, %v2582
        %v2594 = vmul.f32 %v638, %v2582
        %v2595 = vmul.f32 %v643, %v2582
        %v2596 = vmul.f32 %v648, %v2582
        %v2597 = vmul.f32 %v653, %v2582
        %v2598 = vmul.f32 %v658, %v2582
        %v2599 = vmul.f32 %v663, %v2582
        %v2600 = vmul.f32 %v668, %v2582
        %v2601 = vmul.f32 %v673, %v2582
        %v2602 = vmul.f32 %v678, %v2582
        %v2603 = vmul.f32 %v683, %v2582
        %v2604 = vmul.f32 %v688, %v2582
        %v2605 = vmul.f32 %v693, %v2582
        %v2606 = vmul.f32 %v698, %v2582
        %v2607 = vmul.f32 %v703, %v2582
        %v2608 = vmul.f32 %v708, %v2582
        %v2609 = vmul.f32 %v713, %v2582
        %v2610 = vmul.f32 %v718, %v2582
        %v2611 = vmul.f32 %v723, %v2582
        %v2612 = vmul.f32 %v728, %v2582
        %v2613 = vmul.f32 %v1939, %v2582
        %v2645 = vrot.slane %v2583, 3
        %v2646 = vrot.slane %v2584, 3
        %v2647 = vsel %vm1242, %v2645, %v2646
        %v2648 = vrot.slane %v2585, 3
        %v2649 = vsel %vm1242, %v2646, %v2648
        %v2650 = vrot.slane %v2586, 3
        %v2651 = vsel %vm1242, %v2648, %v2650
        %v2652 = vrot.slane %v2587, 3
        %v2653 = vsel %vm1242, %v2650, %v2652
        %v2654 = vrot.slane %v2588, 3
        %v2655 = vsel %vm1242, %v2652, %v2654
        %v2656 = vrot.slane %v2589, 3
        %v2657 = vsel %vm1242, %v2654, %v2656
        %v2658 = vrot.slane %v2590, 3
        %v2659 = vsel %vm1242, %v2656, %v2658
        %v2660 = vrot.slane %v2591, 3
        %v2661 = vsel %vm1242, %v2658, %v2660
        %v2662 = vrot.slane %v2592, 3
        %v2663 = vsel %vm1242, %v2660, %v2662
        %v2664 = vrot.slane %v2593, 3
        %v2665 = vsel %vm1242, %v2662, %v2664
        %v2666 = vrot.slane %v2594, 3
        %v2667 = vsel %vm1242, %v2664, %v2666
        %v2668 = vrot.slane %v2595, 3
        %v2669 = vsel %vm1242, %v2666, %v2668
        %v2670 = vrot.slane %v2596, 3
        %v2671 = vsel %vm1242, %v2668, %v2670
        %v2672 = vrot.slane %v2597, 3
        %v2673 = vsel %vm1242, %v2670, %v2672
        %v2674 = vrot.slane %v2598, 3
        %v2675 = vsel %vm1242, %v2672, %v2674
        %v2676 = vrot.slane %v2599, 3
        %v2677 = vsel %vm1242, %v2674, %v2676
        %v2678 = vrot.slane %v2600, 3
        %v2679 = vsel %vm1242, %v2676, %v2678
        %v2680 = vrot.slane %v2601, 3
        %v2681 = vsel %vm1242, %v2678, %v2680
        %v2682 = vrot.slane %v2602, 3
        %v2683 = vsel %vm1242, %v2680, %v2682
        %v2684 = vrot.slane %v2603, 3
        %v2685 = vsel %vm1242, %v2682, %v2684
        %v2686 = vrot.slane %v2604, 3
        %v2687 = vsel %vm1242, %v2684, %v2686
        %v2688 = vrot.slane %v2605, 3
        %v2689 = vsel %vm1242, %v2686, %v2688
        %v2690 = vrot.slane %v2606, 3
        %v2691 = vsel %vm1242, %v2688, %v2690
        %v2692 = vrot.slane %v2607, 3
        %v2693 = vsel %vm1242, %v2690, %v2692
        %v2694 = vrot.slane %v2608, 3
        %v2695 = vsel %vm1242, %v2692, %v2694
        %v2696 = vrot.slane %v2609, 3
        %v2697 = vsel %vm1242, %v2694, %v2696
        %v2698 = vrot.slane %v2610, 3
        %v2699 = vsel %vm1242, %v2696, %v2698
        %v2700 = vrot.slane %v2611, 3
        %v2701 = vsel %vm1242, %v2698, %v2700
        %v2702 = vrot.slane %v2612, 3
        %v2703 = vsel %vm1242, %v2700, %v2702
        %v2704 = vrot.slane %v2613, 3
        %v2705 = vsel %vm1242, %v2702, %v2704
        %v2737 = vadd.f32 %v2548, %v2647
        %v2738 = vadd.f32 %v2549, %v2649
        %v2739 = vadd.f32 %v2550, %v2651
        %v2740 = vadd.f32 %v2551, %v2653
        %v2741 = vadd.f32 %v2552, %v2655
        %v2742 = vadd.f32 %v2553, %v2657
        %v2743 = vadd.f32 %v2554, %v2659
        %v2744 = vadd.f32 %v2555, %v2661
        %v2745 = vadd.f32 %v2556, %v2663
        %v2746 = vadd.f32 %v2557, %v2665
        %v2747 = vadd.f32 %v2558, %v2667
        %v2748 = vadd.f32 %v2559, %v2669
        %v2749 = vadd.f32 %v2560, %v2671
        %v2750 = vadd.f32 %v2561, %v2673
        %v2751 = vadd.f32 %v2562, %v2675
        %v2752 = vadd.f32 %v2563, %v2677
        %v2753 = vadd.f32 %v2564, %v2679
        %v2754 = vadd.f32 %v2565, %v2681
        %v2755 = vadd.f32 %v2566, %v2683
        %v2756 = vadd.f32 %v2567, %v2685
        %v2757 = vadd.f32 %v2568, %v2687
        %v2758 = vadd.f32 %v2569, %v2689
        %v2759 = vadd.f32 %v2570, %v2691
        %v2760 = vadd.f32 %v2571, %v2693
        %v2761 = vadd.f32 %v2572, %v2695
        %v2762 = vadd.f32 %v2573, %v2697
        %v2763 = vadd.f32 %v2574, %v2699
        %v2764 = vadd.f32 %v2575, %v2701
        %v2765 = vadd.f32 %v2576, %v2703
        %v2766 = vadd.f32 %v2577, %v2705
        %v2767 = vadd.f32 %v2578, %v2704
        %v2768 = vlaneseq
        %v2769 = vshrl.u32 %v2768, 7
        %v2770 = vsub.s32 4, %v2769
        %v2771 = vrot.slane %v574, %v2770
        %v2772 = vmul.f32 %v583, %v2771
        %v2773 = vmul.f32 %v588, %v2771
        %v2774 = vmul.f32 %v593, %v2771
        %v2775 = vmul.f32 %v598, %v2771
        %v2776 = vmul.f32 %v603, %v2771
        %v2777 = vmul.f32 %v608, %v2771
        %v2778 = vmul.f32 %v613, %v2771
        %v2779 = vmul.f32 %v618, %v2771
        %v2780 = vmul.f32 %v623, %v2771
        %v2781 = vmul.f32 %v628, %v2771
        %v2782 = vmul.f32 %v633, %v2771
        %v2783 = vmul.f32 %v638, %v2771
        %v2784 = vmul.f32 %v643, %v2771
        %v2785 = vmul.f32 %v648, %v2771
        %v2786 = vmul.f32 %v653, %v2771
        %v2787 = vmul.f32 %v658, %v2771
        %v2788 = vmul.f32 %v663, %v2771
        %v2789 = vmul.f32 %v668, %v2771
        %v2790 = vmul.f32 %v673, %v2771
        %v2791 = vmul.f32 %v678, %v2771
        %v2792 = vmul.f32 %v683, %v2771
        %v2793 = vmul.f32 %v688, %v2771
        %v2794 = vmul.f32 %v693, %v2771
        %v2795 = vmul.f32 %v698, %v2771
        %v2796 = vmul.f32 %v703, %v2771
        %v2797 = vmul.f32 %v708, %v2771
        %v2798 = vmul.f32 %v713, %v2771
        %v2799 = vmul.f32 %v718, %v2771
        %v2800 = vmul.f32 %v723, %v2771
        %v2801 = vmul.f32 %v728, %v2771
        %v2802 = vmul.f32 %v1939, %v2771
        %v2834 = vrot.slane %v2772, 4
        %v2835 = vrot.slane %v2773, 4
        %v2836 = vsel %vm1432, %v2834, %v2835
        %v2837 = vrot.slane %v2774, 4
        %v2838 = vsel %vm1432, %v2835, %v2837
        %v2839 = vrot.slane %v2775, 4
        %v2840 = vsel %vm1432, %v2837, %v2839
        %v2841 = vrot.slane %v2776, 4
        %v2842 = vsel %vm1432, %v2839, %v2841
        %v2843 = vrot.slane %v2777, 4
        %v2844 = vsel %vm1432, %v2841, %v2843
        %v2845 = vrot.slane %v2778, 4
        %v2846 = vsel %vm1432, %v2843, %v2845
        %v2847 = vrot.slane %v2779, 4
        %v2848 = vsel %vm1432, %v2845, %v2847
        %v2849 = vrot.slane %v2780, 4
        %v2850 = vsel %vm1432, %v2847, %v2849
        %v2851 = vrot.slane %v2781, 4
        %v2852 = vsel %vm1432, %v2849, %v2851
        %v2853 = vrot.slane %v2782, 4
        %v2854 = vsel %vm1432, %v2851, %v2853
        %v2855 = vrot.slane %v2783, 4
        %v2856 = vsel %vm1432, %v2853, %v2855
        %v2857 = vrot.slane %v2784, 4
        %v2858 = vsel %vm1432, %v2855, %v2857
        %v2859 = vrot.slane %v2785, 4
        %v2860 = vsel %vm1432, %v2857, %v2859
        %v2861 = vrot.slane %v2786, 4
        %v2862 = vsel %vm1432, %v2859, %v2861
        %v2863 = vrot.slane %v2787, 4
        %v2864 = vsel %vm1432, %v2861, %v2863
        %v2865 = vrot.slane %v2788, 4
        %v2866 = vsel %vm1432, %v2863, %v2865
        %v2867 = vrot.slane %v2789, 4
        %v2868 = vsel %vm1432, %v2865, %v2867
        %v2869 = vrot.slane %v2790, 4
        %v2870 = vsel %vm1432, %v2867, %v2869
        %v2871 = vrot.slane %v2791, 4
        %v2872 = vsel %vm1432, %v2869, %v2871
        %v2873 = vrot.slane %v2792, 4
        %v2874 = vsel %vm1432, %v2871, %v2873
        %v2875 = vrot.slane %v2793, 4
        %v2876 = vsel %vm1432, %v2873, %v2875
        %v2877 = vrot.slane %v2794, 4
        %v2878 = vsel %vm1432, %v2875, %v2877
        %v2879 = vrot.slane %v2795, 4
        %v2880 = vsel %vm1432, %v2877, %v2879
        %v2881 = vrot.slane %v2796, 4
        %v2882 = vsel %vm1432, %v2879, %v2881
        %v2883 = vrot.slane %v2797, 4
        %v2884 = vsel %vm1432, %v2881, %v2883
        %v2885 = vrot.slane %v2798, 4
        %v2886 = vsel %vm1432, %v2883, %v2885
        %v2887 = vrot.slane %v2799, 4
        %v2888 = vsel %vm1432, %v2885, %v2887
        %v2889 = vrot.slane %v2800, 4
        %v2890 = vsel %vm1432, %v2887, %v2889
        %v2891 = vrot.slane %v2801, 4
        %v2892 = vsel %vm1432, %v2889, %v2891
        %v2893 = vrot.slane %v2802, 4
        %v2894 = vsel %vm1432, %v2891, %v2893
        %v2926 = vadd.f32 %v2737, %v2836
        %v2927 = vadd.f32 %v2738, %v2838
        %v2928 = vadd.f32 %v2739, %v2840
        %v2929 = vadd.f32 %v2740, %v2842
        %v2930 = vadd.f32 %v2741, %v2844
        %v2931 = vadd.f32 %v2742, %v2846
        %v2932 = vadd.f32 %v2743, %v2848
        %v2933 = vadd.f32 %v2744, %v2850
        %v2934 = vadd.f32 %v2745, %v2852
        %v2935 = vadd.f32 %v2746, %v2854
        %v2936 = vadd.f32 %v2747, %v2856
        %v2937 = vadd.f32 %v2748, %v2858
        %v2938 = vadd.f32 %v2749, %v2860
        %v2939 = vadd.f32 %v2750, %v2862
        %v2940 = vadd.f32 %v2751, %v2864
        %v2941 = vadd.f32 %v2752, %v2866
        %v2942 = vadd.f32 %v2753, %v2868
        %v2943 = vadd.f32 %v2754, %v2870
        %v2944 = vadd.f32 %v2755, %v2872
        %v2945 = vadd.f32 %v2756, %v2874
        %v2946 = vadd.f32 %v2757, %v2876
        %v2947 = vadd.f32 %v2758, %v2878
        %v2948 = vadd.f32 %v2759, %v2880
        %v2949 = vadd.f32 %v2760, %v2882
        %v2950 = vadd.f32 %v2761, %v2884
        %v2951 = vadd.f32 %v2762, %v2886
        %v2952 = vadd.f32 %v2763, %v2888
        %v2953 = vadd.f32 %v2764, %v2890
        %v2954 = vadd.f32 %v2765, %v2892
        %v2955 = vadd.f32 %v2766, %v2894
        %v2956 = vadd.f32 %v2767, %v2893
        %v2957 = vlaneseq
        %v2958 = vshrl.u32 %v2957, 7
        %v2959 = vsub.s32 5, %v2958
        %v2960 = vrot.slane %v574, %v2959
        %v2961 = vmul.f32 %v583, %v2960
        %v2962 = vmul.f32 %v588, %v2960
        %v2963 = vmul.f32 %v593, %v2960
        %v2964 = vmul.f32 %v598, %v2960
        %v2965 = vmul.f32 %v603, %v2960
        %v2966 = vmul.f32 %v608, %v2960
        %v2967 = vmul.f32 %v613, %v2960
        %v2968 = vmul.f32 %v618, %v2960
        %v2969 = vmul.f32 %v623, %v2960
        %v2970 = vmul.f32 %v628, %v2960
        %v2971 = vmul.f32 %v633, %v2960
        %v2972 = vmul.f32 %v638, %v2960
        %v2973 = vmul.f32 %v643, %v2960
        %v2974 = vmul.f32 %v648, %v2960
        %v2975 = vmul.f32 %v653, %v2960
        %v2976 = vmul.f32 %v658, %v2960
        %v2977 = vmul.f32 %v663, %v2960
        %v2978 = vmul.f32 %v668, %v2960
        %v2979 = vmul.f32 %v673, %v2960
        %v2980 = vmul.f32 %v678, %v2960
        %v2981 = vmul.f32 %v683, %v2960
        %v2982 = vmul.f32 %v688, %v2960
        %v2983 = vmul.f32 %v693, %v2960
        %v2984 = vmul.f32 %v698, %v2960
        %v2985 = vmul.f32 %v703, %v2960
        %v2986 = vmul.f32 %v708, %v2960
        %v2987 = vmul.f32 %v713, %v2960
        %v2988 = vmul.f32 %v718, %v2960
        %v2989 = vmul.f32 %v723, %v2960
        %v2990 = vmul.f32 %v728, %v2960
        %v2991 = vmul.f32 %v1939, %v2960
        %v3023 = vrot.slane %v2961, 5
        %v3024 = vrot.slane %v2962, 5
        %v3025 = vsel %vm1622, %v3023, %v3024
        %v3026 = vrot.slane %v2963, 5
        %v3027 = vsel %vm1622, %v3024, %v3026
        %v3028 = vrot.slane %v2964, 5
        %v3029 = vsel %vm1622, %v3026, %v3028
        %v3030 = vrot.slane %v2965, 5
        %v3031 = vsel %vm1622, %v3028, %v3030
        %v3032 = vrot.slane %v2966, 5
        %v3033 = vsel %vm1622, %v3030, %v3032
        %v3034 = vrot.slane %v2967, 5
        %v3035 = vsel %vm1622, %v3032, %v3034
        %v3036 = vrot.slane %v2968, 5
        %v3037 = vsel %vm1622, %v3034, %v3036
        %v3038 = vrot.slane %v2969, 5
        %v3039 = vsel %vm1622, %v3036, %v3038
        %v3040 = vrot.slane %v2970, 5
        %v3041 = vsel %vm1622, %v3038, %v3040
        %v3042 = vrot.slane %v2971, 5
        %v3043 = vsel %vm1622, %v3040, %v3042
        %v3044 = vrot.slane %v2972, 5
        %v3045 = vsel %vm1622, %v3042, %v3044
        %v3046 = vrot.slane %v2973, 5
        %v3047 = vsel %vm1622, %v3044, %v3046
        %v3048 = vrot.slane %v2974, 5
        %v3049 = vsel %vm1622, %v3046, %v3048
        %v3050 = vrot.slane %v2975, 5
        %v3051 = vsel %vm1622, %v3048, %v3050
        %v3052 = vrot.slane %v2976, 5
        %v3053 = vsel %vm1622, %v3050, %v3052
        %v3054 = vrot.slane %v2977, 5
        %v3055 = vsel %vm1622, %v3052, %v3054
        %v3056 = vrot.slane %v2978, 5
        %v3057 = vsel %vm1622, %v3054, %v3056
        %v3058 = vrot.slane %v2979, 5
        %v3059 = vsel %vm1622, %v3056, %v3058
        %v3060 = vrot.slane %v2980, 5
        %v3061 = vsel %vm1622, %v3058, %v3060
        %v3062 = vrot.slane %v2981, 5
        %v3063 = vsel %vm1622, %v3060, %v3062
        %v3064 = vrot.slane %v2982, 5
        %v3065 = vsel %vm1622, %v3062, %v3064
        %v3066 = vrot.slane %v2983, 5
        %v3067 = vsel %vm1622, %v3064, %v3066
        %v3068 = vrot.slane %v2984, 5
        %v3069 = vsel %vm1622, %v3066, %v3068
        %v3070 = vrot.slane %v2985, 5
        %v3071 = vsel %vm1622, %v3068, %v3070
        %v3072 = vrot.slane %v2986, 5
        %v3073 = vsel %vm1622, %v3070, %v3072
        %v3074 = vrot.slane %v2987, 5
        %v3075 = vsel %vm1622, %v3072, %v3074
        %v3076 = vrot.slane %v2988, 5
        %v3077 = vsel %vm1622, %v3074, %v3076
        %v3078 = vrot.slane %v2989, 5
        %v3079 = vsel %vm1622, %v3076, %v3078
        %v3080 = vrot.slane %v2990, 5
        %v3081 = vsel %vm1622, %v3078, %v3080
        %v3082 = vrot.slane %v2991, 5
        %v3083 = vsel %vm1622, %v3080, %v3082
        %v3115 = vadd.f32 %v2926, %v3025
        %v3116 = vadd.f32 %v2927, %v3027
        %v3117 = vadd.f32 %v2928, %v3029
        %v3118 = vadd.f32 %v2929, %v3031
        %v3119 = vadd.f32 %v2930, %v3033
        %v3120 = vadd.f32 %v2931, %v3035
        %v3121 = vadd.f32 %v2932, %v3037
        %v3122 = vadd.f32 %v2933, %v3039
        %v3123 = vadd.f32 %v2934, %v3041
        %v3124 = vadd.f32 %v2935, %v3043
        %v3125 = vadd.f32 %v2936, %v3045
        %v3126 = vadd.f32 %v2937, %v3047
        %v3127 = vadd.f32 %v2938, %v3049
        %v3128 = vadd.f32 %v2939, %v3051
        %v3129 = vadd.f32 %v2940, %v3053
        %v3130 = vadd.f32 %v2941, %v3055
        %v3131 = vadd.f32 %v2942, %v3057
        %v3132 = vadd.f32 %v2943, %v3059
        %v3133 = vadd.f32 %v2944, %v3061
        %v3134 = vadd.f32 %v2945, %v3063
        %v3135 = vadd.f32 %v2946, %v3065
        %v3136 = vadd.f32 %v2947, %v3067
        %v3137 = vadd.f32 %v2948, %v3069
        %v3138 = vadd.f32 %v2949, %v3071
        %v3139 = vadd.f32 %v2950, %v3073
        %v3140 = vadd.f32 %v2951, %v3075
        %v3141 = vadd.f32 %v2952, %v3077
        %v3142 = vadd.f32 %v2953, %v3079
        %v3143 = vadd.f32 %v2954, %v3081
        %v3144 = vadd.f32 %v2955, %v3083
        %v3145 = vadd.f32 %v2956, %v3082
        %v3146 = vlaneseq
        %v3147 = vshrl.u32 %v3146, 7
        %v3148 = vsub.s32 6, %v3147
        %v3149 = vrot.slane %v574, %v3148
        %v3150 = vmul.f32 %v583, %v3149
        %v3151 = vmul.f32 %v588, %v3149
        %v3152 = vmul.f32 %v593, %v3149
        %v3153 = vmul.f32 %v598, %v3149
        %v3154 = vmul.f32 %v603, %v3149
        %v3155 = vmul.f32 %v608, %v3149
        %v3156 = vmul.f32 %v613, %v3149
        %v3157 = vmul.f32 %v618, %v3149
        %v3158 = vmul.f32 %v623, %v3149
        %v3159 = vmul.f32 %v628, %v3149
        %v3160 = vmul.f32 %v633, %v3149
        %v3161 = vmul.f32 %v638, %v3149
        %v3162 = vmul.f32 %v643, %v3149
        %v3163 = vmul.f32 %v648, %v3149
        %v3164 = vmul.f32 %v653, %v3149
        %v3165 = vmul.f32 %v658, %v3149
        %v3166 = vmul.f32 %v663, %v3149
        %v3167 = vmul.f32 %v668, %v3149
        %v3168 = vmul.f32 %v673, %v3149
        %v3169 = vmul.f32 %v678, %v3149
        %v3170 = vmul.f32 %v683, %v3149
        %v3171 = vmul.f32 %v688, %v3149
        %v3172 = vmul.f32 %v693, %v3149
        %v3173 = vmul.f32 %v698, %v3149
        %v3174 = vmul.f32 %v703, %v3149
        %v3175 = vmul.f32 %v708, %v3149
        %v3176 = vmul.f32 %v713, %v3149
        %v3177 = vmul.f32 %v718, %v3149
        %v3178 = vmul.f32 %v723, %v3149
        %v3179 = vmul.f32 %v728, %v3149
        %v3180 = vmul.f32 %v1939, %v3149
        %v3212 = vrot.slane %v3150, 6
        %v3213 = vrot.slane %v3151, 6
        %v3214 = vsel %vm1812, %v3212, %v3213
        %v3215 = vrot.slane %v3152, 6
        %v3216 = vsel %vm1812, %v3213, %v3215
        %v3217 = vrot.slane %v3153, 6
        %v3218 = vsel %vm1812, %v3215, %v3217
        %v3219 = vrot.slane %v3154, 6
        %v3220 = vsel %vm1812, %v3217, %v3219
        %v3221 = vrot.slane %v3155, 6
        %v3222 = vsel %vm1812, %v3219, %v3221
        %v3223 = vrot.slane %v3156, 6
        %v3224 = vsel %vm1812, %v3221, %v3223
        %v3225 = vrot.slane %v3157, 6
        %v3226 = vsel %vm1812, %v3223, %v3225
        %v3227 = vrot.slane %v3158, 6
        %v3228 = vsel %vm1812, %v3225, %v3227
        %v3229 = vrot.slane %v3159, 6
        %v3230 = vsel %vm1812, %v3227, %v3229
        %v3231 = vrot.slane %v3160, 6
        %v3232 = vsel %vm1812, %v3229, %v3231
        %v3233 = vrot.slane %v3161, 6
        %v3234 = vsel %vm1812, %v3231, %v3233
        %v3235 = vrot.slane %v3162, 6
        %v3236 = vsel %vm1812, %v3233, %v3235
        %v3237 = vrot.slane %v3163, 6
        %v3238 = vsel %vm1812, %v3235, %v3237
        %v3239 = vrot.slane %v3164, 6
        %v3240 = vsel %vm1812, %v3237, %v3239
        %v3241 = vrot.slane %v3165, 6
        %v3242 = vsel %vm1812, %v3239, %v3241
        %v3243 = vrot.slane %v3166, 6
        %v3244 = vsel %vm1812, %v3241, %v3243
        %v3245 = vrot.slane %v3167, 6
        %v3246 = vsel %vm1812, %v3243, %v3245
        %v3247 = vrot.slane %v3168, 6
        %v3248 = vsel %vm1812, %v3245, %v3247
        %v3249 = vrot.slane %v3169, 6
        %v3250 = vsel %vm1812, %v3247, %v3249
        %v3251 = vrot.slane %v3170, 6
        %v3252 = vsel %vm1812, %v3249, %v3251
        %v3253 = vrot.slane %v3171, 6
        %v3254 = vsel %vm1812, %v3251, %v3253
        %v3255 = vrot.slane %v3172, 6
        %v3256 = vsel %vm1812, %v3253, %v3255
        %v3257 = vrot.slane %v3173, 6
        %v3258 = vsel %vm1812, %v3255, %v3257
        %v3259 = vrot.slane %v3174, 6
        %v3260 = vsel %vm1812, %v3257, %v3259
        %v3261 = vrot.slane %v3175, 6
        %v3262 = vsel %vm1812, %v3259, %v3261
        %v3263 = vrot.slane %v3176, 6
        %v3264 = vsel %vm1812, %v3261, %v3263
        %v3265 = vrot.slane %v3177, 6
        %v3266 = vsel %vm1812, %v3263, %v3265
        %v3267 = vrot.slane %v3178, 6
        %v3268 = vsel %vm1812, %v3265, %v3267
        %v3269 = vrot.slane %v3179, 6
        %v3270 = vsel %vm1812, %v3267, %v3269
        %v3271 = vrot.slane %v3180, 6
        %v3272 = vsel %vm1812, %v3269, %v3271
        %v3304 = vadd.f32 %v3115, %v3214
        %v3305 = vadd.f32 %v3116, %v3216
        %v3306 = vadd.f32 %v3117, %v3218
        %v3307 = vadd.f32 %v3118, %v3220
        %v3308 = vadd.f32 %v3119, %v3222
        %v3309 = vadd.f32 %v3120, %v3224
        %v3310 = vadd.f32 %v3121, %v3226
        %v3311 = vadd.f32 %v3122, %v3228
        %v3312 = vadd.f32 %v3123, %v3230
        %v3313 = vadd.f32 %v3124, %v3232
        %v3314 = vadd.f32 %v3125, %v3234
        %v3315 = vadd.f32 %v3126, %v3236
        %v3316 = vadd.f32 %v3127, %v3238
        %v3317 = vadd.f32 %v3128, %v3240
        %v3318 = vadd.f32 %v3129, %v3242
        %v3319 = vadd.f32 %v3130, %v3244
        %v3320 = vadd.f32 %v3131, %v3246
        %v3321 = vadd.f32 %v3132, %v3248
        %v3322 = vadd.f32 %v3133, %v3250
        %v3323 = vadd.f32 %v3134, %v3252
        %v3324 = vadd.f32 %v3135, %v3254
        %v3325 = vadd.f32 %v3136, %v3256
        %v3326 = vadd.f32 %v3137, %v3258
        %v3327 = vadd.f32 %v3138, %v3260
        %v3328 = vadd.f32 %v3139, %v3262
        %v3329 = vadd.f32 %v3140, %v3264
        %v3330 = vadd.f32 %v3141, %v3266
        %v3331 = vadd.f32 %v3142, %v3268
        %v3332 = vadd.f32 %v3143, %v3270
        %v3333 = vadd.f32 %v3144, %v3272
        %v3334 = vadd.f32 %v3145, %v3271
        %v3335 = vld [vmem:[%s2] sm:$0x1]
        %v3337 = vlaneseq
        %v3338 = vshrl.u32 %v3337, 7
        %v3339 = vsub.s32 0, %v3338
        %v3340 = vrot.slane %v3335, %v3339
        %v3342 = vadd.f32 %v3304, %v3340
        %v3343 = vadd.f32 %v3305, %v3340
        %v3344 = vadd.f32 %v3306, %v3340
        %v3345 = vadd.f32 %v3307, %v3340
        %v3346 = vadd.f32 %v3308, %v3340
        %v3347 = vadd.f32 %v3309, %v3340
        %v3348 = vadd.f32 %v3310, %v3340
        %v3349 = vadd.f32 %v3311, %v3340
        %v3350 = vadd.f32 %v3312, %v3340
        %v3351 = vadd.f32 %v3313, %v3340
        %v3352 = vadd.f32 %v3314, %v3340
        %v3353 = vadd.f32 %v3315, %v3340
        %v3354 = vadd.f32 %v3316, %v3340
        %v3355 = vadd.f32 %v3317, %v3340
        %v3356 = vadd.f32 %v3318, %v3340
        %v3357 = vadd.f32 %v3319, %v3340
        %v3358 = vadd.f32 %v3320, %v3340
        %v3359 = vadd.f32 %v3321, %v3340
        %v3360 = vadd.f32 %v3322, %v3340
        %v3361 = vadd.f32 %v3323, %v3340
        %v3362 = vadd.f32 %v3324, %v3340
        %v3363 = vadd.f32 %v3325, %v3340
        %v3364 = vadd.f32 %v3326, %v3340
        %v3365 = vadd.f32 %v3327, %v3340
        %v3366 = vadd.f32 %v3328, %v3340
        %v3367 = vadd.f32 %v3329, %v3340
        %v3368 = vadd.f32 %v3330, %v3340
        %v3369 = vadd.f32 %v3331, %v3340
        %v3370 = vadd.f32 %v3332, %v3340
        %v3371 = vadd.f32 %v3333, %v3340
        %v3372 = vadd.f32 %v3334, %v3340
        %vm3373 = vcmp.ge.f32.partialorder %v3342, 0.0
        %vm3374 = vcmp.ge.f32.partialorder %v3343, 0.0
        %vm3375 = vcmp.ge.f32.partialorder %v3344, 0.0
        %vm3376 = vcmp.ge.f32.partialorder %v3345, 0.0
        %vm3377 = vcmp.ge.f32.partialorder %v3346, 0.0
        %vm3378 = vcmp.ge.f32.partialorder %v3347, 0.0
        %vm3379 = vcmp.ge.f32.partialorder %v3348, 0.0
        %vm3380 = vcmp.ge.f32.partialorder %v3349, 0.0
        %vm3381 = vcmp.ge.f32.partialorder %v3350, 0.0
        %vm3382 = vcmp.ge.f32.partialorder %v3351, 0.0
        %vm3383 = vcmp.ge.f32.partialorder %v3352, 0.0
        %vm3384 = vcmp.ge.f32.partialorder %v3353, 0.0
        %vm3385 = vcmp.ge.f32.partialorder %v3354, 0.0
        %vm3386 = vcmp.ge.f32.partialorder %v3355, 0.0
        %vm3387 = vcmp.ge.f32.partialorder %v3356, 0.0
        %vm3388 = vcmp.ge.f32.partialorder %v3357, 0.0
        %vm3389 = vcmp.ge.f32.partialorder %v3358, 0.0
        %vm3390 = vcmp.ge.f32.partialorder %v3359, 0.0
        %vm3391 = vcmp.ge.f32.partialorder %v3360, 0.0
        %vm3392 = vcmp.ge.f32.partialorder %v3361, 0.0
        %vm3393 = vcmp.ge.f32.partialorder %v3362, 0.0
        %vm3394 = vcmp.ge.f32.partialorder %v3363, 0.0
        %vm3395 = vcmp.ge.f32.partialorder %v3364, 0.0
        %vm3396 = vcmp.ge.f32.partialorder %v3365, 0.0
        %vm3397 = vcmp.ge.f32.partialorder %v3366, 0.0
        %vm3398 = vcmp.ge.f32.partialorder %v3367, 0.0
        %vm3399 = vcmp.ge.f32.partialorder %v3368, 0.0
        %vm3400 = vcmp.ge.f32.partialorder %v3369, 0.0
        %vm3401 = vcmp.ge.f32.partialorder %v3370, 0.0
        %vm3402 = vcmp.ge.f32.partialorder %v3371, 0.0
        %vm3403 = vcmp.ge.f32.partialorder %v3372, 0.0
        %v3404 = vmul.f32 %v3342, 0.2
        %v3405 = vmul.f32 %v3343, 0.2
        %v3406 = vmul.f32 %v3344, 0.2
        %v3407 = vmul.f32 %v3345, 0.2
        %v3408 = vmul.f32 %v3346, 0.2
        %v3409 = vmul.f32 %v3347, 0.2
        %v3410 = vmul.f32 %v3348, 0.2
        %v3411 = vmul.f32 %v3349, 0.2
        %v3412 = vmul.f32 %v3350, 0.2
        %v3413 = vmul.f32 %v3351, 0.2
        %v3414 = vmul.f32 %v3352, 0.2
        %v3415 = vmul.f32 %v3353, 0.2
        %v3416 = vmul.f32 %v3354, 0.2
        %v3417 = vmul.f32 %v3355, 0.2
        %v3418 = vmul.f32 %v3356, 0.2
        %v3419 = vmul.f32 %v3357, 0.2
        %v3420 = vmul.f32 %v3358, 0.2
        %v3421 = vmul.f32 %v3359, 0.2
        %v3422 = vmul.f32 %v3360, 0.2
        %v3423 = vmul.f32 %v3361, 0.2
        %v3424 = vmul.f32 %v3362, 0.2
        %v3425 = vmul.f32 %v3363, 0.2
        %v3426 = vmul.f32 %v3364, 0.2
        %v3427 = vmul.f32 %v3365, 0.2
        %v3428 = vmul.f32 %v3366, 0.2
        %v3429 = vmul.f32 %v3367, 0.2
        %v3430 = vmul.f32 %v3368, 0.2
        %v3431 = vmul.f32 %v3369, 0.2
        %v3432 = vmul.f32 %v3370, 0.2
        %v3433 = vmul.f32 %v3371, 0.2
        %v3434 = vmul.f32 %v3372, 0.2
        %v3435 = vsel %vm3373, %v3342, %v3404
        %v3436 = vsel %vm3374, %v3343, %v3405
        %v3437 = vsel %vm3375, %v3344, %v3406
        %v3438 = vsel %vm3376, %v3345, %v3407
        %v3439 = vsel %vm3377, %v3346, %v3408
        %v3440 = vsel %vm3378, %v3347, %v3409
        %v3441 = vsel %vm3379, %v3348, %v3410
        %v3442 = vsel %vm3380, %v3349, %v3411
        %v3443 = vsel %vm3381, %v3350, %v3412
        %v3444 = vsel %vm3382, %v3351, %v3413
        %v3445 = vsel %vm3383, %v3352, %v3414
        %v3446 = vsel %vm3384, %v3353, %v3415
        %v3447 = vsel %vm3385, %v3354, %v3416
        %v3448 = vsel %vm3386, %v3355, %v3417
        %v3449 = vsel %vm3387, %v3356, %v3418
        %v3450 = vsel %vm3388, %v3357, %v3419
        %v3451 = vsel %vm3389, %v3358, %v3420
        %v3452 = vsel %vm3390, %v3359, %v3421
        %v3453 = vsel %vm3391, %v3360, %v3422
        %v3454 = vsel %vm3392, %v3361, %v3423
        %v3455 = vsel %vm3393, %v3362, %v3424
        %v3456 = vsel %vm3394, %v3363, %v3425
        %v3457 = vsel %vm3395, %v3364, %v3426
        %v3458 = vsel %vm3396, %v3365, %v3427
        %v3459 = vsel %vm3397, %v3366, %v3428
        %v3460 = vsel %vm3398, %v3367, %v3429
        %v3461 = vsel %vm3399, %v3368, %v3430
        %v3462 = vsel %vm3400, %v3369, %v3431
        %v3463 = vsel %vm3401, %v3370, %v3432
        %v3464 = vsel %vm3402, %v3371, %v3433
        %v3465 = vsel %vm3403, %v3372, %v3434
        %vm3466 = vcmask 261120
        %3467 = vst.msk [vmem:[%s530] sm:$0xff] %vm3466, %v3435
        %3468 = vst.msk [vmem:[%s530 + $0x8] sm:$0xff] %vm3466, %v3436
        %3469 = vst.msk [vmem:[%s530 + $0x10] sm:$0xff] %vm3466, %v3437
        %3470 = vst.msk [vmem:[%s530 + $0x18] sm:$0xff] %vm3466, %v3438
        %3471 = vst.msk [vmem:[%s530 + $0x20] sm:$0xff] %vm3466, %v3439
        %3472 = vst.msk [vmem:[%s530 + $0x28] sm:$0xff] %vm3466, %v3440
        %3473 = vst.msk [vmem:[%s530 + $0x30] sm:$0xff] %vm3466, %v3441
        %3474 = vst.msk [vmem:[%s530 + $0x38] sm:$0xff] %vm3466, %v3442
        %3475 = vst.msk [vmem:[%s530 + $0x40] sm:$0xff] %vm3466, %v3443
        %3476 = vst.msk [vmem:[%s530 + $0x48] sm:$0xff] %vm3466, %v3444
        %3477 = vst.msk [vmem:[%s530 + $0x50] sm:$0xff] %vm3466, %v3445
        %3478 = vst.msk [vmem:[%s530 + $0x58] sm:$0xff] %vm3466, %v3446
        %3479 = vst.msk [vmem:[%s530 + $0x60] sm:$0xff] %vm3466, %v3447
        %3480 = vst.msk [vmem:[%s530 + $0x68] sm:$0xff] %vm3466, %v3448
        %3481 = vst.msk [vmem:[%s530 + $0x70] sm:$0xff] %vm3466, %v3449
        %3482 = vst.msk [vmem:[%s530 + $0x78] sm:$0xff] %vm3466, %v3450
        %3483 = vst.msk [vmem:[%s530 + $0x80] sm:$0xff] %vm3466, %v3451
        %3484 = vst.msk [vmem:[%s530 + $0x88] sm:$0xff] %vm3466, %v3452
        %3485 = vst.msk [vmem:[%s530 + $0x90] sm:$0xff] %vm3466, %v3453
        %3486 = vst.msk [vmem:[%s530 + $0x98] sm:$0xff] %vm3466, %v3454
        %3487 = vst.msk [vmem:[%s530 + $0xa0] sm:$0xff] %vm3466, %v3455
        %3488 = vst.msk [vmem:[%s530 + $0xa8] sm:$0xff] %vm3466, %v3456
        %3489 = vst.msk [vmem:[%s530 + $0xb0] sm:$0xff] %vm3466, %v3457
        %3490 = vst.msk [vmem:[%s530 + $0xb8] sm:$0xff] %vm3466, %v3458
        %3491 = vst.msk [vmem:[%s530 + $0xc0] sm:$0xff] %vm3466, %v3459
        %3492 = vst.msk [vmem:[%s530 + $0xc8] sm:$0xff] %vm3466, %v3460
        %3493 = vst.msk [vmem:[%s530 + $0xd0] sm:$0xff] %vm3466, %v3461
        %3494 = vst.msk [vmem:[%s530 + $0xd8] sm:$0xff] %vm3466, %v3462
        %3495 = vst.msk [vmem:[%s530 + $0xe0] sm:$0xff] %vm3466, %v3463
        %3496 = vst.msk [vmem:[%s530 + $0xe8] sm:$0xff] %vm3466, %v3464
        %vm3497 = vcmask 254976
        %3498 = vst.msk [vmem:[%s530 + $0xf0] sm:$0x3] %vm3497, %v3465
        %3499 = vst.msk [vmem:[#allocation2] sm:$0xff] %vm3466, 0.0
        %3500 = vst.msk [vmem:[#allocation2 + $0x8] sm:$0xff] %vm3466, 0.0
        %vm3501 = vcmask 257024
        %3502 = vst.msk [vmem:[#allocation2 + $0x10] sm:$0xf] %vm3501, 0.0
        %3503 = vst.msk [vmem:[#allocation2 + $0x14] sm:$0xff] %vm3466, %v3435
        %3504 = vst.msk [vmem:[#allocation2 + $0x1c] sm:$0xff] %vm3466, %v3436
        %3505 = vst.msk [vmem:[#allocation2 + $0x24] sm:$0xff] %vm3466, %v3437
        %3506 = vst.msk [vmem:[#allocation2 + $0x2c] sm:$0xff] %vm3466, %v3438
        %3507 = vst.msk [vmem:[#allocation2 + $0x34] sm:$0xff] %vm3466, %v3439
        %3508 = vst.msk [vmem:[#allocation2 + $0x3c] sm:$0xff] %vm3466, %v3440
        %3509 = vst.msk [vmem:[#allocation2 + $0x44] sm:$0xff] %vm3466, %v3441
        %3510 = vst.msk [vmem:[#allocation2 + $0x4c] sm:$0xff] %vm3466, %v3442
        %3511 = vst.msk [vmem:[#allocation2 + $0x54] sm:$0xff] %vm3466, %v3443
        %3512 = vst.msk [vmem:[#allocation2 + $0x5c] sm:$0xff] %vm3466, %v3444
        %3513 = vst.msk [vmem:[#allocation2 + $0x64] sm:$0xff] %vm3466, %v3445
        %3514 = vst.msk [vmem:[#allocation2 + $0x6c] sm:$0xff] %vm3466, %v3446
        %3515 = vst.msk [vmem:[#allocation2 + $0x74] sm:$0xff] %vm3466, %v3447
        %3516 = vst.msk [vmem:[#allocation2 + $0x7c] sm:$0xff] %vm3466, %v3448
        %3517 = vst.msk [vmem:[#allocation2 + $0x84] sm:$0xff] %vm3466, %v3449
        %3518 = vst.msk [vmem:[#allocation2 + $0x8c] sm:$0xff] %vm3466, %v3450
        %3519 = vst.msk [vmem:[#allocation2 + $0x94] sm:$0xff] %vm3466, %v3451
        %3520 = vst.msk [vmem:[#allocation2 + $0x9c] sm:$0xff] %vm3466, %v3452
        %3521 = vst.msk [vmem:[#allocation2 + $0xa4] sm:$0xff] %vm3466, %v3453
        %3522 = vst.msk [vmem:[#allocation2 + $0xac] sm:$0xff] %vm3466, %v3454
        %3523 = vst.msk [vmem:[#allocation2 + $0xb4] sm:$0xff] %vm3466, %v3455
        %3524 = vst.msk [vmem:[#allocation2 + $0xbc] sm:$0xff] %vm3466, %v3456
        %3525 = vst.msk [vmem:[#allocation2 + $0xc4] sm:$0xff] %vm3466, %v3457
        %3526 = vst.msk [vmem:[#allocation2 + $0xcc] sm:$0xff] %vm3466, %v3458
        %3527 = vst.msk [vmem:[#allocation2 + $0xd4] sm:$0xff] %vm3466, %v3459
        %3528 = vst.msk [vmem:[#allocation2 + $0xdc] sm:$0xff] %vm3466, %v3460
        %3529 = vst.msk [vmem:[#allocation2 + $0xe4] sm:$0xff] %vm3466, %v3461
        %3530 = vst.msk [vmem:[#allocation2 + $0xec] sm:$0xff] %vm3466, %v3462
        %3531 = vst.msk [vmem:[#allocation2 + $0xf4] sm:$0xff] %vm3466, %v3463
        %3532 = vst.msk [vmem:[#allocation2 + $0xfc] sm:$0xff] %vm3466, %v3464
        %3533 = vst.msk [vmem:[#allocation2 + $0x104] sm:$0x3] %vm3497, %v3465
        %3534 = vst.msk [vmem:[#allocation2 + $0x106] sm:$0xff] %vm3466, 0.0
        %3535 = vst.msk [vmem:[#allocation2 + $0x10e] sm:$0xff] %vm3466, 0.0
        %3536 = vst.msk [vmem:[#allocation2 + $0x116] sm:$0xf] %vm3501, 0.0
        %3537 = vst.msk [vmem:[#allocation6] sm:$0xff] %vm3466, 0.0
        %3538 = vst.msk [vmem:[#allocation6 + $0x8] sm:$0xff] %vm3466, 0.0
        %3539 = vst.msk [vmem:[#allocation6 + $0x10] sm:$0xff] %vm3466, 0.0
        %3540 = vst.msk [vmem:[#allocation6 + $0x18] sm:$0xff] %vm3466, 0.0
        %3541 = vst.msk [vmem:[#allocation6 + $0x20] sm:$0xff] %vm3466, 0.0
        %3542 = vst.msk [vmem:[#allocation6 + $0x28] sm:$0xff] %vm3466, 0.0
        %3543 = vst.msk [vmem:[#allocation6 + $0x30] sm:$0xff] %vm3466, 0.0
        %3544 = vst.msk [vmem:[#allocation6 + $0x38] sm:$0xff] %vm3466, 0.0
        %3545 = vst.msk [vmem:[#allocation6 + $0x40] sm:$0xff] %vm3466, 0.0
        %3546 = vst.msk [vmem:[#allocation6 + $0x48] sm:$0xff] %vm3466, 0.0
        %3547 = vst.msk [vmem:[#allocation6 + $0x50] sm:$0xff] %vm3466, 0.0
        %3548 = vst.msk [vmem:[#allocation6 + $0x58] sm:$0xff] %vm3466, 0.0
        %3549 = vst.msk [vmem:[#allocation6 + $0x60] sm:$0xff] %vm3466, 0.0
        %3550 = vst.msk [vmem:[#allocation6 + $0x68] sm:$0xff] %vm3466, 0.0
        %3551 = vst.msk [vmem:[#allocation6 + $0x70] sm:$0xff] %vm3466, 0.0
        %3552 = vst.msk [vmem:[#allocation6 + $0x78] sm:$0xff] %vm3466, 0.0
        %3553 = vst.msk [vmem:[#allocation6 + $0x80] sm:$0xff] %vm3466, 0.0
        %3554 = vst.msk [vmem:[#allocation6 + $0x88] sm:$0xff] %vm3466, 0.0
        %3555 = vst.msk [vmem:[#allocation6 + $0x90] sm:$0xff] %vm3466, 0.0
        %3556 = vst.msk [vmem:[#allocation6 + $0x98] sm:$0xff] %vm3466, 0.0
        %3557 = vst.msk [vmem:[#allocation6 + $0xa0] sm:$0xff] %vm3466, 0.0
        %3558 = vst.msk [vmem:[#allocation6 + $0xa8] sm:$0xff] %vm3466, 0.0
        %3559 = vst.msk [vmem:[#allocation6 + $0xb0] sm:$0xff] %vm3466, 0.0
        %3560 = vst.msk [vmem:[#allocation6 + $0xb8] sm:$0xff] %vm3466, 0.0
        %3561 = vst.msk [vmem:[#allocation6 + $0xc0] sm:$0xff] %vm3466, 0.0
        %3562 = vst.msk [vmem:[#allocation6 + $0xc8] sm:$0xff] %vm3466, 0.0
        %3563 = vst.msk [vmem:[#allocation6 + $0xd0] sm:$0xff] %vm3466, 0.0
        %3564 = vst.msk [vmem:[#allocation6 + $0xd8] sm:$0xff] %vm3466, 0.0
        %3565 = vst.msk [vmem:[#allocation6 + $0xe0] sm:$0xff] %vm3466, 0.0
        %3566 = vst.msk [vmem:[#allocation6 + $0xe8] sm:$0xff] %vm3466, 0.0
        %3567 = vst.msk [vmem:[#allocation6 + $0xf0] sm:$0x3] %vm3497, 0.0
        loop: start=0, step=1, limit=41
        $region65: #{forward.1} parent=63 // loop_pre_header
          _
        $region66: #{forward.1} parent=63 // loop_header
          %s3569 = sphi 0, %s3573
          %p3570 = scmp.ge.s32.totalorder %s3569, 41
        $region67: #{forward.1} parent=63 // loop_header_branch
          %3572 = sbr.rel (%p3570) target = $region71
        $region68: #{forward.1} parent=63 // loop_body
          %s3574 = scalar_lea.vmem [#allocation2], %s3569
          %v3575 = vld [vmem:[%s3574] sm:$0xff]
          %v3576 = vld [vmem:[%s3574 + $0x8] sm:$0xff]
          %v3577 = vld [vmem:[%s3574 + $0x10] sm:$0xff]
          %v3578 = vld [vmem:[%s3574 + $0x18] sm:$0xff]
          %v3579 = vld [vmem:[%s3574 + $0x20] sm:$0xff]
          %v3580 = vld [vmem:[%s3574 + $0x28] sm:$0xff]
          %v3581 = vld [vmem:[%s3574 + $0x30] sm:$0xff]
          %v3582 = vld [vmem:[%s3574 + $0x38] sm:$0xff]
          %v3583 = vld [vmem:[%s3574 + $0x40] sm:$0xff]
          %v3584 = vld [vmem:[%s3574 + $0x48] sm:$0xff]
          %v3585 = vld [vmem:[%s3574 + $0x50] sm:$0xff]
          %v3586 = vld [vmem:[%s3574 + $0x58] sm:$0xff]
          %v3587 = vld [vmem:[%s3574 + $0x60] sm:$0xff]
          %v3588 = vld [vmem:[%s3574 + $0x68] sm:$0xff]
          %v3589 = vld [vmem:[%s3574 + $0x70] sm:$0xff]
          %v3590 = vld [vmem:[%s3574 + $0x78] sm:$0xff]
          %v3591 = vld [vmem:[%s3574 + $0x80] sm:$0xff]
          %v3592 = vld [vmem:[%s3574 + $0x88] sm:$0xff]
          %v3593 = vld [vmem:[%s3574 + $0x90] sm:$0xff]
          %v3594 = vld [vmem:[%s3574 + $0x98] sm:$0xff]
          %v3595 = vld [vmem:[%s3574 + $0xa0] sm:$0xff]
          %v3596 = vld [vmem:[%s3574 + $0xa8] sm:$0xff]
          %v3597 = vld [vmem:[%s3574 + $0xb0] sm:$0xff]
          %v3598 = vld [vmem:[%s3574 + $0xb8] sm:$0xff]
          %v3599 = vld [vmem:[%s3574 + $0xc0] sm:$0xff]
          %v3600 = vld [vmem:[%s3574 + $0xc8] sm:$0xff]
          %v3601 = vld [vmem:[%s3574 + $0xd0] sm:$0xff]
          %v3602 = vld [vmem:[%s3574 + $0xd8] sm:$0xff]
          %v3603 = vld [vmem:[%s3574 + $0xe0] sm:$0xff]
          %v3604 = vld [vmem:[%s3574 + $0xe8] sm:$0xff]
          %v3605 = vld [vmem:[%s3574 + $0xf0] sm:$0x3]
          %v3606 = vpack.c.bf16 %v3576, %v3575
          %v3607 = vpack.c.bf16 %v3578, %v3577
          %v3608 = vpack.c.bf16 %v3580, %v3579
          %v3609 = vpack.c.bf16 %v3582, %v3581
          %v3610 = vpack.c.bf16 %v3584, %v3583
          %v3611 = vpack.c.bf16 %v3586, %v3585
          %v3612 = vpack.c.bf16 %v3588, %v3587
          %v3613 = vpack.c.bf16 %v3590, %v3589
          %v3614 = vpack.c.bf16 %v3592, %v3591
          %v3615 = vpack.c.bf16 %v3594, %v3593
          %v3616 = vpack.c.bf16 %v3596, %v3595
          %v3617 = vpack.c.bf16 %v3598, %v3597
          %v3618 = vpack.c.bf16 %v3600, %v3599
          %v3619 = vpack.c.bf16 %v3602, %v3601
          %v3620 = vpack.c.bf16 %v3604, %v3603
          %v3621 = vpack.c.bf16 %v3605, %v3605
          %v3622 = vld [vmem:[#allocation6] sm:$0xff]
          %v3623 = vld [vmem:[#allocation6 + $0x8] sm:$0xff]
          %v3624 = vld [vmem:[#allocation6 + $0x10] sm:$0xff]
          %v3625 = vld [vmem:[#allocation6 + $0x18] sm:$0xff]
          %v3626 = vld [vmem:[#allocation6 + $0x20] sm:$0xff]
          %v3627 = vld [vmem:[#allocation6 + $0x28] sm:$0xff]
          %v3628 = vld [vmem:[#allocation6 + $0x30] sm:$0xff]
          %v3629 = vld [vmem:[#allocation6 + $0x38] sm:$0xff]
          %v3630 = vld [vmem:[#allocation6 + $0x40] sm:$0xff]
          %v3631 = vld [vmem:[#allocation6 + $0x48] sm:$0xff]
          %v3632 = vld [vmem:[#allocation6 + $0x50] sm:$0xff]
          %v3633 = vld [vmem:[#allocation6 + $0x58] sm:$0xff]
          %v3634 = vld [vmem:[#allocation6 + $0x60] sm:$0xff]
          %v3635 = vld [vmem:[#allocation6 + $0x68] sm:$0xff]
          %v3636 = vld [vmem:[#allocation6 + $0x70] sm:$0xff]
          %v3637 = vld [vmem:[#allocation6 + $0x78] sm:$0xff]
          %v3638 = vld [vmem:[#allocation6 + $0x80] sm:$0xff]
          %v3639 = vld [vmem:[#allocation6 + $0x88] sm:$0xff]
          %v3640 = vld [vmem:[#allocation6 + $0x90] sm:$0xff]
          %v3641 = vld [vmem:[#allocation6 + $0x98] sm:$0xff]
          %v3642 = vld [vmem:[#allocation6 + $0xa0] sm:$0xff]
          %v3643 = vld [vmem:[#allocation6 + $0xa8] sm:$0xff]
          %v3644 = vld [vmem:[#allocation6 + $0xb0] sm:$0xff]
          %v3645 = vld [vmem:[#allocation6 + $0xb8] sm:$0xff]
          %v3646 = vld [vmem:[#allocation6 + $0xc0] sm:$0xff]
          %v3647 = vld [vmem:[#allocation6 + $0xc8] sm:$0xff]
          %v3648 = vld [vmem:[#allocation6 + $0xd0] sm:$0xff]
          %v3649 = vld [vmem:[#allocation6 + $0xd8] sm:$0xff]
          %v3650 = vld [vmem:[#allocation6 + $0xe0] sm:$0xff]
          %v3651 = vld [vmem:[#allocation6 + $0xe8] sm:$0xff]
          %v3652 = vld [vmem:[#allocation6 + $0xf0] sm:$0x3]
          %s3653 = smul.u32 %s3569, 4
          %s3654 = smul.addr %s3653, 4
          %s3655 = scalar_lea.vmem %s3, %s3654
          %v3656 = vld [vmem:[%s3655] sm:$0xf]
          %v3657 = vld [vmem:[%s3655 + $0x4] sm:$0xf]
          %v3658 = vld [vmem:[%s3655 + $0x8] sm:$0xf]
          %v3659 = vld [vmem:[%s3655 + $0xc] sm:$0xf]
          %v3664 = vunpack.c.l.b16 %v3656
          %v3665 = vunpack.c.l.b16 %v3657
          %v3666 = vunpack.c.l.b16 %v3658
          %v3667 = vunpack.c.l.b16 %v3659
          %v3668 = vpack.c.b16 %v3665, %v3664
          %v3669 = vpack.c.b16 %v3667, %v3666
          %v3673 = vsel %vm3466, %v3606, 0
          %v3676 = vsel %vm3466, %v3607, 0
          %v3679 = vsel %vm3466, %v3608, 0
          %v3682 = vsel %vm3466, %v3609, 0
          %v3685 = vsel %vm3466, %v3610, 0
          %v3688 = vsel %vm3466, %v3611, 0
          %v3691 = vsel %vm3466, %v3612, 0
          %v3694 = vsel %vm3466, %v3613, 0
          %v3697 = vsel %vm3466, %v3614, 0
          %v3700 = vsel %vm3466, %v3615, 0
          %v3703 = vsel %vm3466, %v3616, 0
          %v3706 = vsel %vm3466, %v3617, 0
          %v3709 = vsel %vm3466, %v3618, 0
          %v3712 = vsel %vm3466, %v3619, 0
          %v3715 = vsel %vm3466, %v3620, 0
          %v3718 = vsel %vm3466, %v3621, 0
          %3720 = vmatprep.subr.bf16.mxu0 0
          %3721 = vmatpush1.bf16.msra.mxu0 0
          %3722 = vmatprep.subr.bf16.mxu0 0
          %3723 = vmatpush1.bf16.msra.mxu0 0
          %3724 = vmatprep.subr.bf16.mxu0 0
          %3725 = vmatpush1.bf16.msra.mxu0 0
          %3726 = vmatprep.subr.bf16.mxu0 0
          %3727 = vmatpush1.bf16.msra.mxu0 0
          %3728 = vmatprep.subr.bf16.mxu0 0
          %3729 = vmatpush1.bf16.msra.mxu0 0
          %3730 = vmatprep.subr.bf16.mxu0 0
          %3731 = vmatpush1.bf16.msra.mxu0 0
          %3732 = vmatprep.subr.bf16.mxu0 0
          %3733 = vmatpush1.bf16.msra.mxu0 %v3669
          %3734 = vmatprep.subr.bf16.mxu0 0
          %3735 = vmatpush1.bf16.msra.mxu0 %v3668
          %3736 = vmatprep.subr.bf16.mxu0 0
          %3737 = vmatpush2.bf16.msra.mxu0 0
          %3738 = vmatprep.subr.bf16.mxu0 0
          %3739 = vmatpush2.bf16.msra.mxu0 0
          %3740 = vmatprep.subr.bf16.mxu0 0
          %3741 = vmatpush2.bf16.msra.mxu0 0
          %3742 = vmatprep.subr.bf16.mxu0 0
          %3743 = vmatpush2.bf16.msra.mxu0 0
          %3744 = vmatprep.subr.bf16.mxu0 0
          %3745 = vmatpush2.bf16.msra.mxu0 0
          %3746 = vmatprep.subr.bf16.mxu0 0
          %3747 = vmatpush2.bf16.msra.mxu0 0
          %3748 = vmatprep.subr.bf16.mxu0 0
          %3749 = vmatpush2.bf16.msra.mxu0 0
          %3750 = vmatprep.subr.bf16.mxu0 0
          %3751 = vmatpush2.bf16.msra.mxu0 0
          %3752 = vmatprep.mubr.bf16.mxu0 0
          %3753 = vmatmul.mubr.bf16.gmra.mxu0 %v3673
          %v3754 = vpop.f32.mrf.mxu0
          %v3755 = vadd.f32 0.0, %v3754
          %v3756 = vpop.f32.mrf.mxu0
          %v3757 = vpop.f32.mrf.mxu0
          %v3758 = vadd.f32 0.0, %v3757
          %v3759 = vpop.f32.mrf.mxu0
          %3760 = vmatprep.mubr.bf16.mxu0 0
          %3761 = vmatmul.mubr.bf16.gmra.mxu0 %v3676
          %v3762 = vpop.f32.mrf.mxu0
          %v3763 = vadd.f32 0.0, %v3762
          %v3764 = vpop.f32.mrf.mxu0
          %v3765 = vpop.f32.mrf.mxu0
          %v3766 = vadd.f32 0.0, %v3765
          %v3767 = vpop.f32.mrf.mxu0
          %3768 = vmatprep.mubr.bf16.mxu0 0
          %3769 = vmatmul.mubr.bf16.gmra.mxu0 %v3679
          %v3770 = vpop.f32.mrf.mxu0
          %v3771 = vadd.f32 0.0, %v3770
          %v3772 = vpop.f32.mrf.mxu0
          %v3773 = vpop.f32.mrf.mxu0
          %v3774 = vadd.f32 0.0, %v3773
          %v3775 = vpop.f32.mrf.mxu0
          %3776 = vmatprep.mubr.bf16.mxu0 0
          %3777 = vmatmul.mubr.bf16.gmra.mxu0 %v3682
          %v3778 = vpop.f32.mrf.mxu0
          %v3779 = vadd.f32 0.0, %v3778
          %v3780 = vpop.f32.mrf.mxu0
          %v3781 = vpop.f32.mrf.mxu0
          %v3782 = vadd.f32 0.0, %v3781
          %v3783 = vpop.f32.mrf.mxu0
          %3784 = vmatprep.mubr.bf16.mxu0 0
          %3785 = vmatmul.mubr.bf16.gmra.mxu0 %v3685
          %v3786 = vpop.f32.mrf.mxu0
          %v3787 = vadd.f32 0.0, %v3786
          %v3788 = vpop.f32.mrf.mxu0
          %v3789 = vpop.f32.mrf.mxu0
          %v3790 = vadd.f32 0.0, %v3789
          %v3791 = vpop.f32.mrf.mxu0
          %3792 = vmatprep.mubr.bf16.mxu0 0
          %3793 = vmatmul.mubr.bf16.gmra.mxu0 %v3688
          %v3794 = vpop.f32.mrf.mxu0
          %v3795 = vadd.f32 0.0, %v3794
          %v3796 = vpop.f32.mrf.mxu0
          %v3797 = vpop.f32.mrf.mxu0
          %v3798 = vadd.f32 0.0, %v3797
          %v3799 = vpop.f32.mrf.mxu0
          %3800 = vmatprep.mubr.bf16.mxu0 0
          %3801 = vmatmul.mubr.bf16.gmra.mxu0 %v3691
          %v3802 = vpop.f32.mrf.mxu0
          %v3803 = vadd.f32 0.0, %v3802
          %v3804 = vpop.f32.mrf.mxu0
          %v3805 = vpop.f32.mrf.mxu0
          %v3806 = vadd.f32 0.0, %v3805
          %v3807 = vpop.f32.mrf.mxu0
          %3808 = vmatprep.mubr.bf16.mxu0 0
          %3809 = vmatmul.mubr.bf16.gmra.mxu0 %v3694
          %v3810 = vpop.f32.mrf.mxu0
          %v3811 = vadd.f32 0.0, %v3810
          %v3812 = vpop.f32.mrf.mxu0
          %v3813 = vpop.f32.mrf.mxu0
          %v3814 = vadd.f32 0.0, %v3813
          %v3815 = vpop.f32.mrf.mxu0
          %3816 = vmatprep.mubr.bf16.mxu0 0
          %3817 = vmatmul.mubr.bf16.gmra.mxu0 %v3697
          %v3818 = vpop.f32.mrf.mxu0
          %v3819 = vadd.f32 0.0, %v3818
          %v3820 = vpop.f32.mrf.mxu0
          %v3821 = vpop.f32.mrf.mxu0
          %v3822 = vadd.f32 0.0, %v3821
          %v3823 = vpop.f32.mrf.mxu0
          %3824 = vmatprep.mubr.bf16.mxu0 0
          %3825 = vmatmul.mubr.bf16.gmra.mxu0 %v3700
          %v3826 = vpop.f32.mrf.mxu0
          %v3827 = vadd.f32 0.0, %v3826
          %v3828 = vpop.f32.mrf.mxu0
          %v3829 = vpop.f32.mrf.mxu0
          %v3830 = vadd.f32 0.0, %v3829
          %v3831 = vpop.f32.mrf.mxu0
          %3832 = vmatprep.mubr.bf16.mxu0 0
          %3833 = vmatmul.mubr.bf16.gmra.mxu0 %v3703
          %v3834 = vpop.f32.mrf.mxu0
          %v3835 = vadd.f32 0.0, %v3834
          %v3836 = vpop.f32.mrf.mxu0
          %v3837 = vpop.f32.mrf.mxu0
          %v3838 = vadd.f32 0.0, %v3837
          %v3839 = vpop.f32.mrf.mxu0
          %3840 = vmatprep.mubr.bf16.mxu0 0
          %3841 = vmatmul.mubr.bf16.gmra.mxu0 %v3706
          %v3842 = vpop.f32.mrf.mxu0
          %v3843 = vadd.f32 0.0, %v3842
          %v3844 = vpop.f32.mrf.mxu0
          %v3845 = vpop.f32.mrf.mxu0
          %v3846 = vadd.f32 0.0, %v3845
          %v3847 = vpop.f32.mrf.mxu0
          %3848 = vmatprep.mubr.bf16.mxu0 0
          %3849 = vmatmul.mubr.bf16.gmra.mxu0 %v3709
          %v3850 = vpop.f32.mrf.mxu0
          %v3851 = vadd.f32 0.0, %v3850
          %v3852 = vpop.f32.mrf.mxu0
          %v3853 = vpop.f32.mrf.mxu0
          %v3854 = vadd.f32 0.0, %v3853
          %v3855 = vpop.f32.mrf.mxu0
          %3856 = vmatprep.mubr.bf16.mxu0 0
          %3857 = vmatmul.mubr.bf16.gmra.mxu0 %v3712
          %v3858 = vpop.f32.mrf.mxu0
          %v3859 = vadd.f32 0.0, %v3858
          %v3860 = vpop.f32.mrf.mxu0
          %v3861 = vpop.f32.mrf.mxu0
          %v3862 = vadd.f32 0.0, %v3861
          %v3863 = vpop.f32.mrf.mxu0
          %3864 = vmatprep.mubr.bf16.mxu0 0
          %3865 = vmatmul.mubr.bf16.gmra.mxu0 %v3715
          %v3866 = vpop.f32.mrf.mxu0
          %v3867 = vadd.f32 0.0, %v3866
          %v3868 = vpop.f32.mrf.mxu0
          %v3869 = vpop.f32.mrf.mxu0
          %v3870 = vadd.f32 0.0, %v3869
          %v3871 = vpop.f32.mrf.mxu0
          %3872 = vmatprep.mubr.bf16.mxu0 0
          %3873 = vmatmul.mubr.bf16.gmra.mxu0 %v3718
          %v3874 = vpop.f32.mrf.mxu0
          %v3875 = vadd.f32 0.0, %v3874
          %v3876 = vpop.f32.mrf.mxu0
          %v3877 = vpop.f32.mrf.mxu0
          %v3878 = vpop.f32.mrf.mxu0
          %3879 = vdwg.mxu0
          %v3880 = vadd.f32 %v3622, %v3755
          %v3881 = vadd.f32 %v3623, %v3758
          %v3882 = vadd.f32 %v3624, %v3763
          %v3883 = vadd.f32 %v3625, %v3766
          %v3884 = vadd.f32 %v3626, %v3771
          %v3885 = vadd.f32 %v3627, %v3774
          %v3886 = vadd.f32 %v3628, %v3779
          %v3887 = vadd.f32 %v3629, %v3782
          %v3888 = vadd.f32 %v3630, %v3787
          %v3889 = vadd.f32 %v3631, %v3790
          %v3890 = vadd.f32 %v3632, %v3795
          %v3891 = vadd.f32 %v3633, %v3798
          %v3892 = vadd.f32 %v3634, %v3803
          %v3893 = vadd.f32 %v3635, %v3806
          %v3894 = vadd.f32 %v3636, %v3811
          %v3895 = vadd.f32 %v3637, %v3814
          %v3896 = vadd.f32 %v3638, %v3819
          %v3897 = vadd.f32 %v3639, %v3822
          %v3898 = vadd.f32 %v3640, %v3827
          %v3899 = vadd.f32 %v3641, %v3830
          %v3900 = vadd.f32 %v3642, %v3835
          %v3901 = vadd.f32 %v3643, %v3838
          %v3902 = vadd.f32 %v3644, %v3843
          %v3903 = vadd.f32 %v3645, %v3846
          %v3904 = vadd.f32 %v3646, %v3851
          %v3905 = vadd.f32 %v3647, %v3854
          %v3906 = vadd.f32 %v3648, %v3859
          %v3907 = vadd.f32 %v3649, %v3862
          %v3908 = vadd.f32 %v3650, %v3867
          %v3909 = vadd.f32 %v3651, %v3870
          %v3910 = vadd.f32 %v3652, %v3875
          %3911 = vst.msk [vmem:[#allocation6] sm:$0xff] %vm3466, %v3880
          %3912 = vst.msk [vmem:[#allocation6 + $0x8] sm:$0xff] %vm3466, %v3881
          %3913 = vst.msk [vmem:[#allocation6 + $0x10] sm:$0xff] %vm3466, %v3882
          %3914 = vst.msk [vmem:[#allocation6 + $0x18] sm:$0xff] %vm3466, %v3883
          %3915 = vst.msk [vmem:[#allocation6 + $0x20] sm:$0xff] %vm3466, %v3884
          %3916 = vst.msk [vmem:[#allocation6 + $0x28] sm:$0xff] %vm3466, %v3885
          %3917 = vst.msk [vmem:[#allocation6 + $0x30] sm:$0xff] %vm3466, %v3886
          %3918 = vst.msk [vmem:[#allocation6 + $0x38] sm:$0xff] %vm3466, %v3887
          %3919 = vst.msk [vmem:[#allocation6 + $0x40] sm:$0xff] %vm3466, %v3888
          %3920 = vst.msk [vmem:[#allocation6 + $0x48] sm:$0xff] %vm3466, %v3889
          %3921 = vst.msk [vmem:[#allocation6 + $0x50] sm:$0xff] %vm3466, %v3890
          %3922 = vst.msk [vmem:[#allocation6 + $0x58] sm:$0xff] %vm3466, %v3891
          %3923 = vst.msk [vmem:[#allocation6 + $0x60] sm:$0xff] %vm3466, %v3892
          %3924 = vst.msk [vmem:[#allocation6 + $0x68] sm:$0xff] %vm3466, %v3893
          %3925 = vst.msk [vmem:[#allocation6 + $0x70] sm:$0xff] %vm3466, %v3894
          %3926 = vst.msk [vmem:[#allocation6 + $0x78] sm:$0xff] %vm3466, %v3895
          %3927 = vst.msk [vmem:[#allocation6 + $0x80] sm:$0xff] %vm3466, %v3896
          %3928 = vst.msk [vmem:[#allocation6 + $0x88] sm:$0xff] %vm3466, %v3897
          %3929 = vst.msk [vmem:[#allocation6 + $0x90] sm:$0xff] %vm3466, %v3898
          %3930 = vst.msk [vmem:[#allocation6 + $0x98] sm:$0xff] %vm3466, %v3899
          %3931 = vst.msk [vmem:[#allocation6 + $0xa0] sm:$0xff] %vm3466, %v3900
          %3932 = vst.msk [vmem:[#allocation6 + $0xa8] sm:$0xff] %vm3466, %v3901
          %3933 = vst.msk [vmem:[#allocation6 + $0xb0] sm:$0xff] %vm3466, %v3902
          %3934 = vst.msk [vmem:[#allocation6 + $0xb8] sm:$0xff] %vm3466, %v3903
          %3935 = vst.msk [vmem:[#allocation6 + $0xc0] sm:$0xff] %vm3466, %v3904
          %3936 = vst.msk [vmem:[#allocation6 + $0xc8] sm:$0xff] %vm3466, %v3905
          %3937 = vst.msk [vmem:[#allocation6 + $0xd0] sm:$0xff] %vm3466, %v3906
          %3938 = vst.msk [vmem:[#allocation6 + $0xd8] sm:$0xff] %vm3466, %v3907
          %3939 = vst.msk [vmem:[#allocation6 + $0xe0] sm:$0xff] %vm3466, %v3908
          %3940 = vst.msk [vmem:[#allocation6 + $0xe8] sm:$0xff] %vm3466, %v3909
          %3941 = vst.msk [vmem:[#allocation6 + $0xf0] sm:$0x3] %vm3497, %v3910
        $region69: #{forward.1} parent=63 // loop_footer
          %s3573 = sadd.s32 1, %s3569
        $region70: #{forward.1} parent=63 // loop_footer_branch
          %3568 = sbr.rel target = $region66
        $region71: #{forward.1} parent=63 // loop_exit
          _
        %v3942 = vld [vmem:[#allocation6] sm:$0xff]
        %v3943 = vld [vmem:[#allocation6 + $0x8] sm:$0xff]
        %v3944 = vld [vmem:[#allocation6 + $0x10] sm:$0xff]
        %v3945 = vld [vmem:[#allocation6 + $0x18] sm:$0xff]
        %v3946 = vld [vmem:[#allocation6 + $0x20] sm:$0xff]
        %v3947 = vld [vmem:[#allocation6 + $0x28] sm:$0xff]
        %v3948 = vld [vmem:[#allocation6 + $0x30] sm:$0xff]
        %v3949 = vld [vmem:[#allocation6 + $0x38] sm:$0xff]
        %v3950 = vld [vmem:[#allocation6 + $0x40] sm:$0xff]
        %v3951 = vld [vmem:[#allocation6 + $0x48] sm:$0xff]
        %v3952 = vld [vmem:[#allocation6 + $0x50] sm:$0xff]
        %v3953 = vld [vmem:[#allocation6 + $0x58] sm:$0xff]
        %v3954 = vld [vmem:[#allocation6 + $0x60] sm:$0xff]
        %v3955 = vld [vmem:[#allocation6 + $0x68] sm:$0xff]
        %v3956 = vld [vmem:[#allocation6 + $0x70] sm:$0xff]
        %v3957 = vld [vmem:[#allocation6 + $0x78] sm:$0xff]
        %v3958 = vld [vmem:[#allocation6 + $0x80] sm:$0xff]
        %v3959 = vld [vmem:[#allocation6 + $0x88] sm:$0xff]
        %v3960 = vld [vmem:[#allocation6 + $0x90] sm:$0xff]
        %v3961 = vld [vmem:[#allocation6 + $0x98] sm:$0xff]
        %v3962 = vld [vmem:[#allocation6 + $0xa0] sm:$0xff]
        %v3963 = vld [vmem:[#allocation6 + $0xa8] sm:$0xff]
        %v3964 = vld [vmem:[#allocation6 + $0xb0] sm:$0xff]
        %v3965 = vld [vmem:[#allocation6 + $0xb8] sm:$0xff]
        %v3966 = vld [vmem:[#allocation6 + $0xc0] sm:$0xff]
        %v3967 = vld [vmem:[#allocation6 + $0xc8] sm:$0xff]
        %v3968 = vld [vmem:[#allocation6 + $0xd0] sm:$0xff]
        %v3969 = vld [vmem:[#allocation6 + $0xd8] sm:$0xff]
        %v3970 = vld [vmem:[#allocation6 + $0xe0] sm:$0xff]
        %v3971 = vld [vmem:[#allocation6 + $0xe8] sm:$0xff]
        %v3972 = vld [vmem:[#allocation6 + $0xf0] sm:$0x3]
        %v3973 = vlaneseq
        %v3974 = vshrl.u32 %v3973, 7
        %v3975 = vadd.s32 %v3974, 8
        %v3976 = vadd.s32 %v3974, 16
        %v3977 = vadd.s32 %v3974, 24
        %v3978 = vadd.s32 %v3974, 32
        %v3979 = vadd.s32 %v3974, 40
        %v3980 = vadd.s32 %v3974, 48
        %v3981 = vadd.s32 %v3974, 56
        %v3982 = vlaneseq
        %v3983 = vand.u32 %v3982, 127
        %v3984 = vadd.s32 %v3983, 128
        %v3985 = vmul.u32 %v3974, 4
        %v3986 = vmul.u32 %v3975, 4
        %v3987 = vmul.u32 %v3976, 4
        %v3988 = vmul.u32 %v3977, 4
        %v3989 = vmul.u32 %v3978, 4
        %v3990 = vmul.u32 %v3979, 4
        %v3991 = vmul.u32 %v3980, 4
        %v3992 = vmul.u32 %v3981, 4
        %vm3993 = vcmp.eq.s32.totalorder %v3983, %v3985
        %vm3994 = vcmp.eq.s32.totalorder %v3984, %v3985
        %vm3995 = vcmp.eq.s32.totalorder %v3983, %v3986
        %vm3996 = vcmp.eq.s32.totalorder %v3984, %v3986
        %vm3997 = vcmp.eq.s32.totalorder %v3983, %v3987
        %vm3998 = vcmp.eq.s32.totalorder %v3984, %v3987
        %vm3999 = vcmp.eq.s32.totalorder %v3983, %v3988
        %vm4000 = vcmp.eq.s32.totalorder %v3984, %v3988
        %vm4001 = vcmp.eq.s32.totalorder %v3983, %v3989
        %vm4002 = vcmp.eq.s32.totalorder %v3984, %v3989
        %vm4003 = vcmp.eq.s32.totalorder %v3983, %v3990
        %vm4004 = vcmp.eq.s32.totalorder %v3984, %v3990
        %vm4005 = vcmp.eq.s32.totalorder %v3983, %v3991
        %vm4006 = vcmp.eq.s32.totalorder %v3984, %v3991
        %vm4007 = vcmp.eq.s32.totalorder %v3983, %v3992
        %vm4008 = vcmp.eq.s32.totalorder %v3984, %v3992
        %v4009 = vsel %vm3993, 1, 0
        %v4010 = vsel %vm3994, 1, 0
        %v4011 = vsel %vm3995, 1, 0
        %v4012 = vsel %vm3996, 1, 0
        %v4013 = vsel %vm3997, 1, 0
        %v4014 = vsel %vm3998, 1, 0
        %v4015 = vsel %vm3999, 1, 0
        %v4016 = vsel %vm4000, 1, 0
        %v4017 = vsel %vm4001, 1, 0
        %v4018 = vsel %vm4002, 1, 0
        %v4019 = vsel %vm4003, 1, 0
        %v4020 = vsel %vm4004, 1, 0
        %v4021 = vsel %vm4005, 1, 0
        %v4022 = vsel %vm4006, 1, 0
        %v4023 = vsel %vm4007, 1, 0
        %v4024 = vsel %vm4008, 1, 0
        %v4025 = vcvt.s32.f32 %v4009
        %v4026 = vcvt.s32.f32 %v4010
        %v4027 = vcvt.s32.f32 %v4011
        %v4028 = vcvt.s32.f32 %v4012
        %v4029 = vcvt.s32.f32 %v4013
        %v4030 = vcvt.s32.f32 %v4014
        %v4031 = vcvt.s32.f32 %v4015
        %v4032 = vcvt.s32.f32 %v4016
        %v4033 = vcvt.s32.f32 %v4017
        %v4034 = vcvt.s32.f32 %v4018
        %v4035 = vcvt.s32.f32 %v4019
        %v4036 = vcvt.s32.f32 %v4020
        %v4037 = vcvt.s32.f32 %v4021
        %v4038 = vcvt.s32.f32 %v4022
        %v4039 = vcvt.s32.f32 %v4023
        %v4040 = vcvt.s32.f32 %v4024
        %v4041 = vld [vmem:[%s4] sm:$0x1]
        %v4043 = vlaneseq
        %v4044 = vshrl.u32 %v4043, 7
        %v4045 = vsub.s32 0, %v4044
        %v4046 = vrot.slane %v4041, %v4045
        %vm4048 = vcmask 932864
        %v4050 = vsel %vm4048, %v4026, 0
        %v4053 = vsel %vm4048, %v4028, 0
        %v4056 = vsel %vm4048, %v4030, 0
        %v4059 = vsel %vm4048, %v4032, 0
        %v4062 = vsel %vm4048, %v4034, 0
        %v4065 = vsel %vm4048, %v4036, 0
        %v4068 = vsel %vm4048, %v4038, 0
        %v4071 = vsel %vm4048, %v4040, 0
        %v4074 = vsel %vm1812, %v3972, 0
        %4076 = vmatprep.subr.mxu0 0.0
        %4077 = vmatpush1.msra.mxu0 %v3957
        %4078 = vmatprep.subr.mxu0 0.0
        %4079 = vmatpush1.msra.mxu0 %v3956
        %4080 = vmatprep.subr.mxu0 0.0
        %4081 = vmatpush1.msra.mxu0 %v3955
        %4082 = vmatprep.subr.mxu0 0.0
        %4083 = vmatpush1.msra.mxu0 %v3954
        %4084 = vmatprep.subr.mxu0 0.0
        %4085 = vmatpush1.msra.mxu0 %v3953
        %4086 = vmatprep.subr.mxu0 0.0
        %4087 = vmatpush1.msra.mxu0 %v3952
        %4088 = vmatprep.subr.mxu0 0.0
        %4089 = vmatpush1.msra.mxu0 %v3951
        %4090 = vmatprep.subr.mxu0 0.0
        %4091 = vmatpush1.msra.mxu0 %v3950
        %4092 = vmatprep.subr.mxu0 0.0
        %4093 = vmatpush1.msra.mxu0 %v3949
        %4094 = vmatprep.subr.mxu0 0.0
        %4095 = vmatpush1.msra.mxu0 %v3948
        %4096 = vmatprep.subr.mxu0 0.0
        %4097 = vmatpush1.msra.mxu0 %v3947
        %4098 = vmatprep.subr.mxu0 0.0
        %4099 = vmatpush1.msra.mxu0 %v3946
        %4100 = vmatprep.subr.mxu0 0.0
        %4101 = vmatpush1.msra.mxu0 %v3945
        %4102 = vmatprep.subr.mxu0 0.0
        %4103 = vmatpush1.msra.mxu0 %v3944
        %4104 = vmatprep.subr.mxu0 0.0
        %4105 = vmatpush1.msra.mxu0 %v3943
        %4106 = vmatprep.subr.mxu0 0.0
        %4107 = vmatpush1.msra.mxu0 %v3942
        %4108 = vmatprep.subr.mxu0 0.0
        %4109 = vmatpush2.msra.mxu0 0.0
        %4110 = vmatprep.subr.mxu0 0.0
        %4111 = vmatpush2.msra.mxu0 %v4074
        %4112 = vmatprep.subr.mxu0 0.0
        %4113 = vmatpush2.msra.mxu0 %v3971
        %4114 = vmatprep.subr.mxu0 0.0
        %4115 = vmatpush2.msra.mxu0 %v3970
        %4116 = vmatprep.subr.mxu0 0.0
        %4117 = vmatpush2.msra.mxu0 %v3969
        %4118 = vmatprep.subr.mxu0 0.0
        %4119 = vmatpush2.msra.mxu0 %v3968
        %4120 = vmatprep.subr.mxu0 0.0
        %4121 = vmatpush2.msra.mxu0 %v3967
        %4122 = vmatprep.subr.mxu0 0.0
        %4123 = vmatpush2.msra.mxu0 %v3966
        %4124 = vmatprep.subr.mxu0 0.0
        %4125 = vmatpush2.msra.mxu0 %v3965
        %4126 = vmatprep.subr.mxu0 0.0
        %4127 = vmatpush2.msra.mxu0 %v3964
        %4128 = vmatprep.subr.mxu0 0.0
        %4129 = vmatpush2.msra.mxu0 %v3963
        %4130 = vmatprep.subr.mxu0 0.0
        %4131 = vmatpush2.msra.mxu0 %v3962
        %4132 = vmatprep.subr.mxu0 0.0
        %4133 = vmatpush2.msra.mxu0 %v3961
        %4134 = vmatprep.subr.mxu0 0.0
        %4135 = vmatpush2.msra.mxu0 %v3960
        %4136 = vmatprep.subr.mxu0 0.0
        %4137 = vmatpush2.msra.mxu0 %v3959
        %4138 = vmatprep.subr.mxu0 0.0
        %4139 = vmatpush2.msra.mxu0 %v3958
        %4140 = vmatprep.mubr.f32.mxu0 %v4050
        %4141 = vmatmul.mubr.f32.gmra.mxu0 %v4025
        %v4142 = vpop.f32.mrf.mxu0
        %v4143 = vadd.f32 %v4046, %v4142
        %v4144 = vpop.f32.mrf.mxu0
        %4145 = vmatprep.mubr.f32.mxu0 %v4053
        %4146 = vmatmul.mubr.f32.gmra.mxu0 %v4027
        %v4147 = vpop.f32.mrf.mxu0
        %v4148 = vadd.f32 %v4046, %v4147
        %v4149 = vpop.f32.mrf.mxu0
        %4150 = vmatprep.mubr.f32.mxu0 %v4056
        %4151 = vmatmul.mubr.f32.gmra.mxu0 %v4029
        %v4152 = vpop.f32.mrf.mxu0
        %v4153 = vadd.f32 %v4046, %v4152
        %v4154 = vpop.f32.mrf.mxu0
        %4155 = vmatprep.mubr.f32.mxu0 %v4059
        %4156 = vmatmul.mubr.f32.gmra.mxu0 %v4031
        %v4157 = vpop.f32.mrf.mxu0
        %v4158 = vadd.f32 %v4046, %v4157
        %v4159 = vpop.f32.mrf.mxu0
        %4160 = vmatprep.mubr.f32.mxu0 %v4062
        %4161 = vmatmul.mubr.f32.gmra.mxu0 %v4033
        %v4162 = vpop.f32.mrf.mxu0
        %v4163 = vadd.f32 %v4046, %v4162
        %v4164 = vpop.f32.mrf.mxu0
        %4165 = vmatprep.mubr.f32.mxu0 %v4065
        %4166 = vmatmul.mubr.f32.gmra.mxu0 %v4035
        %v4167 = vpop.f32.mrf.mxu0
        %v4168 = vadd.f32 %v4046, %v4167
        %v4169 = vpop.f32.mrf.mxu0
        %4170 = vmatprep.mubr.f32.mxu0 %v4068
        %4171 = vmatmul.mubr.f32.gmra.mxu0 %v4037
        %v4172 = vpop.f32.mrf.mxu0
        %v4173 = vadd.f32 %v4046, %v4172
        %v4174 = vpop.f32.mrf.mxu0
        %4175 = vmatprep.mubr.f32.mxu0 %v4071
        %4176 = vmatmul.mubr.f32.gmra.mxu0 %v4039
        %v4177 = vpop.f32.mrf.mxu0
        %v4178 = vadd.f32 %v4046, %v4177
        %v4179 = vpop.f32.mrf.mxu0
        %4180 = vdwg.mxu0
        %vm4181 = vcmp.ge.f32.partialorder %v4143, 0.0
        %vm4182 = vcmp.ge.f32.partialorder %v4148, 0.0
        %vm4183 = vcmp.ge.f32.partialorder %v4153, 0.0
        %vm4184 = vcmp.ge.f32.partialorder %v4158, 0.0
        %vm4185 = vcmp.ge.f32.partialorder %v4163, 0.0
        %vm4186 = vcmp.ge.f32.partialorder %v4168, 0.0
        %vm4187 = vcmp.ge.f32.partialorder %v4173, 0.0
        %vm4188 = vcmp.ge.f32.partialorder %v4178, 0.0
        %v4189 = vmul.f32 %v4143, 0.2
        %v4190 = vmul.f32 %v4148, 0.2
        %v4191 = vmul.f32 %v4153, 0.2
        %v4192 = vmul.f32 %v4158, 0.2
        %v4193 = vmul.f32 %v4163, 0.2
        %v4194 = vmul.f32 %v4168, 0.2
        %v4195 = vmul.f32 %v4173, 0.2
        %v4196 = vmul.f32 %v4178, 0.2
        %v4197 = vsel %vm4181, %v4143, %v4189
        %v4198 = vsel %vm4182, %v4148, %v4190
        %v4199 = vsel %vm4183, %v4153, %v4191
        %v4200 = vsel %vm4184, %v4158, %v4192
        %v4201 = vsel %vm4185, %v4163, %v4193
        %v4202 = vsel %vm4186, %v4168, %v4194
        %v4203 = vsel %vm4187, %v4173, %v4195
        %v4204 = vsel %vm4188, %v4178, %v4196
        %4205 = vst.msk [vmem:[%s535] sm:$0xff] %vm3466, %v4197
        %4206 = vst.msk [vmem:[%s535 + $0x8] sm:$0xff] %vm3466, %v4198
        %4207 = vst.msk [vmem:[%s535 + $0x10] sm:$0xff] %vm3466, %v4199
        %4208 = vst.msk [vmem:[%s535 + $0x18] sm:$0xff] %vm3466, %v4200
        %4209 = vst.msk [vmem:[%s535 + $0x20] sm:$0xff] %vm3466, %v4201
        %4210 = vst.msk [vmem:[%s535 + $0x28] sm:$0xff] %vm3466, %v4202
        %4211 = vst.msk [vmem:[%s535 + $0x30] sm:$0xff] %vm3466, %v4203
        %vm4212 = vcmask 258048
        %4213 = vst.msk [vmem:[%s535 + $0x38] sm:$0x1f] %vm4212, %v4204
        %4214 = vst.msk [vmem:[#allocation3] sm:$0xff] %vm3466, 0.0
        %4215 = vst.msk [vmem:[#allocation3 + $0x8] sm:$0xff] %vm3466, 0.0
        %4216 = vst.msk [vmem:[#allocation3 + $0x10] sm:$0xf] %vm3501, 0.0
        %4217 = vst.msk [vmem:[#allocation3 + $0x14] sm:$0xff] %vm3466, %v4197
        %4218 = vst.msk [vmem:[#allocation3 + $0x1c] sm:$0xff] %vm3466, %v4198
        %4219 = vst.msk [vmem:[#allocation3 + $0x24] sm:$0xff] %vm3466, %v4199
        %4220 = vst.msk [vmem:[#allocation3 + $0x2c] sm:$0xff] %vm3466, %v4200
        %4221 = vst.msk [vmem:[#allocation3 + $0x34] sm:$0xff] %vm3466, %v4201
        %4222 = vst.msk [vmem:[#allocation3 + $0x3c] sm:$0xff] %vm3466, %v4202
        %4223 = vst.msk [vmem:[#allocation3 + $0x44] sm:$0xff] %vm3466, %v4203
        %4224 = vst.msk [vmem:[#allocation3 + $0x4c] sm:$0x1f] %vm4212, %v4204
        %4225 = vst.msk [vmem:[#allocation3 + $0x51] sm:$0xff] %vm3466, 0.0
        %4226 = vst.msk [vmem:[#allocation3 + $0x59] sm:$0xff] %vm3466, 0.0
        %4227 = vst.msk [vmem:[#allocation3 + $0x61] sm:$0xf] %vm3501, 0.0
        %4228 = vst.msk [vmem:[#allocation6] sm:$0xff] %vm3466, 0.0
        %4229 = vst.msk [vmem:[#allocation6 + $0x8] sm:$0xff] %vm3466, 0.0
        %4230 = vst.msk [vmem:[#allocation6 + $0x10] sm:$0xff] %vm3466, 0.0
        %4231 = vst.msk [vmem:[#allocation6 + $0x18] sm:$0xff] %vm3466, 0.0
        %4232 = vst.msk [vmem:[#allocation6 + $0x20] sm:$0xff] %vm3466, 0.0
        %4233 = vst.msk [vmem:[#allocation6 + $0x28] sm:$0xff] %vm3466, 0.0
        %4234 = vst.msk [vmem:[#allocation6 + $0x30] sm:$0xff] %vm3466, 0.0
        %4235 = vst.msk [vmem:[#allocation6 + $0x38] sm:$0x1f] %vm4212, 0.0
        loop: start=0, step=1, limit=41
        $region72: #{forward.1} parent=63 // loop_pre_header
          _
        $region73: #{forward.1} parent=63 // loop_header
          %s4237 = sphi 0, %s4241
          %p4238 = scmp.ge.s32.totalorder %s4237, 41
        $region74: #{forward.1} parent=63 // loop_header_branch
          %4240 = sbr.rel (%p4238) target = $region78
        $region75: #{forward.1} parent=63 // loop_body
          %s4242 = scalar_lea.vmem [#allocation3], %s4237
          %v4243 = vld [vmem:[%s4242] sm:$0xff]
          %v4244 = vld [vmem:[%s4242 + $0x8] sm:$0xff]
          %v4245 = vld [vmem:[%s4242 + $0x10] sm:$0xff]
          %v4246 = vld [vmem:[%s4242 + $0x18] sm:$0xff]
          %v4247 = vld [vmem:[%s4242 + $0x20] sm:$0xff]
          %v4248 = vld [vmem:[%s4242 + $0x28] sm:$0xff]
          %v4249 = vld [vmem:[%s4242 + $0x30] sm:$0xff]
          %v4250 = vld [vmem:[%s4242 + $0x38] sm:$0x1f]
          %v4251 = vpack.c.bf16 %v4244, %v4243
          %v4252 = vpack.c.bf16 %v4246, %v4245
          %v4253 = vpack.c.bf16 %v4248, %v4247
          %v4254 = vpack.c.bf16 %v4250, %v4249
          %v4255 = vld [vmem:[#allocation6] sm:$0xff]
          %v4256 = vld [vmem:[#allocation6 + $0x8] sm:$0xff]
          %v4257 = vld [vmem:[#allocation6 + $0x10] sm:$0xff]
          %v4258 = vld [vmem:[#allocation6 + $0x18] sm:$0xff]
          %v4259 = vld [vmem:[#allocation6 + $0x20] sm:$0xff]
          %v4260 = vld [vmem:[#allocation6 + $0x28] sm:$0xff]
          %v4261 = vld [vmem:[#allocation6 + $0x30] sm:$0xff]
          %v4262 = vld [vmem:[#allocation6 + $0x38] sm:$0x1f]
          %s4263 = smul.u32 %s4237, 4
          %s4264 = smul.addr %s4263, 4
          %s4265 = scalar_lea.vmem %s5, %s4264
          %v4266 = vld [vmem:[%s4265] sm:$0xf]
          %v4267 = vld [vmem:[%s4265 + $0x4] sm:$0xf]
          %v4268 = vld [vmem:[%s4265 + $0x8] sm:$0xf]
          %v4269 = vld [vmem:[%s4265 + $0xc] sm:$0xf]
          %v4274 = vunpack.c.l.b16 %v4266
          %v4275 = vunpack.c.l.b16 %v4267
          %v4276 = vunpack.c.l.b16 %v4268
          %v4277 = vunpack.c.l.b16 %v4269
          %v4278 = vpack.c.b16 %v4275, %v4274
          %v4279 = vpack.c.b16 %v4277, %v4276
          %v4283 = vsel %vm3466, %v4251, 0
          %v4286 = vsel %vm3466, %v4252, 0
          %v4289 = vsel %vm3466, %v4253, 0
          %v4292 = vsel %vm3466, %v4254, 0
          %4294 = vmatprep.subr.bf16.mxu0 0
          %4295 = vmatpush1.bf16.msra.mxu0 0
          %4296 = vmatprep.subr.bf16.mxu0 0
          %4297 = vmatpush1.bf16.msra.mxu0 0
          %4298 = vmatprep.subr.bf16.mxu0 0
          %4299 = vmatpush1.bf16.msra.mxu0 0
          %4300 = vmatprep.subr.bf16.mxu0 0
          %4301 = vmatpush1.bf16.msra.mxu0 0
          %4302 = vmatprep.subr.bf16.mxu0 0
          %4303 = vmatpush1.bf16.msra.mxu0 0
          %4304 = vmatprep.subr.bf16.mxu0 0
          %4305 = vmatpush1.bf16.msra.mxu0 0
          %4306 = vmatprep.subr.bf16.mxu0 0
          %4307 = vmatpush1.bf16.msra.mxu0 %v4279
          %4308 = vmatprep.subr.bf16.mxu0 0
          %4309 = vmatpush1.bf16.msra.mxu0 %v4278
          %4310 = vmatprep.subr.bf16.mxu0 0
          %4311 = vmatpush2.bf16.msra.mxu0 0
          %4312 = vmatprep.subr.bf16.mxu0 0
          %4313 = vmatpush2.bf16.msra.mxu0 0
          %4314 = vmatprep.subr.bf16.mxu0 0
          %4315 = vmatpush2.bf16.msra.mxu0 0
          %4316 = vmatprep.subr.bf16.mxu0 0
          %4317 = vmatpush2.bf16.msra.mxu0 0
          %4318 = vmatprep.subr.bf16.mxu0 0
          %4319 = vmatpush2.bf16.msra.mxu0 0
          %4320 = vmatprep.subr.bf16.mxu0 0
          %4321 = vmatpush2.bf16.msra.mxu0 0
          %4322 = vmatprep.subr.bf16.mxu0 0
          %4323 = vmatpush2.bf16.msra.mxu0 0
          %4324 = vmatprep.subr.bf16.mxu0 0
          %4325 = vmatpush2.bf16.msra.mxu0 0
          %4326 = vmatprep.mubr.bf16.mxu0 0
          %4327 = vmatmul.mubr.bf16.gmra.mxu0 %v4283
          %v4328 = vpop.f32.mrf.mxu0
          %v4329 = vadd.f32 0.0, %v4328
          %v4330 = vpop.f32.mrf.mxu0
          %v4331 = vpop.f32.mrf.mxu0
          %v4332 = vadd.f32 0.0, %v4331
          %v4333 = vpop.f32.mrf.mxu0
          %4334 = vmatprep.mubr.bf16.mxu0 0
          %4335 = vmatmul.mubr.bf16.gmra.mxu0 %v4286
          %v4336 = vpop.f32.mrf.mxu0
          %v4337 = vadd.f32 0.0, %v4336
          %v4338 = vpop.f32.mrf.mxu0
          %v4339 = vpop.f32.mrf.mxu0
          %v4340 = vadd.f32 0.0, %v4339
          %v4341 = vpop.f32.mrf.mxu0
          %4342 = vmatprep.mubr.bf16.mxu0 0
          %4343 = vmatmul.mubr.bf16.gmra.mxu0 %v4289
          %v4344 = vpop.f32.mrf.mxu0
          %v4345 = vadd.f32 0.0, %v4344
          %v4346 = vpop.f32.mrf.mxu0
          %v4347 = vpop.f32.mrf.mxu0
          %v4348 = vadd.f32 0.0, %v4347
          %v4349 = vpop.f32.mrf.mxu0
          %4350 = vmatprep.mubr.bf16.mxu0 0
          %4351 = vmatmul.mubr.bf16.gmra.mxu0 %v4292
          %v4352 = vpop.f32.mrf.mxu0
          %v4353 = vadd.f32 0.0, %v4352
          %v4354 = vpop.f32.mrf.mxu0
          %v4355 = vpop.f32.mrf.mxu0
          %v4356 = vadd.f32 0.0, %v4355
          %v4357 = vpop.f32.mrf.mxu0
          %4358 = vdwg.mxu0
          %v4359 = vadd.f32 %v4255, %v4329
          %v4360 = vadd.f32 %v4256, %v4332
          %v4361 = vadd.f32 %v4257, %v4337
          %v4362 = vadd.f32 %v4258, %v4340
          %v4363 = vadd.f32 %v4259, %v4345
          %v4364 = vadd.f32 %v4260, %v4348
          %v4365 = vadd.f32 %v4261, %v4353
          %v4366 = vadd.f32 %v4262, %v4356
          %4367 = vst.msk [vmem:[#allocation6] sm:$0xff] %vm3466, %v4359
          %4368 = vst.msk [vmem:[#allocation6 + $0x8] sm:$0xff] %vm3466, %v4360
          %4369 = vst.msk [vmem:[#allocation6 + $0x10] sm:$0xff] %vm3466, %v4361
          %4370 = vst.msk [vmem:[#allocation6 + $0x18] sm:$0xff] %vm3466, %v4362
          %4371 = vst.msk [vmem:[#allocation6 + $0x20] sm:$0xff] %vm3466, %v4363
          %4372 = vst.msk [vmem:[#allocation6 + $0x28] sm:$0xff] %vm3466, %v4364
          %4373 = vst.msk [vmem:[#allocation6 + $0x30] sm:$0xff] %vm3466, %v4365
          %4374 = vst.msk [vmem:[#allocation6 + $0x38] sm:$0x1f] %vm4212, %v4366
        $region76: #{forward.1} parent=63 // loop_footer
          %s4241 = sadd.s32 1, %s4237
        $region77: #{forward.1} parent=63 // loop_footer_branch
          %4236 = sbr.rel target = $region73
        $region78: #{forward.1} parent=63 // loop_exit
          _
        %v4375 = vld [vmem:[#allocation6] sm:$0xff]
        %v4376 = vld [vmem:[#allocation6 + $0x8] sm:$0xff]
        %v4377 = vld [vmem:[#allocation6 + $0x10] sm:$0xff]
        %v4378 = vld [vmem:[#allocation6 + $0x18] sm:$0xff]
        %v4379 = vld [vmem:[#allocation6 + $0x20] sm:$0xff]
        %v4380 = vld [vmem:[#allocation6 + $0x28] sm:$0xff]
        %v4381 = vld [vmem:[#allocation6 + $0x30] sm:$0xff]
        %v4382 = vld [vmem:[#allocation6 + $0x38] sm:$0x1f]
        %v4383 = vld [vmem:[%s6] sm:$0x1]
        %v4385 = vlaneseq
        %v4386 = vshrl.u32 %v4385, 7
        %v4387 = vsub.s32 0, %v4386
        %v4388 = vrot.slane %v4383, %v4387
        %vm4390 = vcmask 498688
        %v4392 = vsel %vm4390, %v4025, 0
        %v4395 = vsel %vm4390, %v4027, 0
        %v4398 = vsel %vm1242, %v4382, 0
        %4400 = vmatprep.subr.mxu0 0.0
        %4401 = vmatpush1.msra.mxu0 0.0
        %4402 = vmatprep.subr.mxu0 0.0
        %4403 = vmatpush1.msra.mxu0 0.0
        %4404 = vmatprep.subr.mxu0 0.0
        %4405 = vmatpush1.msra.mxu0 0.0
        %4406 = vmatprep.subr.mxu0 0.0
        %4407 = vmatpush1.msra.mxu0 0.0
        %4408 = vmatprep.subr.mxu0 0.0
        %4409 = vmatpush1.msra.mxu0 0.0
        %4410 = vmatprep.subr.mxu0 0.0
        %4411 = vmatpush1.msra.mxu0 0.0
        %4412 = vmatprep.subr.mxu0 0.0
        %4413 = vmatpush1.msra.mxu0 0.0
        %4414 = vmatprep.subr.mxu0 0.0
        %4415 = vmatpush1.msra.mxu0 0.0
        %4416 = vmatprep.subr.mxu0 0.0
        %4417 = vmatpush1.msra.mxu0 %v4398
        %4418 = vmatprep.subr.mxu0 0.0
        %4419 = vmatpush1.msra.mxu0 %v4381
        %4420 = vmatprep.subr.mxu0 0.0
        %4421 = vmatpush1.msra.mxu0 %v4380
        %4422 = vmatprep.subr.mxu0 0.0
        %4423 = vmatpush1.msra.mxu0 %v4379
        %4424 = vmatprep.subr.mxu0 0.0
        %4425 = vmatpush1.msra.mxu0 %v4378
        %4426 = vmatprep.subr.mxu0 0.0
        %4427 = vmatpush1.msra.mxu0 %v4377
        %4428 = vmatprep.subr.mxu0 0.0
        %4429 = vmatpush1.msra.mxu0 %v4376
        %4430 = vmatprep.subr.mxu0 0.0
        %4431 = vmatpush1.msra.mxu0 %v4375
        %4432 = vmatprep.subr.mxu0 0.0
        %4433 = vmatpush2.msra.mxu0 0.0
        %4434 = vmatprep.subr.mxu0 0.0
        %4435 = vmatpush2.msra.mxu0 0.0
        %4436 = vmatprep.subr.mxu0 0.0
        %4437 = vmatpush2.msra.mxu0 0.0
        %4438 = vmatprep.subr.mxu0 0.0
        %4439 = vmatpush2.msra.mxu0 0.0
        %4440 = vmatprep.subr.mxu0 0.0
        %4441 = vmatpush2.msra.mxu0 0.0
        %4442 = vmatprep.subr.mxu0 0.0
        %4443 = vmatpush2.msra.mxu0 0.0
        %4444 = vmatprep.subr.mxu0 0.0
        %4445 = vmatpush2.msra.mxu0 0.0
        %4446 = vmatprep.subr.mxu0 0.0
        %4447 = vmatpush2.msra.mxu0 0.0
        %4448 = vmatprep.subr.mxu0 0.0
        %4449 = vmatpush2.msra.mxu0 0.0
        %4450 = vmatprep.subr.mxu0 0.0
        %4451 = vmatpush2.msra.mxu0 0.0
        %4452 = vmatprep.subr.mxu0 0.0
        %4453 = vmatpush2.msra.mxu0 0.0
        %4454 = vmatprep.subr.mxu0 0.0
        %4455 = vmatpush2.msra.mxu0 0.0
        %4456 = vmatprep.subr.mxu0 0.0
        %4457 = vmatpush2.msra.mxu0 0.0
        %4458 = vmatprep.subr.mxu0 0.0
        %4459 = vmatpush2.msra.mxu0 0.0
        %4460 = vmatprep.subr.mxu0 0.0
        %4461 = vmatpush2.msra.mxu0 0.0
        %4462 = vmatprep.subr.mxu0 0.0
        %4463 = vmatpush2.msra.mxu0 0.0
        %4464 = vmatprep.mubr.f32.mxu0 0.0
        %4465 = vmatmul.mubr.f32.gmra.mxu0 %v4392
        %v4466 = vpop.f32.mrf.mxu0
        %v4467 = vadd.f32 %v4388, %v4466
        %v4468 = vpop.f32.mrf.mxu0
        %4469 = vmatprep.mubr.f32.mxu0 0.0
        %4470 = vmatmul.mubr.f32.gmra.mxu0 %v4395
        %v4471 = vpop.f32.mrf.mxu0
        %v4472 = vadd.f32 %v4388, %v4471
        %v4473 = vpop.f32.mrf.mxu0
        %4474 = vdwg.mxu0
        %vm4475 = vcmp.ge.f32.partialorder %v4467, 0.0
        %vm4476 = vcmp.ge.f32.partialorder %v4472, 0.0
        %v4477 = vmul.f32 %v4467, 0.2
        %v4478 = vmul.f32 %v4472, 0.2
        %v4479 = vsel %vm4475, %v4467, %v4477
        %v4480 = vsel %vm4476, %v4472, %v4478
        %4481 = vst.msk [vmem:[%s507] sm:$0xff] %vm3466, %v4479
        %4482 = vst.msk [vmem:[%s507 + $0x8] sm:$0xff] %vm3466, %v4480
        %4483 = vst.msk [vmem:[#allocation4] sm:$0xff] %vm3466, 0.0
        %4484 = vst.msk [vmem:[#allocation4 + $0x8] sm:$0xff] %vm3466, 0.0
        %4485 = vst.msk [vmem:[#allocation4 + $0x10] sm:$0xf] %vm3501, 0.0
        %4486 = vst.msk [vmem:[#allocation4 + $0x14] sm:$0xff] %vm3466, %v4479
        %4487 = vst.msk [vmem:[#allocation4 + $0x1c] sm:$0xff] %vm3466, %v4480
        %4488 = vst.msk [vmem:[#allocation4 + $0x24] sm:$0xff] %vm3466, 0.0
        %4489 = vst.msk [vmem:[#allocation4 + $0x2c] sm:$0xff] %vm3466, 0.0
        %4490 = vst.msk [vmem:[#allocation4 + $0x34] sm:$0xf] %vm3501, 0.0
        %4491 = vst.msk [vmem:[#allocation6] sm:$0xff] %vm3466, 0.0
        %4492 = vst.msk [vmem:[#allocation6 + $0x8] sm:$0xff] %vm3466, 0.0
        loop: start=0, step=1, limit=41
        $region79: #{forward.1} parent=63 // loop_pre_header
          _
        $region80: #{forward.1} parent=63 // loop_header
          %s4494 = sphi 0, %s4498
          %p4495 = scmp.ge.s32.totalorder %s4494, 41
        $region81: #{forward.1} parent=63 // loop_header_branch
          %4497 = sbr.rel (%p4495) target = $region85
        $region82: #{forward.1} parent=63 // loop_body
          %s4499 = scalar_lea.vmem [#allocation4], %s4494
          %v4500 = vld [vmem:[%s4499] sm:$0xff]
          %v4501 = vld [vmem:[%s4499 + $0x8] sm:$0xff]
          %v4502 = vpack.c.bf16 %v4501, %v4500
          %v4503 = vld [vmem:[#allocation6] sm:$0xff]
          %v4504 = vld [vmem:[#allocation6 + $0x8] sm:$0xff]
          %s4505 = smul.u32 %s4494, 4
          %s4506 = smul.addr %s4505, 4
          %s4507 = scalar_lea.vmem %s7, %s4506
          %v4508 = vld [vmem:[%s4507] sm:$0xf]
          %v4509 = vld [vmem:[%s4507 + $0x4] sm:$0xf]
          %v4510 = vld [vmem:[%s4507 + $0x8] sm:$0xf]
          %v4511 = vld [vmem:[%s4507 + $0xc] sm:$0xf]
          %v4516 = vunpack.c.l.b16 %v4508
          %v4517 = vunpack.c.l.b16 %v4509
          %v4518 = vunpack.c.l.b16 %v4510
          %v4519 = vunpack.c.l.b16 %v4511
          %v4520 = vpack.c.b16 %v4517, %v4516
          %v4521 = vpack.c.b16 %v4519, %v4518
          %v4525 = vsel %vm3466, %v4502, 0
          %4527 = vmatprep.subr.bf16.mxu0 0
          %4528 = vmatpush1.bf16.msra.mxu0 0
          %4529 = vmatprep.subr.bf16.mxu0 0
          %4530 = vmatpush1.bf16.msra.mxu0 0
          %4531 = vmatprep.subr.bf16.mxu0 0
          %4532 = vmatpush1.bf16.msra.mxu0 0
          %4533 = vmatprep.subr.bf16.mxu0 0
          %4534 = vmatpush1.bf16.msra.mxu0 0
          %4535 = vmatprep.subr.bf16.mxu0 0
          %4536 = vmatpush1.bf16.msra.mxu0 0
          %4537 = vmatprep.subr.bf16.mxu0 0
          %4538 = vmatpush1.bf16.msra.mxu0 0
          %4539 = vmatprep.subr.bf16.mxu0 0
          %4540 = vmatpush1.bf16.msra.mxu0 %v4521
          %4541 = vmatprep.subr.bf16.mxu0 0
          %4542 = vmatpush1.bf16.msra.mxu0 %v4520
          %4543 = vmatprep.subr.bf16.mxu0 0
          %4544 = vmatpush2.bf16.msra.mxu0 0
          %4545 = vmatprep.subr.bf16.mxu0 0
          %4546 = vmatpush2.bf16.msra.mxu0 0
          %4547 = vmatprep.subr.bf16.mxu0 0
          %4548 = vmatpush2.bf16.msra.mxu0 0
          %4549 = vmatprep.subr.bf16.mxu0 0
          %4550 = vmatpush2.bf16.msra.mxu0 0
          %4551 = vmatprep.subr.bf16.mxu0 0
          %4552 = vmatpush2.bf16.msra.mxu0 0
          %4553 = vmatprep.subr.bf16.mxu0 0
          %4554 = vmatpush2.bf16.msra.mxu0 0
          %4555 = vmatprep.subr.bf16.mxu0 0
          %4556 = vmatpush2.bf16.msra.mxu0 0
          %4557 = vmatprep.subr.bf16.mxu0 0
          %4558 = vmatpush2.bf16.msra.mxu0 0
          %4559 = vmatprep.mubr.bf16.mxu0 0
          %4560 = vmatmul.mubr.bf16.gmra.mxu0 %v4525
          %v4561 = vpop.f32.mrf.mxu0
          %v4562 = vadd.f32 0.0, %v4561
          %v4563 = vpop.f32.mrf.mxu0
          %v4564 = vpop.f32.mrf.mxu0
          %v4565 = vadd.f32 0.0, %v4564
          %v4566 = vpop.f32.mrf.mxu0
          %4567 = vdwg.mxu0
          %v4568 = vadd.f32 %v4503, %v4562
          %v4569 = vadd.f32 %v4504, %v4565
          %4570 = vst.msk [vmem:[#allocation6] sm:$0xff] %vm3466, %v4568
          %4571 = vst.msk [vmem:[#allocation6 + $0x8] sm:$0xff] %vm3466, %v4569
        $region83: #{forward.1} parent=63 // loop_footer
          %s4498 = sadd.s32 1, %s4494
        $region84: #{forward.1} parent=63 // loop_footer_branch
          %4493 = sbr.rel target = $region80
        $region85: #{forward.1} parent=63 // loop_exit
          _
        %v4572 = vld [vmem:[#allocation6] sm:$0xff]
        %v4573 = vld [vmem:[#allocation6 + $0x8] sm:$0xff]
        %v4574 = vld [vmem:[%s8] sm:$0x1]
        %v4576 = vlaneseq
        %v4577 = vshrl.u32 %v4576, 7
        %v4578 = vsub.s32 0, %v4577
        %v4579 = vrot.slane %v4574, %v4578
        %vm4581 = vcmask 130048
        %v4582 = vsel %vm4581, %v4025, 0
        %4584 = vmatprep.subr.mxu0 0.0
        %4585 = vmatpush1.msra.mxu0 0.0
        %4586 = vmatprep.subr.mxu0 0.0
        %4587 = vmatpush1.msra.mxu0 0.0
        %4588 = vmatprep.subr.mxu0 0.0
        %4589 = vmatpush1.msra.mxu0 0.0
        %4590 = vmatprep.subr.mxu0 0.0
        %4591 = vmatpush1.msra.mxu0 0.0
        %4592 = vmatprep.subr.mxu0 0.0
        %4593 = vmatpush1.msra.mxu0 0.0
        %4594 = vmatprep.subr.mxu0 0.0
        %4595 = vmatpush1.msra.mxu0 0.0
        %4596 = vmatprep.subr.mxu0 0.0
        %4597 = vmatpush1.msra.mxu0 0.0
        %4598 = vmatprep.subr.mxu0 0.0
        %4599 = vmatpush1.msra.mxu0 0.0
        %4600 = vmatprep.subr.mxu0 0.0
        %4601 = vmatpush1.msra.mxu0 0.0
        %4602 = vmatprep.subr.mxu0 0.0
        %4603 = vmatpush1.msra.mxu0 0.0
        %4604 = vmatprep.subr.mxu0 0.0
        %4605 = vmatpush1.msra.mxu0 0.0
        %4606 = vmatprep.subr.mxu0 0.0
        %4607 = vmatpush1.msra.mxu0 0.0
        %4608 = vmatprep.subr.mxu0 0.0
        %4609 = vmatpush1.msra.mxu0 0.0
        %4610 = vmatprep.subr.mxu0 0.0
        %4611 = vmatpush1.msra.mxu0 0.0
        %4612 = vmatprep.subr.mxu0 0.0
        %4613 = vmatpush1.msra.mxu0 %v4573
        %4614 = vmatprep.subr.mxu0 0.0
        %4615 = vmatpush1.msra.mxu0 %v4572
        %4616 = vmatprep.subr.mxu0 0.0
        %4617 = vmatpush2.msra.mxu0 0.0
        %4618 = vmatprep.subr.mxu0 0.0
        %4619 = vmatpush2.msra.mxu0 0.0
        %4620 = vmatprep.subr.mxu0 0.0
        %4621 = vmatpush2.msra.mxu0 0.0
        %4622 = vmatprep.subr.mxu0 0.0
        %4623 = vmatpush2.msra.mxu0 0.0
        %4624 = vmatprep.subr.mxu0 0.0
        %4625 = vmatpush2.msra.mxu0 0.0
        %4626 = vmatprep.subr.mxu0 0.0
        %4627 = vmatpush2.msra.mxu0 0.0
        %4628 = vmatprep.subr.mxu0 0.0
        %4629 = vmatpush2.msra.mxu0 0.0
        %4630 = vmatprep.subr.mxu0 0.0
        %4631 = vmatpush2.msra.mxu0 0.0
        %4632 = vmatprep.subr.mxu0 0.0
        %4633 = vmatpush2.msra.mxu0 0.0
        %4634 = vmatprep.subr.mxu0 0.0
        %4635 = vmatpush2.msra.mxu0 0.0
        %4636 = vmatprep.subr.mxu0 0.0
        %4637 = vmatpush2.msra.mxu0 0.0
        %4638 = vmatprep.subr.mxu0 0.0
        %4639 = vmatpush2.msra.mxu0 0.0
        %4640 = vmatprep.subr.mxu0 0.0
        %4641 = vmatpush2.msra.mxu0 0.0
        %4642 = vmatprep.subr.mxu0 0.0
        %4643 = vmatpush2.msra.mxu0 0.0
        %4644 = vmatprep.subr.mxu0 0.0
        %4645 = vmatpush2.msra.mxu0 0.0
        %4646 = vmatprep.subr.mxu0 0.0
        %4647 = vmatpush2.msra.mxu0 0.0
        %4648 = vmatprep.mubr.f32.mxu0 0.0
        %4649 = vmatmul.mubr.f32.gmra.mxu0 %v4582
        %v4650 = vpop.f32.mrf.mxu0
        %v4651 = vadd.f32 %v4579, %v4650
        %v4652 = vpop.f32.mrf.mxu0
        %4653 = vdwg.mxu0
        %vm4654 = vcmp.ge.f32.partialorder %v4651, 0.0
        %v4655 = vmul.f32 %v4651, 0.2
        %v4656 = vsel %vm4654, %v4651, %v4655
        %4657 = vst.msk [vmem:[%s514] sm:$0xf] %vm3501, %v4656
        %vm4658 = vcmask 253952
        %4659 = vst.msk [vmem:[#allocation5] sm:$0x1] %vm4658, 0.0
        %4660 = vst.msk [vmem:[#allocation5 + $0x1] sm:$0xf] %vm3501, %v4656
        %4661 = vst.msk [vmem:[#allocation5 + $0x5] sm:$0x1] %vm4658, 0.0
        %v4662 = vld [vmem:[#allocation5] sm:$0x3f]
        %v4663 = vld [vmem:[%s9] sm:$0x7]
        %v4664 = vlaneseq
        %v4665 = vshrl.u32 %v4664, 7
        %v4666 = vsub.s32 0, %v4665
        %v4667 = vrot.slane %v4663, %v4666
        %v4668 = vmul.f32 %v4662, %v4667
        %v4669 = vadd.f32 %v4668, 0.0
        %v4670 = vlaneseq
        %v4671 = vshrl.u32 %v4670, 7
        %v4672 = vsub.s32 1, %v4671
        %v4673 = vrot.slane %v4663, %v4672
        %v4674 = vmul.f32 %v4662, %v4673
        %v4676 = vrot.slane %v4674, 1
        %v4678 = vadd.f32 %v4669, %v4676
        %v4679 = vlaneseq
        %v4680 = vshrl.u32 %v4679, 7
        %v4681 = vsub.s32 2, %v4680
        %v4682 = vrot.slane %v4663, %v4681
        %v4683 = vmul.f32 %v4662, %v4682
        %v4685 = vrot.slane %v4683, 2
        %v4687 = vadd.f32 %v4678, %v4685
        %v4688 = vsel %vm3501, %v4687, 0.0
        %4689 = vadd.xlane.f32.xlu0 %v4688
        %v4690 = vpop.xlane.xlu0 %4689
        %v4691 = vld [vmem:[#allocation7] sm:$0x1]
        %v4693 = vlaneseq
        %v4694 = vshrl.u32 %v4693, 7
        %v4695 = vsub.s32 0, %v4694
        %v4696 = vrot.slane %v4691, %v4695
        %v4698 = vadd.f32 %v4690, %v4696
        %vm4699 = vcmp.ge.f32.partialorder %v4698, 0.0
        %v4700 = vmul.f32 %v4698, 0.2
        %v4701 = vsel %vm4699, %v4698, %v4700
        %vm4702 = vcmask 3072
        %4703 = vst.msk [vmem:[%s539] sm:$0xf] %vm4702, %v4701
        %p4704 = scmp.lt.s32.totalorder %s35, 1
        %s4705 = scalar_select %p4704, %s35, 1
        %s4706 = smul.addr %s4705, 31
        %s4707 = smul.addr %s4706, 8
        %s4708 = scalar_lea.vmem %s11, %s4707
        %p4709 = scmp.lt.s32.totalorder %s35, 1
        %s4710 = scalar_select %p4709, %s35, 1
        %s4711 = smul.addr %s4710, 8
        %s4712 = smul.addr %s4711, 8
        %s4713 = scalar_lea.vmem %s12, %s4712
        %s4714 = sand.u32 %s331, 1
        %s4715 = scalar_lea.sflag [#allocation9], %s4714
        %s4716 = sand.u32 %s331, 1
        %s4717 = smul.addr %s4716, 16
        %s4718 = scalar_lea.vmem [#allocation8], %s4717
        %s4719 = sand.u32 %s357, 1
        %s4720 = scalar_lea.sflag [#allocation11], %s4719
        %s4721 = sand.u32 %s357, 1
        %s4722 = smul.addr %s4721, 4
        %s4723 = scalar_lea.vmem [#allocation10], %s4722
        %p4724 = scmp.lt.s32.totalorder %s35, 1
        %s4725 = scalar_select %p4724, %s35, 1
        %s4726 = smul.addr %s4725, 4
        %s4727 = scalar_lea.vmem %s15, %s4726
        // Predicated region
        $region86: #{forward.1} parent=63 // pred_check
          %p4728 = pneg %p289
        $region87: #{forward.1} parent=63 // pred_check_branch
          %4730 = sbr.rel (%p4728) target = $region89
        $region88: #{forward.1} parent=63 // pred_region
          _
        $region89: #{forward.1} parent=63 // pred_fallthru
          _
        // Predicated region
        $region90: #{forward.1} parent=63 // pred_check
          %p4731 = pneg %p315
        $region91: #{forward.1} parent=63 // pred_check_branch
          %4733 = sbr.rel (%p4731) target = $region93
        $region92: #{forward.1} parent=63 // pred_region
          _
        $region93: #{forward.1} parent=63 // pred_fallthru
          _
        // Predicated region
        $region94: #{forward.1} parent=63 // pred_check
          %p4734 = pneg %p341
        $region95: #{forward.1} parent=63 // pred_check_branch
          %4736 = sbr.rel (%p4734) target = $region97
        $region96: #{forward.1} parent=63 // pred_region
          %s4738 = ssub.s32 256, 256
          %4739 = vsyncadd %s4715, %s4738
          %s4740 = smul.addr %s35, 2
          %s4741 = smul.addr %s4740, 128
          %s4742 = scalar_lea.hbm %s13, %s4741
          %s4743 = sshll.u32 %s4718, 4
          %s4744 = int_to_ptr.vmem [resolvable:$true] %s4743
          %4749 = dma.vmem_to_hbm [thread:$0]  %s4744, 256, %s4742, %s4715, 128, 128, 8
        $region97: #{forward.1} parent=63 // pred_fallthru
          _
        // Predicated region
        $region98: #{forward.1} parent=63 // pred_check
          %p4750 = pneg %p367
        $region99: #{forward.1} parent=63 // pred_check_branch
          %4752 = sbr.rel (%p4750) target = $region101
        $region100: #{forward.1} parent=63 // pred_region
          %s4754 = ssub.s32 64, 64
          %4755 = vsyncadd %s4720, %s4754
          %s4756 = smul.addr %s35, 64
          %s4757 = scalar_lea.hbm %s14, %s4756
          %s4759 = sshll.u32 %s4723, 4
          %s4760 = int_to_ptr.vmem [resolvable:$true] %s4759
          %4762 = dma.vmem_to_hbm [thread:$0]  %s4760, 64, %s4757, %s4720
        $region101: #{forward.1} parent=63 // pred_fallthru
          _
        // Predicated region
        $region102: #{forward.1} parent=63 // pred_check
          %p4763 = pneg %p393
        $region103: #{forward.1} parent=63 // pred_check_branch
          %4765 = sbr.rel (%p4763) target = $region105
        $region104: #{forward.1} parent=63 // pred_region
          _
        $region105: #{forward.1} parent=63 // pred_fallthru
          _
      $region64: #{forward.1} parent=5 // pred_fallthru
        _
      %p4766 = scmp.le.s32.totalorder 2, %s30
      // Predicated region
      $region106: #{forward.1} parent=5 // pred_check
        %p4767 = pneg %p4766
      $region107: #{forward.1} parent=5 // pred_check_branch
        %4769 = sbr.rel (%p4767) target = $region109
      $region108: #{forward.1} parent=5 // pred_region
        %s4770 = ssub.s32 %s30, 2
        // Predicated region
        $region110: #{forward.1} parent=108 // pred_check
          %p4771 = pneg %p295
        $region111: #{forward.1} parent=108 // pred_check_branch
          %4773 = sbr.rel (%p4771) target = $region113
        $region112: #{forward.1} parent=108 // pred_region
          %p4774 = scmp.lt.s32.totalorder %s36, 1
          %s4775 = scalar_select %p4774, %s36, 1
          %s4776 = smul.addr %s4775, 31
          %s4777 = smul.addr %s4776, 8
          %s4778 = scalar_lea.vmem %s11, %s4777
        $region113: #{forward.1} parent=108 // pred_fallthru
          _
        // Predicated region
        $region114: #{forward.1} parent=108 // pred_check
          %p4779 = pneg %p321
        $region115: #{forward.1} parent=108 // pred_check_branch
          %4781 = sbr.rel (%p4779) target = $region117
        $region116: #{forward.1} parent=108 // pred_region
          %p4782 = scmp.lt.s32.totalorder %s36, 1
          %s4783 = scalar_select %p4782, %s36, 1
          %s4784 = smul.addr %s4783, 8
          %s4785 = smul.addr %s4784, 8
          %s4786 = scalar_lea.vmem %s12, %s4785
        $region117: #{forward.1} parent=108 // pred_fallthru
          _
        // Predicated region
        $region118: #{forward.1} parent=108 // pred_check
          %p4787 = pneg %p347
        $region119: #{forward.1} parent=108 // pred_check_branch
          %4789 = sbr.rel (%p4787) target = $region121
        $region120: #{forward.1} parent=108 // pred_region
          %s4790 = sand.u32 %s332, 1
          %s4791 = scalar_lea.sflag [#allocation9], %s4790
          %s4792 = sand.u32 %s332, 1
          %s4793 = smul.addr %s4792, 16
          %s4794 = scalar_lea.vmem [#allocation8], %s4793
          %4795 = dma.done %s4791, 256
        $region121: #{forward.1} parent=108 // pred_fallthru
          _
        // Predicated region
        $region122: #{forward.1} parent=108 // pred_check
          %p4796 = pneg %p373
        $region123: #{forward.1} parent=108 // pred_check_branch
          %4798 = sbr.rel (%p4796) target = $region125
        $region124: #{forward.1} parent=108 // pred_region
          %s4799 = sand.u32 %s358, 1
          %s4800 = scalar_lea.sflag [#allocation11], %s4799
          %s4801 = sand.u32 %s358, 1
          %s4802 = smul.addr %s4801, 4
          %s4803 = scalar_lea.vmem [#allocation10], %s4802
          %4804 = dma.done %s4800, 64
        $region125: #{forward.1} parent=108 // pred_fallthru
          _
        // Predicated region
        $region126: #{forward.1} parent=108 // pred_check
          %p4805 = pneg %p399
        $region127: #{forward.1} parent=108 // pred_check_branch
          %4807 = sbr.rel (%p4805) target = $region129
        $region128: #{forward.1} parent=108 // pred_region
          %p4808 = scmp.lt.s32.totalorder %s36, 1
          %s4809 = scalar_select %p4808, %s36, 1
          %s4810 = smul.addr %s4809, 4
          %s4811 = scalar_lea.vmem %s15, %s4810
        $region129: #{forward.1} parent=108 // pred_fallthru
          _
      $region109: #{forward.1} parent=5 // pred_fallthru
        _
    $region6: #{forward.1} parent=1 // loop_footer
      %s34 = sadd.s32 1, %s30
    $region7: #{forward.1} parent=1 // loop_footer_branch
      %29 = sbr.rel target = $region3
    $region8: #{forward.1} parent=1 // loop_exit
      _
    %4812 = vsyncpa [#allocation9], 1
    %s4813 = scalar_lea.sflag [#allocation9], 1
    %4814 = vsyncpa %s4813, 1
    %4815 = vsyncpa [#allocation11], 1
    %s4816 = scalar_lea.sflag [#allocation11], 1
    %4817 = vsyncpa %s4816, 1

</llo_original>
